<compile_context>
chip_gen: v5e
topology: v5e:2x2
jax: 0.10.0
libtpu: 0.0.40
codegen_flags: <defaults>
</compile_context>

<pallas_src>
import math
import functools
import numpy as np

import jax
import jax.numpy as jnp
from jax.experimental import pallas as pl
from jax.experimental.pallas import tpu as pltpu


def _pick_frames_per_step(total, bytes_per_frame, *, vmem_budget=4 << 20,
                          cap=32, min_steps=2):
    """Largest divisor of `total` <= cap that fits the VMEM budget and leaves
    at least `min_steps` grid steps (so pipelining / megacore still engage)."""
    best = 1
    for d in range(1, total + 1):
        if total % d or d > cap or d * bytes_per_frame > vmem_budget:
            continue
        if d != 1 and total // d < min_steps:
            continue
        best = max(best, d)
    return best


# ----------------------------------------------------------------------------
# Kernel 1: fused spatial stage on lane-packed frames.
#   conv1 (dense 1x3x3, BN-scale folded) + bias + ReLU      -> x1 (MXU, f32 acc)
#   conv2 (grouped/depthwise 1x3x3, BN-scale folded) + ReLU -> x2 (VPU FMAs)
#   concat([x1, x2])[:mid]                                  -> cat (bf16 store)
# Each frame occupies LP lanes of the flattened padded (Hp*Wp) domain; only
# interior lanes are meaningful, halo/tail lanes are masked / cropped later.
# ----------------------------------------------------------------------------
def _spatial_fused_kernel(x_ref, w1_ref, b1_ref, w2_ref, b2_ref, mask_ref,
                          cat_ref, *, Wp, mid, ratio_m1):
    init = b1_ref.shape[0]
    L = x_ref.shape[1]                     # Bt * LP lanes (frames along lanes)

    # 3x3 tap offsets on the flattened padded per-frame domain (row stride Wp).
    # SAFETY: for kernel 3x3 / pad 1 / stride 1, every *interior* pixel p
    # satisfies p_local + off in [0, Hp*Wp) for |off| <= Wp+1, so the cyclic
    # lane roll never wraps a kept lane across a frame or block boundary.
    taps = [(ky - 1) * Wp + (kx - 1) for ky in range(3) for kx in range(3)]

    x = x_ref[...]                          # (Cin, L) bf16 (bf16 in HBM too)
    w1 = w1_ref[...]                        # (9, init, Cin) bf16, BN folded
    b1 = b1_ref[...]                        # (init, 1) f32
    w2 = w2_ref[...]                        # (9, ratio_m1, init, 1) f32, BN folded
    b2 = b2_ref[...]                        # (new, 1) f32
    msk = mask_ref[...]                     # (1, L) f32: 1 interior, 0 halo/tail

    def shifted(v, off):
        # shifted[..., p] = v[..., p + off]   (cyclic roll on the lane axis)
        return v if off == 0 else pltpu.roll(v, shift=(-off) % L, axis=1)

    # ---- conv1: one shared bf16 RHS, 9 small MXU dots, roll the f32 results.
    # (kept as 9 K=Cin dots rather than a single K=9*Cin im2col dot: frame
    #  packing already amortises MXU pushes ~Bt-fold and this avoids a
    #  misaligned in-kernel sublane concat.)
    acc = jnp.zeros((init, L), jnp.float32)
    for k, off in enumerate(taps):
        yk = jnp.dot(w1[k], x, preferred_element_type=jnp.float32)
        acc = acc + shifted(yk, off)
    # folded-BN bias + ReLU; the mask also creates the zero halo conv2 needs.
    x1 = jnp.maximum(acc + b1, 0.0) * msk

    if mid > init:
        # ---- conv2: grouped/depthwise 1x3x3 as f32 VPU FMAs (no MXU).
        accs = [jnp.zeros((init, L), jnp.float32) for _ in range(ratio_m1)]
        for k, off in enumerate(taps):
            xs = shifted(x1, off)
            for r in range(ratio_m1):
                accs[r] = accs[r] + w2[k, r] * xs     # (init,1)*(init,L)
        if ratio_m1 == 1:
            x2 = accs[0]
        else:   # general ratio: output channel order co = group*ratio_m1 + r
            x2 = jnp.stack(accs, axis=1).reshape(init * ratio_m1, L)
        x2 = jnp.maximum(x2 + b2, 0.0)
        catb = jnp.concatenate([x1, x2[:mid - init]], axis=0)
    else:
        catb = x1[:mid]

    cat_ref[...] = catb.astype(cat_ref.dtype)


def spatial_fused(xf, w1k, b1, w2d, b2, mask, *, mid, ratio_m1, Wp, LP,
                  frames_per_step):
    Cin, Ltot = xf.shape
    init = b1.shape[0]
    new = b2.shape[0]
    Ftot = Ltot // LP
    assert Ftot % frames_per_step == 0
    L = frames_per_step * LP
    kern = functools.partial(_spatial_fused_kernel, Wp=Wp, mid=mid,
                             ratio_m1=ratio_m1)
    return pl.pallas_call(
        kern,
        out_shape=jax.ShapeDtypeStruct((mid, Ltot), jnp.bfloat16),
        grid=(Ftot // frames_per_step,),
        in_specs=[
            pl.BlockSpec((Cin, L), lambda i: (0, i)),
            pl.BlockSpec((9, init, Cin), lambda i: (0, 0, 0)),
            pl.BlockSpec((init, 1), lambda i: (0, 0)),
            pl.BlockSpec((9, ratio_m1, init, 1), lambda i: (0, 0, 0, 0)),
            pl.BlockSpec((new, 1), lambda i: (0, 0)),
            pl.BlockSpec((1, L), lambda i: (0, 0)),
        ],
        out_specs=pl.BlockSpec((mid, L), lambda i: (0, i)),
        compiler_params=pltpu.CompilerParams(
            dimension_semantics=("parallel",)),
    )(xf, w1k, b1, w2d, b2, mask)


# ----------------------------------------------------------------------------
# Kernel 2: temporal (3,1,1) conv, stride 1, pad 1.
#   grid = (N, T//BT); each step produces BT lane-packed output frames with
#   3 bf16 MXU dots.  The t-1 / t+1 inputs are built from the resident block
#   via two 128-aligned lane concats plus two single-frame neighbour blocks
#   (clamped index maps, zeroed at clip boundaries) -> VMEM is O(BT*mid*LP),
#   no whole-clip block.
# ----------------------------------------------------------------------------
def _temporal_kernel(y_ref, yl_ref, yr_ref, w_ref, o_ref, *, BT, LP):
    j = pl.program_id(1)
    nj = pl.num_programs(1)
    y = y_ref[...]                         # (mid, BT*LP) bf16: frames t0..t0+BT-1
    w = w_ref[...]                         # (3, out_p, mid) bf16
    yl = yl_ref[...]                       # frame t0-1 (index clamped)
    yr = yr_ref[...]                       # frame t0+BT (index clamped)
    # zero the out-of-clip temporal pads (only the block-edge frames need it)
    left = jnp.where(j > 0, yl, jnp.zeros_like(yl))
    right = jnp.where(j < nj - 1, yr, jnp.zeros_like(yr))
    if BT > 1:
        prev = jnp.concatenate([left, y[:, :(BT - 1) * LP]], axis=1)
        nxt = jnp.concatenate([y[:, LP:], right], axis=1)
    else:
        prev, nxt = left, right
    acc = jnp.dot(w[1], y, preferred_element_type=jnp.float32)
    acc = acc + jnp.dot(w[0], prev, preferred_element_type=jnp.float32)
    acc = acc + jnp.dot(w[2], nxt, preferred_element_type=jnp.float32)
    o_ref[...] = acc.astype(o_ref.dtype)


def temporal_conv(cat, wT, *, N, T, LP, BT):
    # cat: (mid, N*T*LP) bf16, frame f = n*T + t occupies lanes [f*LP,(f+1)*LP)
    mid, Ltot = cat.shape
    out_p = wT.shape[1]
    assert T % BT == 0
    nj = T // BT
    kern = functools.partial(_temporal_kernel, BT=BT, LP=LP)
    return pl.pallas_call(
        kern,
        out_shape=jax.ShapeDtypeStruct((out_p, Ltot), jnp.float32),
        grid=(N, nj),
        in_specs=[
            pl.BlockSpec((mid, BT * LP), lambda n, t: (0, n * nj + t)),
            pl.BlockSpec((mid, LP),
                         lambda n, t: (0, n * T + jnp.maximum(t * BT - 1, 0))),
            pl.BlockSpec((mid, LP),
                         lambda n, t: (0, n * T + jnp.minimum((t + 1) * BT,
                                                              T - 1))),
            pl.BlockSpec((3, out_p, mid), lambda n, t: (0, 0, 0)),
        ],
        out_specs=pl.BlockSpec((out_p, BT * LP), lambda n, t: (0, n * nj + t)),
        compiler_params=pltpu.CompilerParams(
            dimension_semantics=("parallel", "arbitrary")),
    )(cat, cat, cat, wT)


# ----------------------------------------------------------------------------
# GS3D forward wrapper (only the input transform and the final interior crop /
# NCDHW transpose remain as XLA glue — all activations stay in the kernels).
# ----------------------------------------------------------------------------
def gs3d_forward(x_ncdhw, params, *, stride=1, padding=1, temporal_stride=1):
    # TODO(synk): only spatial stride==1, padding==1, temporal_stride==1 (the
    # module defaults) are implemented; other strides need a different mapping.
    assert stride == 1 and padding == 1 and temporal_stride == 1
    N, Cin, T, H, W = x_ncdhw.shape
    Hp, Wp = H + 2, W + 2
    HpWp = Hp * Wp
    LP = ((HpWp + 127) // 128) * 128       # lane-dense per-frame extent
    Ftot = N * T
    mid = params['midplanes']
    init = params['init_channels']
    new = params['new_channels']
    ratio_m1 = params['ratio'] - 1
    out_p = params['out_planes']

    # NCDHW f32 -> (Cin, N*T*LP) bf16: one zero-padded flattened frame per
    # LP-lane slot (bf16 halves the input HBM/DMA traffic).
    xb = x_ncdhw.astype(jnp.bfloat16)
    xb = jnp.transpose(xb, (1, 0, 2, 3, 4)).reshape(Cin, Ftot, H, W)
    xb = jnp.pad(xb, ((0, 0), (0, 0), (1, 1), (1, 1)))
    xb = jnp.pad(xb.reshape(Cin, Ftot, HpWp),
                 ((0, 0), (0, 0), (0, LP - HpWp)))
    xf = xb.reshape(Cin, Ftot * LP)

    # frames per grid step (divisor of N*T, derived from a VMEM budget)
    bpf_sp = ((Cin + mid) * 2 * 2 + (init + new + mid) * 4) * LP
    Bt = _pick_frames_per_step(Ftot, bpf_sp)

    # per-frame interior mask (1 on real pixels, 0 on halo + lane tail),
    # tiled across the Bt lane-packed frames of one block — host constant.
    mframe = np.zeros((Hp, Wp), np.float32)
    mframe[1:Hp - 1, 1:Wp - 1] = 1.0
    mflat = np.zeros((LP,), np.float32)
    mflat[:HpWp] = mframe.reshape(-1)
    mask = jnp.asarray(np.tile(mflat, Bt)[None, :])

    cat = spatial_fused(
        xf, params['w1k'],
        params['bn1_bias'].reshape(-1, 1), params['w2d'],
        params['bn2_bias'].reshape(-1, 1), mask,
        mid=mid, ratio_m1=ratio_m1, Wp=Wp, LP=LP, frames_per_step=Bt)

    # temporal (3,1,1) conv, stride 1, pad 1  ->  T_out == T
    bpf_t = (mid * 2 * 2 + out_p * 4 * 2) * LP
    BT = _pick_frames_per_step(T, bpf_t, min_steps=1 if N > 1 else 2)
    out_flat = temporal_conv(cat, params['wTk'], N=N, T=T, LP=LP, BT=BT)

    # crop interior lanes + back to NCDHW (single pass on the final output)
    out = out_flat.reshape(out_p, N, T, LP)[..., :HpWp]
    out = out.reshape(out_p, N, T, Hp, Wp)[..., 1:H + 1, 1:W + 1]
    return jnp.transpose(out, (1, 0, 2, 3, 4))


# ----------------------------------------------------------------------------
# Deterministic synthetic parameters (shapes from GS3D.__init__)
# ----------------------------------------------------------------------------
def init_params(key, in_planes, out_planes, midplanes, ratio=2):
    init_ch = math.ceil(midplanes / ratio)
    new_ch = init_ch * (ratio - 1)
    r1 = ratio - 1
    ks = jax.random.split(key, 5)

    w1_pt = jax.random.normal(ks[0], (init_ch, in_planes, 1, 3, 3), jnp.float32) * 0.2
    w2_pt = jax.random.normal(ks[1], (new_ch, 1, 1, 3, 3), jnp.float32) * 0.2
    wT_pt = jax.random.normal(ks[2], (out_planes, midplanes, 3, 1, 1), jnp.float32) * 0.2

    def make_bn(k, c):
        k1, k2, k3, k4 = jax.random.split(k, 4)
        gamma = jax.random.uniform(k1, (c,), jnp.float32, 0.5, 1.5)
        beta = jax.random.normal(k2, (c,), jnp.float32) * 0.1
        mean = jax.random.normal(k3, (c,), jnp.float32) * 0.1
        var = jax.random.uniform(k4, (c,), jnp.float32, 0.5, 1.5)
        eps = 1e-5
        scale = gamma * jax.lax.rsqrt(var + eps)
        bias = beta - mean * scale
        return scale, bias

    bn1_scale, bn1_bias = make_bn(ks[3], init_ch)
    bn2_scale, bn2_bias = make_bn(ks[4], new_ch)

    # kernel-layout weights with the BN scales folded in host-side
    #   w1k[k, o, i] = s1[o] * w1_pt[o, i, 0, ky, kx],  k = ky*3 + kx   (bf16)
    w1k = jnp.transpose(w1_pt[:, :, 0], (2, 3, 0, 1)).reshape(9, init_ch, in_planes)
    w1k = (w1k * bn1_scale[None, :, None]).astype(jnp.bfloat16)
    #   w2d[k, r, g, 0] = s2[g*r1+r] * w2_pt[g*r1+r, 0, 0, ky, kx]      (f32, VPU)
    w2d = jnp.transpose(w2_pt[:, 0, 0].reshape(init_ch, r1, 3, 3),
                        (2, 3, 1, 0)).reshape(9, r1, init_ch)
    w2d = (w2d * bn2_scale.reshape(init_ch, r1).T[None])[..., None]
    #   wTk[kt, o, c] = wT_pt[o, c, kt]                                  (bf16)
    wTk = jnp.transpose(wT_pt[:, :, :, 0, 0], (2, 0, 1)).astype(jnp.bfloat16)

    return dict(
        midplanes=midplanes, out_planes=out_planes, ratio=ratio,
        init_channels=init_ch, new_channels=new_ch,
        w1_pt=w1_pt, w2_pt=w2_pt, wT_pt=wT_pt,
        w1k=w1k, w2d=w2d, wTk=wTk,
        bn1_scale=bn1_scale, bn1_bias=bn1_bias,
        bn2_scale=bn2_scale, bn2_bias=bn2_bias,
    )


# ----------------------------------------------------------------------------
# Pure-JAX reference (NCDHW, lax conv) for correctness check
# ----------------------------------------------------------------------------
def reference_forward(x, prm, *, stride=1, padding=1, temporal_stride=1):
    P = jax.lax.Precision.HIGHEST
    p = padding

    def conv(x, w, strides, pads, groups=1):
        return jax.lax.conv_general_dilated(
            x, w, window_strides=strides, padding=pads,
            dimension_numbers=('NCDHW', 'OIDHW', 'NCDHW'),
            feature_group_count=groups, precision=P)

    def bn_relu(x, scale, bias):
        s = scale[None, :, None, None, None]
        b = bias[None, :, None, None, None]
        return jnp.maximum(x * s + b, 0.0)

    x1 = bn_relu(conv(x, prm['w1_pt'], (1, stride, stride),
                      [(0, 0), (p, p), (p, p)]),
                 prm['bn1_scale'], prm['bn1_bias'])
    x2 = bn_relu(conv(x1, prm['w2_pt'], (1, 1, 1),
                      [(0, 0), (p, p), (p, p)], groups=prm['init_channels']),
                 prm['bn2_scale'], prm['bn2_bias'])
    cat = jnp.concatenate([x1, x2], axis=1)[:, :prm['midplanes']]
    return conv(cat, prm['wT_pt'], (temporal_stride, 1, 1),
                [(p, p), (0, 0), (0, 0)])


if __name__ == "__main__":
    key = jax.random.PRNGKey(0)
    kx, kp = jax.random.split(key)

    # small shapes: batch=2, in_planes=4, T=8, H=W=16, midplanes=8, out_planes=8
    B, Cin, T, H, W = 2, 4, 8, 16, 16
    midplanes, out_planes, ratio = 8, 8, 2

    x = jax.random.normal(kx, (B, Cin, T, H, W), jnp.float32)
    params = init_params(kp, Cin, out_planes, midplanes, ratio)

    out = gs3d_forward(x, params, stride=1, padding=1, temporal_stride=1)
    out = jax.block_until_ready(out)

    ref = reference_forward(x, params, stride=1, padding=1, temporal_stride=1)
    ref = jax.block_until_ready(ref)

    assert out.shape == ref.shape, (out.shape, ref.shape)
    # bf16 activations/weights on the MXU + bf16 `cat` -> loosened tolerance
    np.testing.assert_allclose(np.asarray(out), np.asarray(ref),
                               rtol=5e-2, atol=5e-2)
    print("KERNEL_OK")
</pallas_src>

<mosaic_0001>
module attributes {stable_mosaic.version = 11 : i64} {
  func.func @_spatial_fused_kernel(%arg0: i32, %arg1: memref<4x3072xbf16, #tpu.memory_space<vmem>>, %arg2: memref<9x4x4xbf16, #tpu.memory_space<vmem>>, %arg3: memref<4x1xf32, #tpu.memory_space<vmem>>, %arg4: memref<9x1x4x1xf32, #tpu.memory_space<vmem>>, %arg5: memref<4x1xf32, #tpu.memory_space<vmem>>, %arg6: memref<1x3072xf32, #tpu.memory_space<vmem>>, %arg7: memref<8x3072xbf16, #tpu.memory_space<vmem>>) attributes {dimension_semantics = [#tpu.dimension_semantics<parallel>], iteration_bounds = array<i64: 2>, scalar_prefetch = 0 : i64, scratch_operands = 0 : i64, tpu.core_type = #tpu.core_type<tc>, window_params = [{transform_indices = @transform_0, window_bounds = array<i64: 4, 3072>}, {pipeline_mode = #tpu.pipeline_mode<synchronous>, transform_indices = @transform_1, window_bounds = array<i64: 9, 4, 4>}, {pipeline_mode = #tpu.pipeline_mode<synchronous>, transform_indices = @transform_2, window_bounds = array<i64: 4, 1>}, {pipeline_mode = #tpu.pipeline_mode<synchronous>, transform_indices = @transform_3, window_bounds = array<i64: 9, 1, 4, 1>}, {pipeline_mode = #tpu.pipeline_mode<synchronous>, transform_indices = @transform_4, window_bounds = array<i64: 4, 1>}, {pipeline_mode = #tpu.pipeline_mode<synchronous>, transform_indices = @transform_5, window_bounds = array<i64: 1, 3072>}, {transform_indices = @transform_6, window_bounds = array<i64: 8, 3072>}]} {
    %c0 = arith.constant 0 : index
    %c0_0 = arith.constant 0 : index
    %0 = vector.load %arg1[%c0, %c0_0] : memref<4x3072xbf16, #tpu.memory_space<vmem>>, vector<4x3072xbf16>
    %c0_1 = arith.constant 0 : index
    %c0_2 = arith.constant 0 : index
    %c0_3 = arith.constant 0 : index
    %1 = vector.load %arg2[%c0_1, %c0_2, %c0_3] : memref<9x4x4xbf16, #tpu.memory_space<vmem>>, vector<9x4x4xbf16>
    %c0_4 = arith.constant 0 : index
    %c0_5 = arith.constant 0 : index
    %2 = vector.load %arg3[%c0_4, %c0_5] : memref<4x1xf32, #tpu.memory_space<vmem>>, vector<4x1xf32>
    %c0_6 = arith.constant 0 : index
    %c0_7 = arith.constant 0 : index
    %c0_8 = arith.constant 0 : index
    %c0_9 = arith.constant 0 : index
    %3 = vector.load %arg4[%c0_6, %c0_7, %c0_8, %c0_9] : memref<9x1x4x1xf32, #tpu.memory_space<vmem>>, vector<9x1x4x1xf32>
    %c0_10 = arith.constant 0 : index
    %c0_11 = arith.constant 0 : index
    %4 = vector.load %arg5[%c0_10, %c0_11] : memref<4x1xf32, #tpu.memory_space<vmem>>, vector<4x1xf32>
    %c0_12 = arith.constant 0 : index
    %c0_13 = arith.constant 0 : index
    %5 = vector.load %arg6[%c0_12, %c0_13] : memref<1x3072xf32, #tpu.memory_space<vmem>>, vector<1x3072xf32>
    %cst = arith.constant 0.000000e+00 : f32
    %6 = vector.broadcast %cst : f32 to vector<4x3072xf32>
    %7 = vector.extract_strided_slice %1 {offsets = [0, 0, 0], sizes = [1, 4, 4], strides = [1, 1, 1]} : vector<9x4x4xbf16> to vector<1x4x4xbf16>
    %8 = vector.shape_cast %7 : vector<1x4x4xbf16> to vector<4x4xbf16>
    %cst_14 = arith.constant dense<0.000000e+00> : vector<4x3072xf32>
    %9 = tpu.matmul %8, %0, %cst_14 {dimension_numbers = #tpu.dot_dimension_numbers<[1], [0], [0], [1], [0, 0, 1, 1], [], []>} : vector<4x4xbf16>, vector<4x3072xbf16>, vector<4x3072xf32> -> vector<4x3072xf32>
    %c19_i32 = arith.constant 19 : i32
    %10 = tpu.dynamic_rotate %9 by %c19_i32 dim 1 : vector<4x3072xf32>, i32 -> vector<4x3072xf32>
    %11 = arith.addf %6, %10 : vector<4x3072xf32>
    %12 = vector.extract_strided_slice %1 {offsets = [1, 0, 0], sizes = [1, 4, 4], strides = [1, 1, 1]} : vector<9x4x4xbf16> to vector<1x4x4xbf16>
    %13 = vector.shape_cast %12 : vector<1x4x4xbf16> to vector<4x4xbf16>
    %cst_15 = arith.constant dense<0.000000e+00> : vector<4x3072xf32>
    %14 = tpu.matmul %13, %0, %cst_15 {dimension_numbers = #tpu.dot_dimension_numbers<[1], [0], [0], [1], [0, 0, 1, 1], [], []>} : vector<4x4xbf16>, vector<4x3072xbf16>, vector<4x3072xf32> -> vector<4x3072xf32>
    %c18_i32 = arith.constant 18 : i32
    %15 = tpu.dynamic_rotate %14 by %c18_i32 dim 1 : vector<4x3072xf32>, i32 -> vector<4x3072xf32>
    %16 = arith.addf %11, %15 : vector<4x3072xf32>
    %17 = vector.extract_strided_slice %1 {offsets = [2, 0, 0], sizes = [1, 4, 4], strides = [1, 1, 1]} : vector<9x4x4xbf16> to vector<1x4x4xbf16>
    %18 = vector.shape_cast %17 : vector<1x4x4xbf16> to vector<4x4xbf16>
    %cst_16 = arith.constant dense<0.000000e+00> : vector<4x3072xf32>
    %19 = tpu.matmul %18, %0, %cst_16 {dimension_numbers = #tpu.dot_dimension_numbers<[1], [0], [0], [1], [0, 0, 1, 1], [], []>} : vector<4x4xbf16>, vector<4x3072xbf16>, vector<4x3072xf32> -> vector<4x3072xf32>
    %c17_i32 = arith.constant 17 : i32
    %20 = tpu.dynamic_rotate %19 by %c17_i32 dim 1 : vector<4x3072xf32>, i32 -> vector<4x3072xf32>
    %21 = arith.addf %16, %20 : vector<4x3072xf32>
    %22 = vector.extract_strided_slice %1 {offsets = [3, 0, 0], sizes = [1, 4, 4], strides = [1, 1, 1]} : vector<9x4x4xbf16> to vector<1x4x4xbf16>
    %23 = vector.shape_cast %22 : vector<1x4x4xbf16> to vector<4x4xbf16>
    %cst_17 = arith.constant dense<0.000000e+00> : vector<4x3072xf32>
    %24 = tpu.matmul %23, %0, %cst_17 {dimension_numbers = #tpu.dot_dimension_numbers<[1], [0], [0], [1], [0, 0, 1, 1], [], []>} : vector<4x4xbf16>, vector<4x3072xbf16>, vector<4x3072xf32> -> vector<4x3072xf32>
    %c1_i32 = arith.constant 1 : i32
    %25 = tpu.dynamic_rotate %24 by %c1_i32 dim 1 : vector<4x3072xf32>, i32 -> vector<4x3072xf32>
    %26 = arith.addf %21, %25 : vector<4x3072xf32>
    %27 = vector.extract_strided_slice %1 {offsets = [4, 0, 0], sizes = [1, 4, 4], strides = [1, 1, 1]} : vector<9x4x4xbf16> to vector<1x4x4xbf16>
    %28 = vector.shape_cast %27 : vector<1x4x4xbf16> to vector<4x4xbf16>
    %cst_18 = arith.constant dense<0.000000e+00> : vector<4x3072xf32>
    %29 = tpu.matmul %28, %0, %cst_18 {dimension_numbers = #tpu.dot_dimension_numbers<[1], [0], [0], [1], [0, 0, 1, 1], [], []>} : vector<4x4xbf16>, vector<4x3072xbf16>, vector<4x3072xf32> -> vector<4x3072xf32>
    %30 = arith.addf %26, %29 : vector<4x3072xf32>
    %31 = vector.extract_strided_slice %1 {offsets = [5, 0, 0], sizes = [1, 4, 4], strides = [1, 1, 1]} : vector<9x4x4xbf16> to vector<1x4x4xbf16>
    %32 = vector.shape_cast %31 : vector<1x4x4xbf16> to vector<4x4xbf16>
    %cst_19 = arith.constant dense<0.000000e+00> : vector<4x3072xf32>
    %33 = tpu.matmul %32, %0, %cst_19 {dimension_numbers = #tpu.dot_dimension_numbers<[1], [0], [0], [1], [0, 0, 1, 1], [], []>} : vector<4x4xbf16>, vector<4x3072xbf16>, vector<4x3072xf32> -> vector<4x3072xf32>
    %c3071_i32 = arith.constant 3071 : i32
    %34 = tpu.dynamic_rotate %33 by %c3071_i32 dim 1 : vector<4x3072xf32>, i32 -> vector<4x3072xf32>
    %35 = arith.addf %30, %34 : vector<4x3072xf32>
    %36 = vector.extract_strided_slice %1 {offsets = [6, 0, 0], sizes = [1, 4, 4], strides = [1, 1, 1]} : vector<9x4x4xbf16> to vector<1x4x4xbf16>
    %37 = vector.shape_cast %36 : vector<1x4x4xbf16> to vector<4x4xbf16>
    %cst_20 = arith.constant dense<0.000000e+00> : vector<4x3072xf32>
    %38 = tpu.matmul %37, %0, %cst_20 {dimension_numbers = #tpu.dot_dimension_numbers<[1], [0], [0], [1], [0, 0, 1, 1], [], []>} : vector<4x4xbf16>, vector<4x3072xbf16>, vector<4x3072xf32> -> vector<4x3072xf32>
    %c3055_i32 = arith.constant 3055 : i32
    %39 = tpu.dynamic_rotate %38 by %c3055_i32 dim 1 : vector<4x3072xf32>, i32 -> vector<4x3072xf32>
    %40 = arith.addf %35, %39 : vector<4x3072xf32>
    %41 = vector.extract_strided_slice %1 {offsets = [7, 0, 0], sizes = [1, 4, 4], strides = [1, 1, 1]} : vector<9x4x4xbf16> to vector<1x4x4xbf16>
    %42 = vector.shape_cast %41 : vector<1x4x4xbf16> to vector<4x4xbf16>
    %cst_21 = arith.constant dense<0.000000e+00> : vector<4x3072xf32>
    %43 = tpu.matmul %42, %0, %cst_21 {dimension_numbers = #tpu.dot_dimension_numbers<[1], [0], [0], [1], [0, 0, 1, 1], [], []>} : vector<4x4xbf16>, vector<4x3072xbf16>, vector<4x3072xf32> -> vector<4x3072xf32>
    %c3054_i32 = arith.constant 3054 : i32
    %44 = tpu.dynamic_rotate %43 by %c3054_i32 dim 1 : vector<4x3072xf32>, i32 -> vector<4x3072xf32>
    %45 = arith.addf %40, %44 : vector<4x3072xf32>
    %46 = vector.extract_strided_slice %1 {offsets = [8, 0, 0], sizes = [1, 4, 4], strides = [1, 1, 1]} : vector<9x4x4xbf16> to vector<1x4x4xbf16>
    %47 = vector.shape_cast %46 : vector<1x4x4xbf16> to vector<4x4xbf16>
    %cst_22 = arith.constant dense<0.000000e+00> : vector<4x3072xf32>
    %48 = tpu.matmul %47, %0, %cst_22 {dimension_numbers = #tpu.dot_dimension_numbers<[1], [0], [0], [1], [0, 0, 1, 1], [], []>} : vector<4x4xbf16>, vector<4x3072xbf16>, vector<4x3072xf32> -> vector<4x3072xf32>
    %c3053_i32 = arith.constant 3053 : i32
    %49 = tpu.dynamic_rotate %48 by %c3053_i32 dim 1 : vector<4x3072xf32>, i32 -> vector<4x3072xf32>
    %50 = arith.addf %45, %49 : vector<4x3072xf32>
    %51 = vector.broadcast %2 : vector<4x1xf32> to vector<4x3072xf32>
    %52 = arith.addf %50, %51 : vector<4x3072xf32>
    %cst_23 = arith.constant 0.000000e+00 : f32
    %53 = vector.broadcast %cst_23 : f32 to vector<4x3072xf32>
    %54 = arith.maximumf %52, %53 : vector<4x3072xf32>
    %55 = vector.broadcast %5 : vector<1x3072xf32> to vector<4x3072xf32>
    %56 = arith.mulf %54, %55 : vector<4x3072xf32>
    %cst_24 = arith.constant 0.000000e+00 : f32
    %57 = vector.broadcast %cst_24 : f32 to vector<4x3072xf32>
    %c19_i32_25 = arith.constant 19 : i32
    %58 = tpu.dynamic_rotate %56 by %c19_i32_25 dim 1 : vector<4x3072xf32>, i32 -> vector<4x3072xf32>
    %59 = vector.extract_strided_slice %3 {offsets = [0, 0, 0, 0], sizes = [1, 1, 4, 1], strides = [1, 1, 1, 1]} : vector<9x1x4x1xf32> to vector<1x1x4x1xf32>
    %60 = vector.shape_cast %59 : vector<1x1x4x1xf32> to vector<4x1xf32>
    %61 = vector.broadcast %60 : vector<4x1xf32> to vector<4x3072xf32>
    %62 = arith.mulf %61, %58 : vector<4x3072xf32>
    %63 = arith.addf %57, %62 : vector<4x3072xf32>
    %c18_i32_26 = arith.constant 18 : i32
    %64 = tpu.dynamic_rotate %56 by %c18_i32_26 dim 1 : vector<4x3072xf32>, i32 -> vector<4x3072xf32>
    %65 = vector.extract_strided_slice %3 {offsets = [1, 0, 0, 0], sizes = [1, 1, 4, 1], strides = [1, 1, 1, 1]} : vector<9x1x4x1xf32> to vector<1x1x4x1xf32>
    %66 = vector.shape_cast %65 : vector<1x1x4x1xf32> to vector<4x1xf32>
    %67 = vector.broadcast %66 : vector<4x1xf32> to vector<4x3072xf32>
    %68 = arith.mulf %67, %64 : vector<4x3072xf32>
    %69 = arith.addf %63, %68 : vector<4x3072xf32>
    %c17_i32_27 = arith.constant 17 : i32
    %70 = tpu.dynamic_rotate %56 by %c17_i32_27 dim 1 : vector<4x3072xf32>, i32 -> vector<4x3072xf32>
    %71 = vector.extract_strided_slice %3 {offsets = [2, 0, 0, 0], sizes = [1, 1, 4, 1], strides = [1, 1, 1, 1]} : vector<9x1x4x1xf32> to vector<1x1x4x1xf32>
    %72 = vector.shape_cast %71 : vector<1x1x4x1xf32> to vector<4x1xf32>
    %73 = vector.broadcast %72 : vector<4x1xf32> to vector<4x3072xf32>
    %74 = arith.mulf %73, %70 : vector<4x3072xf32>
    %75 = arith.addf %69, %74 : vector<4x3072xf32>
    %c1_i32_28 = arith.constant 1 : i32
    %76 = tpu.dynamic_rotate %56 by %c1_i32_28 dim 1 : vector<4x3072xf32>, i32 -> vector<4x3072xf32>
    %77 = vector.extract_strided_slice %3 {offsets = [3, 0, 0, 0], sizes = [1, 1, 4, 1], strides = [1, 1, 1, 1]} : vector<9x1x4x1xf32> to vector<1x1x4x1xf32>
    %78 = vector.shape_cast %77 : vector<1x1x4x1xf32> to vector<4x1xf32>
    %79 = vector.broadcast %78 : vector<4x1xf32> to vector<4x3072xf32>
    %80 = arith.mulf %79, %76 : vector<4x3072xf32>
    %81 = arith.addf %75, %80 : vector<4x3072xf32>
    %82 = vector.extract_strided_slice %3 {offsets = [4, 0, 0, 0], sizes = [1, 1, 4, 1], strides = [1, 1, 1, 1]} : vector<9x1x4x1xf32> to vector<1x1x4x1xf32>
    %83 = vector.shape_cast %82 : vector<1x1x4x1xf32> to vector<4x1xf32>
    %84 = vector.broadcast %83 : vector<4x1xf32> to vector<4x3072xf32>
    %85 = arith.mulf %84, %56 : vector<4x3072xf32>
    %86 = arith.addf %81, %85 : vector<4x3072xf32>
    %c3071_i32_29 = arith.constant 3071 : i32
    %87 = tpu.dynamic_rotate %56 by %c3071_i32_29 dim 1 : vector<4x3072xf32>, i32 -> vector<4x3072xf32>
    %88 = vector.extract_strided_slice %3 {offsets = [5, 0, 0, 0], sizes = [1, 1, 4, 1], strides = [1, 1, 1, 1]} : vector<9x1x4x1xf32> to vector<1x1x4x1xf32>
    %89 = vector.shape_cast %88 : vector<1x1x4x1xf32> to vector<4x1xf32>
    %90 = vector.broadcast %89 : vector<4x1xf32> to vector<4x3072xf32>
    %91 = arith.mulf %90, %87 : vector<4x3072xf32>
    %92 = arith.addf %86, %91 : vector<4x3072xf32>
    %c3055_i32_30 = arith.constant 3055 : i32
    %93 = tpu.dynamic_rotate %56 by %c3055_i32_30 dim 1 : vector<4x3072xf32>, i32 -> vector<4x3072xf32>
    %94 = vector.extract_strided_slice %3 {offsets = [6, 0, 0, 0], sizes = [1, 1, 4, 1], strides = [1, 1, 1, 1]} : vector<9x1x4x1xf32> to vector<1x1x4x1xf32>
    %95 = vector.shape_cast %94 : vector<1x1x4x1xf32> to vector<4x1xf32>
    %96 = vector.broadcast %95 : vector<4x1xf32> to vector<4x3072xf32>
    %97 = arith.mulf %96, %93 : vector<4x3072xf32>
    %98 = arith.addf %92, %97 : vector<4x3072xf32>
    %c3054_i32_31 = arith.constant 3054 : i32
    %99 = tpu.dynamic_rotate %56 by %c3054_i32_31 dim 1 : vector<4x3072xf32>, i32 -> vector<4x3072xf32>
    %100 = vector.extract_strided_slice %3 {offsets = [7, 0, 0, 0], sizes = [1, 1, 4, 1], strides = [1, 1, 1, 1]} : vector<9x1x4x1xf32> to vector<1x1x4x1xf32>
    %101 = vector.shape_cast %100 : vector<1x1x4x1xf32> to vector<4x1xf32>
    %102 = vector.broadcast %101 : vector<4x1xf32> to vector<4x3072xf32>
    %103 = arith.mulf %102, %99 : vector<4x3072xf32>
    %104 = arith.addf %98, %103 : vector<4x3072xf32>
    %c3053_i32_32 = arith.constant 3053 : i32
    %105 = tpu.dynamic_rotate %56 by %c3053_i32_32 dim 1 : vector<4x3072xf32>, i32 -> vector<4x3072xf32>
    %106 = vector.extract_strided_slice %3 {offsets = [8, 0, 0, 0], sizes = [1, 1, 4, 1], strides = [1, 1, 1, 1]} : vector<9x1x4x1xf32> to vector<1x1x4x1xf32>
    %107 = vector.shape_cast %106 : vector<1x1x4x1xf32> to vector<4x1xf32>
    %108 = vector.broadcast %107 : vector<4x1xf32> to vector<4x3072xf32>
    %109 = arith.mulf %108, %105 : vector<4x3072xf32>
    %110 = arith.addf %104, %109 : vector<4x3072xf32>
    %111 = vector.broadcast %4 : vector<4x1xf32> to vector<4x3072xf32>
    %112 = arith.addf %110, %111 : vector<4x3072xf32>
    %cst_33 = arith.constant 0.000000e+00 : f32
    %113 = vector.broadcast %cst_33 : f32 to vector<4x3072xf32>
    %114 = arith.maximumf %112, %113 : vector<4x3072xf32>
    %115 = tpu.concatenate %56, %114 in 0 : vector<4x3072xf32>, vector<4x3072xf32> -> vector<8x3072xf32>
    %116 = arith.truncf %115 : vector<8x3072xf32> to vector<8x3072xbf16>
    %c0_34 = arith.constant 0 : index
    %c0_35 = arith.constant 0 : index
    %117 = vector.load %arg7[%c0_34, %c0_35] : memref<8x3072xbf16, #tpu.memory_space<vmem>>, vector<8x3072xbf16>
    tpu.vector_store %arg7[%c0_34, %c0_35], %116 {strides = array<i32>} : memref<8x3072xbf16, #tpu.memory_space<vmem>>, vector<8x3072xbf16>,
    return
  }
  func.func @transform_0(%arg0: i32) -> (i32, i32) {
    %c0_i32 = arith.constant 0 : i32
    %c0_i32_0 = arith.constant 0 : i32
    return %c0_i32, %arg0 : i32, i32
  }
  func.func @transform_1(%arg0: i32) -> (i32, i32, i32) {
    %c0_i32 = arith.constant 0 : i32
    %c0_i32_0 = arith.constant 0 : i32
    %c0_i32_1 = arith.constant 0 : i32
    %c0_i32_2 = arith.constant 0 : i32
    return %c0_i32, %c0_i32_0, %c0_i32_1 : i32, i32, i32
  }
  func.func @transform_2(%arg0: i32) -> (i32, i32) {
    %c0_i32 = arith.constant 0 : i32
    %c0_i32_0 = arith.constant 0 : i32
    %c0_i32_1 = arith.constant 0 : i32
    return %c0_i32, %c0_i32_0 : i32, i32
  }
  func.func @transform_3(%arg0: i32) -> (i32, i32, i32, i32) {
    %c0_i32 = arith.constant 0 : i32
    %c0_i32_0 = arith.constant 0 : i32
    %c0_i32_1 = arith.constant 0 : i32
    %c0_i32_2 = arith.constant 0 : i32
    %c0_i32_3 = arith.constant 0 : i32
    return %c0_i32, %c0_i32_0, %c0_i32_1, %c0_i32_2 : i32, i32, i32, i32
  }
  func.func @transform_4(%arg0: i32) -> (i32, i32) {
    %c0_i32 = arith.constant 0 : i32
    %c0_i32_0 = arith.constant 0 : i32
    %c0_i32_1 = arith.constant 0 : i32
    return %c0_i32, %c0_i32_0 : i32, i32
  }
  func.func @transform_5(%arg0: i32) -> (i32, i32) {
    %c0_i32 = arith.constant 0 : i32
    %c0_i32_0 = arith.constant 0 : i32
    %c0_i32_1 = arith.constant 0 : i32
    return %c0_i32, %c0_i32_0 : i32, i32
  }
  func.func @transform_6(%arg0: i32) -> (i32, i32) {
    %c0_i32 = arith.constant 0 : i32
    %c0_i32_0 = arith.constant 0 : i32
    return %c0_i32, %arg0 : i32, i32
  }
}

</mosaic_0001>

<llo_original>
// kernel: tpu_custom_call.1
$region0: #{tpu_custom_call.1}
  #allocation0 [shape = 'u32[]', space=smem, size = 0x4, offset = 0x4, fixed_abs, tag = 'smem constant byte address 0x4 - core index']
  #allocation1 [shape = 'u32[72,128]{1,0:T(1,128)}', space=vmem, size = 0x9000, scoped, tag = 'internal scratch']
  %s0 = inlined_call_operand.hbm [shape: bf16[4,6144], index: 0, kind: input, shape index: {}]
  %s1 = inlined_call_operand.vmem [shape: bf16[9,4,4], index: 1, kind: input, shape index: {}]
  %s2 = inlined_call_operand.vmem [shape: f32[4,1], index: 2, kind: input, shape index: {}]
  %s3 = inlined_call_operand.vmem [shape: f32[9,1,4,1], index: 3, kind: input, shape index: {}]
  %s4 = inlined_call_operand.vmem [shape: f32[4,1], index: 4, kind: input, shape index: {}]
  %s5 = inlined_call_operand.vmem [shape: f32[1,3072], index: 5, kind: input, shape index: {}]
  %s6 = inlined_call_operand.hbm [shape: bf16[8,6144], index: 6, kind: output, shape index: {}]
  %s7 = sld [smem:[#allocation0]]
  $region61: #{tpu_custom_call.1} parent=0
    _
  %s9 = ssub.s32 1, %s7
  %s10 = scalar_select 0, %s9, %s7
  $region1: #{tpu_custom_call.1} parent=0
    #allocation2 [shape = 'u8[49152]{0}', space=vmem, size = 0xc000, scoped, tag = 'input window, operand 0']
    #allocation3 [shape = 's32[2]{0}', space=sflag, size = 0x8, scoped, tag = 'scoped memory for tpu_custom_call.1']
    #allocation4 [shape = 's32[2]{0}', space=sflag, size = 0x8, scoped, tag = 'scoped memory for tpu_custom_call.1']
    #allocation5 [shape = 'u8[98304]{0}', space=vmem, size = 0x18000, scoped, tag = 'output window, operand 0']
    %11 = vsyncpa [#allocation3], 0
    %s12 = scalar_lea.sflag [#allocation3], 1
    %13 = vsyncpa %s12, 0
    %14 = vsyncpa [#allocation4], 0
    %s15 = scalar_lea.sflag [#allocation4], 1
    %16 = vsyncpa %s15, 0
    loop: start=0, step=1, limit=4
    $region2: #{tpu_custom_call.1} parent=1 // loop_pre_header
      _
    $region3: #{tpu_custom_call.1} parent=1 // loop_header
      %s18 = sphi 0, %s22
      %p19 = scmp.ge.s32.totalorder %s18, 4
      %s28 = sphi 0, %s30
      %s31 = sphi 0, %s28
      %s32 = sphi 0, %s31
      %s48 = sphi 0, %s32
      %s52 = sphi 0, %s52
      %s54 = sphi 0, %s52
      %s55 = sphi 0, %s54
      %s69 = sphi 0, %s55
      %s73 = sphi 0, %s73
      %s75 = sphi 0, %s73
      %s76 = sphi 0, %s75
      %s90 = sphi 0, %s76
      %s94 = sphi 0, %s94
      %s96 = sphi 0, %s94
      %s97 = sphi 0, %s96
      %s111 = sphi 0, %s97
      %s115 = sphi 0, %s115
      %s117 = sphi 0, %s115
      %s118 = sphi 0, %s117
      %s132 = sphi 0, %s118
      %s136 = sphi 0, %s136
      %s138 = sphi 0, %s136
      %s139 = sphi 0, %s138
      %s153 = sphi 0, %s139
      %s159 = sphi 0, %s161
      %s162 = sphi 0, %s159
      %s163 = sphi 0, %s162
      %s179 = sphi 0, %s163
    $region4: #{tpu_custom_call.1} parent=1 // loop_header_branch
      %21 = sbr.rel (%p19) target = $region8
    $region5: #{tpu_custom_call.1} parent=1 // loop_body
      %s23 = ssub.s32 %s18, 1
      %s24 = ssub.s32 %s18, 2
      %s25 = sadd.s32 %s18, 1
      %s26 = ssub.s32 %s18, %s25
      %p27 = scmp.eq.s32.totalorder %s26, 0
      %s29 = sadd.s32 %s28, 1
      %s30 = scalar_select %p27, %s28, %s29
      %p33 = pneg %p27
      %p34 = scmp.eq.s32.totalorder %s18, 1
      %p35 = por %p33, %p34
      %p36 = scmp.ne.s32.totalorder %s28, %s31
      %p37 = scmp.eq.s32.totalorder %s18, 0
      %p38 = por %p36, %p37
      %p39 = scmp.ne.s32.totalorder %s28, %s31
      %p40 = scmp.eq.s32.totalorder %s23, 1
      %p41 = por %p39, %p40
      %p42 = scmp.ne.s32.totalorder %s31, %s32
      %p43 = scmp.eq.s32.totalorder %s23, 0
      %p44 = por %p42, %p43
      %p45 = scmp.ne.s32.totalorder %s31, %s32
      %p46 = scmp.eq.s32.totalorder %s24, 1
      %p47 = por %p45, %p46
      %p49 = scmp.ne.s32.totalorder %s32, %s48
      %p50 = scmp.eq.s32.totalorder %s24, 0
      %p51 = por %p49, %p50
      %s53 = sadd.s32 %s52, 1
      %p56 = scmp.eq.s32.totalorder %s18, 1
      %p57 = scmp.ne.s32.totalorder %s52, %s54
      %p58 = scmp.eq.s32.totalorder %s18, 0
      %p59 = por %p57, %p58
      %p60 = scmp.ne.s32.totalorder %s52, %s54
      %p61 = scmp.eq.s32.totalorder %s23, 1
      %p62 = por %p60, %p61
      %p63 = scmp.ne.s32.totalorder %s54, %s55
      %p64 = scmp.eq.s32.totalorder %s23, 0
      %p65 = por %p63, %p64
      %p66 = scmp.ne.s32.totalorder %s54, %s55
      %p67 = scmp.eq.s32.totalorder %s24, 1
      %p68 = por %p66, %p67
      %p70 = scmp.ne.s32.totalorder %s55, %s69
      %p71 = scmp.eq.s32.totalorder %s24, 0
      %p72 = por %p70, %p71
      %s74 = sadd.s32 %s73, 1
      %p77 = scmp.eq.s32.totalorder %s18, 1
      %p78 = scmp.ne.s32.totalorder %s73, %s75
      %p79 = scmp.eq.s32.totalorder %s18, 0
      %p80 = por %p78, %p79
      %p81 = scmp.ne.s32.totalorder %s73, %s75
      %p82 = scmp.eq.s32.totalorder %s23, 1
      %p83 = por %p81, %p82
      %p84 = scmp.ne.s32.totalorder %s75, %s76
      %p85 = scmp.eq.s32.totalorder %s23, 0
      %p86 = por %p84, %p85
      %p87 = scmp.ne.s32.totalorder %s75, %s76
      %p88 = scmp.eq.s32.totalorder %s24, 1
      %p89 = por %p87, %p88
      %p91 = scmp.ne.s32.totalorder %s76, %s90
      %p92 = scmp.eq.s32.totalorder %s24, 0
      %p93 = por %p91, %p92
      %s95 = sadd.s32 %s94, 1
      %p98 = scmp.eq.s32.totalorder %s18, 1
      %p99 = scmp.ne.s32.totalorder %s94, %s96
      %p100 = scmp.eq.s32.totalorder %s18, 0
      %p101 = por %p99, %p100
      %p102 = scmp.ne.s32.totalorder %s94, %s96
      %p103 = scmp.eq.s32.totalorder %s23, 1
      %p104 = por %p102, %p103
      %p105 = scmp.ne.s32.totalorder %s96, %s97
      %p106 = scmp.eq.s32.totalorder %s23, 0
      %p107 = por %p105, %p106
      %p108 = scmp.ne.s32.totalorder %s96, %s97
      %p109 = scmp.eq.s32.totalorder %s24, 1
      %p110 = por %p108, %p109
      %p112 = scmp.ne.s32.totalorder %s97, %s111
      %p113 = scmp.eq.s32.totalorder %s24, 0
      %p114 = por %p112, %p113
      %s116 = sadd.s32 %s115, 1
      %p119 = scmp.eq.s32.totalorder %s18, 1
      %p120 = scmp.ne.s32.totalorder %s115, %s117
      %p121 = scmp.eq.s32.totalorder %s18, 0
      %p122 = por %p120, %p121
      %p123 = scmp.ne.s32.totalorder %s115, %s117
      %p124 = scmp.eq.s32.totalorder %s23, 1
      %p125 = por %p123, %p124
      %p126 = scmp.ne.s32.totalorder %s117, %s118
      %p127 = scmp.eq.s32.totalorder %s23, 0
      %p128 = por %p126, %p127
      %p129 = scmp.ne.s32.totalorder %s117, %s118
      %p130 = scmp.eq.s32.totalorder %s24, 1
      %p131 = por %p129, %p130
      %p133 = scmp.ne.s32.totalorder %s118, %s132
      %p134 = scmp.eq.s32.totalorder %s24, 0
      %p135 = por %p133, %p134
      %s137 = sadd.s32 %s136, 1
      %p140 = scmp.eq.s32.totalorder %s18, 1
      %p141 = scmp.ne.s32.totalorder %s136, %s138
      %p142 = scmp.eq.s32.totalorder %s18, 0
      %p143 = por %p141, %p142
      %p144 = scmp.ne.s32.totalorder %s136, %s138
      %p145 = scmp.eq.s32.totalorder %s23, 1
      %p146 = por %p144, %p145
      %p147 = scmp.ne.s32.totalorder %s138, %s139
      %p148 = scmp.eq.s32.totalorder %s23, 0
      %p149 = por %p147, %p148
      %p150 = scmp.ne.s32.totalorder %s138, %s139
      %p151 = scmp.eq.s32.totalorder %s24, 1
      %p152 = por %p150, %p151
      %p154 = scmp.ne.s32.totalorder %s139, %s153
      %p155 = scmp.eq.s32.totalorder %s24, 0
      %p156 = por %p154, %p155
      %s157 = ssub.s32 %s18, %s25
      %p158 = scmp.eq.s32.totalorder %s157, 0
      %s160 = sadd.s32 %s159, 1
      %s161 = scalar_select %p158, %s159, %s160
      %p164 = pneg %p158
      %p165 = scmp.eq.s32.totalorder %s18, 1
      %p166 = por %p164, %p165
      %p167 = scmp.ne.s32.totalorder %s159, %s162
      %p168 = scmp.eq.s32.totalorder %s18, 0
      %p169 = por %p167, %p168
      %p170 = scmp.ne.s32.totalorder %s159, %s162
      %p171 = scmp.eq.s32.totalorder %s23, 1
      %p172 = por %p170, %p171
      %p173 = scmp.ne.s32.totalorder %s162, %s163
      %p174 = scmp.eq.s32.totalorder %s23, 0
      %p175 = por %p173, %p174
      %p176 = scmp.ne.s32.totalorder %s162, %s163
      %p177 = scmp.eq.s32.totalorder %s24, 1
      %p178 = por %p176, %p177
      %p180 = scmp.ne.s32.totalorder %s163, %s179
      %p181 = scmp.eq.s32.totalorder %s24, 0
      %p182 = por %p180, %p181
      %p183 = scmp.le.s32.totalorder 1, %s18
      %p184 = scmp.lt.s32.totalorder %s18, 3
      %p185 = pnand %p183, %p184
      %p186 = pneg %p185
      // Predicated region
      $region9: #{tpu_custom_call.1} parent=5 // pred_check
        _
      $region10: #{tpu_custom_call.1} parent=5 // pred_check_branch
        %188 = sbr.rel (%p185) target = $region12
      $region11: #{tpu_custom_call.1} parent=5 // pred_region
        %s189 = ssub.s32 %s18, 1
        // Predicated region
        $region13: #{tpu_custom_call.1} parent=11 // pred_check
          %p190 = pneg %p65
        $region14: #{tpu_custom_call.1} parent=11 // pred_check_branch
          %192 = sbr.rel (%p190) target = $region16
        $region15: #{tpu_custom_call.1} parent=11 // pred_region
          _
        $region16: #{tpu_custom_call.1} parent=11 // pred_fallthru
          _
        // Predicated region
        $region17: #{tpu_custom_call.1} parent=11 // pred_check
          %p193 = pneg %p86
        $region18: #{tpu_custom_call.1} parent=11 // pred_check_branch
          %195 = sbr.rel (%p193) target = $region20
        $region19: #{tpu_custom_call.1} parent=11 // pred_region
          _
        $region20: #{tpu_custom_call.1} parent=11 // pred_fallthru
          _
        // Predicated region
        $region21: #{tpu_custom_call.1} parent=11 // pred_check
          %p196 = pneg %p107
        $region22: #{tpu_custom_call.1} parent=11 // pred_check_branch
          %198 = sbr.rel (%p196) target = $region24
        $region23: #{tpu_custom_call.1} parent=11 // pred_region
          _
        $region24: #{tpu_custom_call.1} parent=11 // pred_fallthru
          _
        // Predicated region
        $region25: #{tpu_custom_call.1} parent=11 // pred_check
          %p199 = pneg %p128
        $region26: #{tpu_custom_call.1} parent=11 // pred_check_branch
          %201 = sbr.rel (%p199) target = $region28
        $region27: #{tpu_custom_call.1} parent=11 // pred_region
          _
        $region28: #{tpu_custom_call.1} parent=11 // pred_fallthru
          _
        // Predicated region
        $region29: #{tpu_custom_call.1} parent=11 // pred_check
          %p202 = pneg %p149
        $region30: #{tpu_custom_call.1} parent=11 // pred_check_branch
          %204 = sbr.rel (%p202) target = $region32
        $region31: #{tpu_custom_call.1} parent=11 // pred_region
          _
        $region32: #{tpu_custom_call.1} parent=11 // pred_fallthru
          _
      $region12: #{tpu_custom_call.1} parent=5 // pred_fallthru
        _
      %p205 = scmp.lt.s32.totalorder %s18, 2
      // Predicated region
      $region33: #{tpu_custom_call.1} parent=5 // pred_check
        %p206 = pneg %p205
      $region34: #{tpu_custom_call.1} parent=5 // pred_check_branch
        %208 = sbr.rel (%p206) target = $region36
      $region35: #{tpu_custom_call.1} parent=5 // pred_region
        // Predicated region
        $region37: #{tpu_custom_call.1} parent=35 // pred_check
          %p209 = pneg %p38
        $region38: #{tpu_custom_call.1} parent=35 // pred_check_branch
          %211 = sbr.rel (%p209) target = $region40
        $region39: #{tpu_custom_call.1} parent=35 // pred_region
          %s212 = sand.u32 %s28, 1
          %s213 = scalar_lea.sflag [#allocation3], %s212
          %s214 = sand.u32 %s28, 1
          %s215 = smul.addr %s214, 48
          %s216 = scalar_lea.vmem [#allocation2], %s215
          %s217 = smul.u32 24, %s18
          %219 = vsyncadd %s213, 0
          %s220 = smul.addr %s217, 2
          %s221 = scalar_lea.hbm %s0, %s220
          %s223 = sshll.u32 %s221, 4
          %s224 = int_to_ptr.hbm [resolvable:$true] %s223
          %s225 = sshll.u32 %s216, 4
          %s226 = int_to_ptr.vmem [resolvable:$true] %s225
          %228 = dma.hbm_to_vmem [thread:$0]  %s224, 768, %s226, %s213
        $region40: #{tpu_custom_call.1} parent=35 // pred_fallthru
          _
      $region36: #{tpu_custom_call.1} parent=5 // pred_fallthru
        _
      %p229 = scmp.le.s32.totalorder 1, %s18
      %p230 = scmp.lt.s32.totalorder %s18, 3
      %p231 = pnand %p229, %p230
      %p232 = pneg %p231
      // Predicated region
      $region41: #{tpu_custom_call.1} parent=5 // pred_check
        _
      $region42: #{tpu_custom_call.1} parent=5 // pred_check_branch
        %234 = sbr.rel (%p231) target = $region44
      $region43: #{tpu_custom_call.1} parent=5 // pred_region
        %s235 = ssub.s32 %s18, 1
        %s236 = sand.u32 %s31, 1
        %s237 = scalar_lea.sflag [#allocation3], %s236
        %s238 = sand.u32 %s31, 1
        %s239 = smul.addr %s238, 48
        %s240 = scalar_lea.vmem [#allocation2], %s239
        // Predicated region
        $region45: #{tpu_custom_call.1} parent=43 // pred_check
          %p241 = pneg %p44
        $region46: #{tpu_custom_call.1} parent=43 // pred_check_branch
          %243 = sbr.rel (%p241) target = $region48
        $region47: #{tpu_custom_call.1} parent=43 // pred_region
          %245 = dma.done %s237, 768
        $region48: #{tpu_custom_call.1} parent=43 // pred_fallthru
          _
        %s246 = sand.u32 %s31, 1
        %s247 = scalar_lea.sflag [#allocation3], %s246
        %s248 = sand.u32 %s31, 1
        %s249 = smul.addr %s248, 48
        %s250 = scalar_lea.vmem [#allocation2], %s249
        %p251 = pneg %p44
        %p252 = pneg %p41
        %p253 = pneg %p65
        %p254 = pneg %p62
        %p255 = pneg %p86
        %p256 = pneg %p83
        %p257 = pneg %p107
        %p258 = pneg %p104
        %p259 = pneg %p128
        %p260 = pneg %p125
        %p261 = pneg %p149
        %p262 = pneg %p146
        %p263 = pneg %p175
        %p264 = pneg %p172
        %s265 = sand.u32 %s162, 1
        %s266 = scalar_lea.sflag [#allocation4], %s265
        %s267 = sand.u32 %s162, 1
        %s268 = smul.addr %s267, 96
        %s269 = scalar_lea.vmem [#allocation5], %s268
        %s270 = smul.u32 24, %s23
        %s271 = smul.u32 24, %s23
        %v273 = vld [vmem:[%s240] sm:$0xff]
        %v274 = vld [vmem:[%s240 + $0x8] sm:$0xff]
        %v275 = vld [vmem:[%s240 + $0x10] sm:$0xff]
        %v276 = vld [vmem:[%s240 + $0x18] sm:$0xff]
        %v277 = vld [vmem:[%s240 + $0x20] sm:$0xff]
        %v278 = vld [vmem:[%s240 + $0x28] sm:$0xff]
        %v279 = vld [vmem:[%s1] sm:$0x3]
        %v280 = vld [vmem:[%s1 + $0x2] sm:$0x3]
        %v281 = vld [vmem:[%s1 + $0x4] sm:$0x3]
        %v282 = vld [vmem:[%s1 + $0x6] sm:$0x3]
        %v283 = vld [vmem:[%s1 + $0x8] sm:$0x3]
        %v284 = vld [vmem:[%s1 + $0xa] sm:$0x3]
        %v285 = vld [vmem:[%s1 + $0xc] sm:$0x3]
        %v286 = vld [vmem:[%s1 + $0xe] sm:$0x3]
        %v287 = vld [vmem:[%s1 + $0x10] sm:$0x3]
        %v288 = vld [vmem:[%s2] sm:$0xf]
        %v289 = vld [vmem:[%s3] sm:$0xf]
        %v290 = vld [vmem:[%s3 + $0x4] sm:$0xf]
        %v291 = vld [vmem:[%s3 + $0x8] sm:$0xf]
        %v292 = vld [vmem:[%s3 + $0xc] sm:$0xf]
        %v293 = vld [vmem:[%s3 + $0x10] sm:$0xf]
        %v294 = vld [vmem:[%s3 + $0x14] sm:$0xf]
        %v295 = vld [vmem:[%s3 + $0x18] sm:$0xf]
        %v296 = vld [vmem:[%s3 + $0x1c] sm:$0xf]
        %v297 = vld [vmem:[%s3 + $0x20] sm:$0xf]
        %v298 = vld [vmem:[%s4] sm:$0xf]
        %v299 = vld [vmem:[%s5] sm:$0xff]
        %v300 = vld [vmem:[%s5 + $0x8] sm:$0xff]
        %v301 = vld [vmem:[%s5 + $0x10] sm:$0xff]
        %303 = vst [vmem:[#allocation1] ss:$4 sm:$0xff] %v273
        %s305 = scalar_lea.vmem [#allocation1], 32
        %306 = vst [vmem:[%s305] ss:$4 sm:$0xff] %v274
        %v307 = vld.sshfl [vmem:[#allocation1] sm:$0xff pattern:$0x73625140]
        %v308 = vld.sshfl [vmem:[#allocation1 + $0x8] sm:$0xff pattern:$0x73625140]
        %v309 = vld.sshfl [vmem:[#allocation1 + $0x10] sm:$0xff pattern:$0x73625140]
        %v310 = vld.sshfl [vmem:[#allocation1 + $0x18] sm:$0xff pattern:$0x73625140]
        %v311 = vld.sshfl [vmem:[#allocation1 + $0x20] sm:$0xff pattern:$0x73625140]
        %v312 = vld.sshfl [vmem:[#allocation1 + $0x28] sm:$0xff pattern:$0x73625140]
        %v313 = vld.sshfl [vmem:[#allocation1 + $0x30] sm:$0xff pattern:$0x73625140]
        %v314 = vld.sshfl [vmem:[#allocation1 + $0x38] sm:$0xff pattern:$0x73625140]
        %316 = vst [vmem:[#allocation1] ss:$4 sm:$0xff] %v275
        %318 = vst [vmem:[%s305] ss:$4 sm:$0xff] %v276
        %v319 = vld.sshfl [vmem:[#allocation1] sm:$0xff pattern:$0x73625140]
        %v320 = vld.sshfl [vmem:[#allocation1 + $0x8] sm:$0xff pattern:$0x73625140]
        %v321 = vld.sshfl [vmem:[#allocation1 + $0x10] sm:$0xff pattern:$0x73625140]
        %v322 = vld.sshfl [vmem:[#allocation1 + $0x18] sm:$0xff pattern:$0x73625140]
        %v323 = vld.sshfl [vmem:[#allocation1 + $0x20] sm:$0xff pattern:$0x73625140]
        %v324 = vld.sshfl [vmem:[#allocation1 + $0x28] sm:$0xff pattern:$0x73625140]
        %v325 = vld.sshfl [vmem:[#allocation1 + $0x30] sm:$0xff pattern:$0x73625140]
        %v326 = vld.sshfl [vmem:[#allocation1 + $0x38] sm:$0xff pattern:$0x73625140]
        %328 = vst [vmem:[#allocation1] ss:$4 sm:$0xff] %v277
        %330 = vst [vmem:[%s305] ss:$4 sm:$0xff] %v278
        %v331 = vld.sshfl [vmem:[#allocation1] sm:$0xff pattern:$0x73625140]
        %v332 = vld.sshfl [vmem:[#allocation1 + $0x8] sm:$0xff pattern:$0x73625140]
        %v333 = vld.sshfl [vmem:[#allocation1 + $0x10] sm:$0xff pattern:$0x73625140]
        %v334 = vld.sshfl [vmem:[#allocation1 + $0x18] sm:$0xff pattern:$0x73625140]
        %v335 = vld.sshfl [vmem:[#allocation1 + $0x20] sm:$0xff pattern:$0x73625140]
        %v336 = vld.sshfl [vmem:[#allocation1 + $0x28] sm:$0xff pattern:$0x73625140]
        %v337 = vld.sshfl [vmem:[#allocation1 + $0x30] sm:$0xff pattern:$0x73625140]
        %v338 = vld.sshfl [vmem:[#allocation1 + $0x38] sm:$0xff pattern:$0x73625140]
        %vm339 = vcmask 31744
        %v341 = vsel %vm339, %v279, 0
        %vm343 = vcmask 1041408
        %v344 = vsel %vm343, %v307, 0
        %v346 = vsel %vm343, %v308, 0
        %v348 = vsel %vm343, %v309, 0
        %v350 = vsel %vm343, %v310, 0
        %v352 = vsel %vm343, %v311, 0
        %v354 = vsel %vm343, %v312, 0
        %v356 = vsel %vm343, %v313, 0
        %v358 = vsel %vm343, %v314, 0
        %v360 = vsel %vm343, %v319, 0
        %v362 = vsel %vm343, %v320, 0
        %v364 = vsel %vm343, %v321, 0
        %v366 = vsel %vm343, %v322, 0
        %v368 = vsel %vm343, %v323, 0
        %v370 = vsel %vm343, %v324, 0
        %v372 = vsel %vm343, %v325, 0
        %v374 = vsel %vm343, %v326, 0
        %v376 = vsel %vm343, %v331, 0
        %v378 = vsel %vm343, %v332, 0
        %v380 = vsel %vm343, %v333, 0
        %v382 = vsel %vm343, %v334, 0
        %v384 = vsel %vm343, %v335, 0
        %v386 = vsel %vm343, %v336, 0
        %v388 = vsel %vm343, %v337, 0
        %v390 = vsel %vm343, %v338, 0
        %392 = vmatpush.bf16.msra.mxu0 0
        %393 = vmatpush.bf16.msra.mxu0 0
        %394 = vmatpush.bf16.msra.mxu0 0
        %395 = vmatpush.bf16.msra.mxu0 0
        %396 = vmatpush.bf16.msra.mxu0 0
        %397 = vmatpush.bf16.msra.mxu0 0
        %398 = vmatpush.bf16.msra.mxu0 0
        %399 = vmatpush.bf16.msra.mxu0 %v344
        %400 = vmatmul.bf16.gmra.mxu0 %v341
        %v401 = vpop.f32.mrf.mxu0
        %v402 = vadd.f32 0.0, %v401
        %v403 = vpop.f32.mrf.mxu0
        %404 = vdwg.mxu0
        %405 = vmatpush.bf16.msra.mxu0 0
        %406 = vmatpush.bf16.msra.mxu0 0
        %407 = vmatpush.bf16.msra.mxu0 0
        %408 = vmatpush.bf16.msra.mxu0 0
        %409 = vmatpush.bf16.msra.mxu0 0
        %410 = vmatpush.bf16.msra.mxu0 0
        %411 = vmatpush.bf16.msra.mxu0 0
        %412 = vmatpush.bf16.msra.mxu0 %v346
        %413 = vmatmul.bf16.gmra.mxu0 %v341
        %v414 = vpop.f32.mrf.mxu0
        %v415 = vadd.f32 0.0, %v414
        %v416 = vpop.f32.mrf.mxu0
        %417 = vdwg.mxu0
        %418 = vmatpush.bf16.msra.mxu0 0
        %419 = vmatpush.bf16.msra.mxu0 0
        %420 = vmatpush.bf16.msra.mxu0 0
        %421 = vmatpush.bf16.msra.mxu0 0
        %422 = vmatpush.bf16.msra.mxu0 0
        %423 = vmatpush.bf16.msra.mxu0 0
        %424 = vmatpush.bf16.msra.mxu0 0
        %425 = vmatpush.bf16.msra.mxu0 %v348
        %426 = vmatmul.bf16.gmra.mxu0 %v341
        %v427 = vpop.f32.mrf.mxu0
        %v428 = vadd.f32 0.0, %v427
        %v429 = vpop.f32.mrf.mxu0
        %430 = vdwg.mxu0
        %431 = vmatpush.bf16.msra.mxu0 0
        %432 = vmatpush.bf16.msra.mxu0 0
        %433 = vmatpush.bf16.msra.mxu0 0
        %434 = vmatpush.bf16.msra.mxu0 0
        %435 = vmatpush.bf16.msra.mxu0 0
        %436 = vmatpush.bf16.msra.mxu0 0
        %437 = vmatpush.bf16.msra.mxu0 0
        %438 = vmatpush.bf16.msra.mxu0 %v350
        %439 = vmatmul.bf16.gmra.mxu0 %v341
        %v440 = vpop.f32.mrf.mxu0
        %v441 = vadd.f32 0.0, %v440
        %v442 = vpop.f32.mrf.mxu0
        %443 = vdwg.mxu0
        %444 = vmatpush.bf16.msra.mxu0 0
        %445 = vmatpush.bf16.msra.mxu0 0
        %446 = vmatpush.bf16.msra.mxu0 0
        %447 = vmatpush.bf16.msra.mxu0 0
        %448 = vmatpush.bf16.msra.mxu0 0
        %449 = vmatpush.bf16.msra.mxu0 0
        %450 = vmatpush.bf16.msra.mxu0 0
        %451 = vmatpush.bf16.msra.mxu0 %v352
        %452 = vmatmul.bf16.gmra.mxu0 %v341
        %v453 = vpop.f32.mrf.mxu0
        %v454 = vadd.f32 0.0, %v453
        %v455 = vpop.f32.mrf.mxu0
        %456 = vdwg.mxu0
        %457 = vmatpush.bf16.msra.mxu0 0
        %458 = vmatpush.bf16.msra.mxu0 0
        %459 = vmatpush.bf16.msra.mxu0 0
        %460 = vmatpush.bf16.msra.mxu0 0
        %461 = vmatpush.bf16.msra.mxu0 0
        %462 = vmatpush.bf16.msra.mxu0 0
        %463 = vmatpush.bf16.msra.mxu0 0
        %464 = vmatpush.bf16.msra.mxu0 %v354
        %465 = vmatmul.bf16.gmra.mxu0 %v341
        %v466 = vpop.f32.mrf.mxu0
        %v467 = vadd.f32 0.0, %v466
        %v468 = vpop.f32.mrf.mxu0
        %469 = vdwg.mxu0
        %470 = vmatpush.bf16.msra.mxu0 0
        %471 = vmatpush.bf16.msra.mxu0 0
        %472 = vmatpush.bf16.msra.mxu0 0
        %473 = vmatpush.bf16.msra.mxu0 0
        %474 = vmatpush.bf16.msra.mxu0 0
        %475 = vmatpush.bf16.msra.mxu0 0
        %476 = vmatpush.bf16.msra.mxu0 0
        %477 = vmatpush.bf16.msra.mxu0 %v356
        %478 = vmatmul.bf16.gmra.mxu0 %v341
        %v479 = vpop.f32.mrf.mxu0
        %v480 = vadd.f32 0.0, %v479
        %v481 = vpop.f32.mrf.mxu0
        %482 = vdwg.mxu0
        %483 = vmatpush.bf16.msra.mxu0 0
        %484 = vmatpush.bf16.msra.mxu0 0
        %485 = vmatpush.bf16.msra.mxu0 0
        %486 = vmatpush.bf16.msra.mxu0 0
        %487 = vmatpush.bf16.msra.mxu0 0
        %488 = vmatpush.bf16.msra.mxu0 0
        %489 = vmatpush.bf16.msra.mxu0 0
        %490 = vmatpush.bf16.msra.mxu0 %v358
        %491 = vmatmul.bf16.gmra.mxu0 %v341
        %v492 = vpop.f32.mrf.mxu0
        %v493 = vadd.f32 0.0, %v492
        %v494 = vpop.f32.mrf.mxu0
        %495 = vdwg.mxu0
        %496 = vmatpush.bf16.msra.mxu0 0
        %497 = vmatpush.bf16.msra.mxu0 0
        %498 = vmatpush.bf16.msra.mxu0 0
        %499 = vmatpush.bf16.msra.mxu0 0
        %500 = vmatpush.bf16.msra.mxu0 0
        %501 = vmatpush.bf16.msra.mxu0 0
        %502 = vmatpush.bf16.msra.mxu0 0
        %503 = vmatpush.bf16.msra.mxu0 %v360
        %504 = vmatmul.bf16.gmra.mxu0 %v341
        %v505 = vpop.f32.mrf.mxu0
        %v506 = vadd.f32 0.0, %v505
        %v507 = vpop.f32.mrf.mxu0
        %508 = vdwg.mxu0
        %509 = vmatpush.bf16.msra.mxu0 0
        %510 = vmatpush.bf16.msra.mxu0 0
        %511 = vmatpush.bf16.msra.mxu0 0
        %512 = vmatpush.bf16.msra.mxu0 0
        %513 = vmatpush.bf16.msra.mxu0 0
        %514 = vmatpush.bf16.msra.mxu0 0
        %515 = vmatpush.bf16.msra.mxu0 0
        %516 = vmatpush.bf16.msra.mxu0 %v362
        %517 = vmatmul.bf16.gmra.mxu0 %v341
        %v518 = vpop.f32.mrf.mxu0
        %v519 = vadd.f32 0.0, %v518
        %v520 = vpop.f32.mrf.mxu0
        %521 = vdwg.mxu0
        %522 = vmatpush.bf16.msra.mxu0 0
        %523 = vmatpush.bf16.msra.mxu0 0
        %524 = vmatpush.bf16.msra.mxu0 0
        %525 = vmatpush.bf16.msra.mxu0 0
        %526 = vmatpush.bf16.msra.mxu0 0
        %527 = vmatpush.bf16.msra.mxu0 0
        %528 = vmatpush.bf16.msra.mxu0 0
        %529 = vmatpush.bf16.msra.mxu0 %v364
        %530 = vmatmul.bf16.gmra.mxu0 %v341
        %v531 = vpop.f32.mrf.mxu0
        %v532 = vadd.f32 0.0, %v531
        %v533 = vpop.f32.mrf.mxu0
        %534 = vdwg.mxu0
        %535 = vmatpush.bf16.msra.mxu0 0
        %536 = vmatpush.bf16.msra.mxu0 0
        %537 = vmatpush.bf16.msra.mxu0 0
        %538 = vmatpush.bf16.msra.mxu0 0
        %539 = vmatpush.bf16.msra.mxu0 0
        %540 = vmatpush.bf16.msra.mxu0 0
        %541 = vmatpush.bf16.msra.mxu0 0
        %542 = vmatpush.bf16.msra.mxu0 %v366
        %543 = vmatmul.bf16.gmra.mxu0 %v341
        %v544 = vpop.f32.mrf.mxu0
        %v545 = vadd.f32 0.0, %v544
        %v546 = vpop.f32.mrf.mxu0
        %547 = vdwg.mxu0
        %548 = vmatpush.bf16.msra.mxu0 0
        %549 = vmatpush.bf16.msra.mxu0 0
        %550 = vmatpush.bf16.msra.mxu0 0
        %551 = vmatpush.bf16.msra.mxu0 0
        %552 = vmatpush.bf16.msra.mxu0 0
        %553 = vmatpush.bf16.msra.mxu0 0
        %554 = vmatpush.bf16.msra.mxu0 0
        %555 = vmatpush.bf16.msra.mxu0 %v368
        %556 = vmatmul.bf16.gmra.mxu0 %v341
        %v557 = vpop.f32.mrf.mxu0
        %v558 = vadd.f32 0.0, %v557
        %v559 = vpop.f32.mrf.mxu0
        %560 = vdwg.mxu0
        %561 = vmatpush.bf16.msra.mxu0 0
        %562 = vmatpush.bf16.msra.mxu0 0
        %563 = vmatpush.bf16.msra.mxu0 0
        %564 = vmatpush.bf16.msra.mxu0 0
        %565 = vmatpush.bf16.msra.mxu0 0
        %566 = vmatpush.bf16.msra.mxu0 0
        %567 = vmatpush.bf16.msra.mxu0 0
        %568 = vmatpush.bf16.msra.mxu0 %v370
        %569 = vmatmul.bf16.gmra.mxu0 %v341
        %v570 = vpop.f32.mrf.mxu0
        %v571 = vadd.f32 0.0, %v570
        %v572 = vpop.f32.mrf.mxu0
        %573 = vdwg.mxu0
        %574 = vmatpush.bf16.msra.mxu0 0
        %575 = vmatpush.bf16.msra.mxu0 0
        %576 = vmatpush.bf16.msra.mxu0 0
        %577 = vmatpush.bf16.msra.mxu0 0
        %578 = vmatpush.bf16.msra.mxu0 0
        %579 = vmatpush.bf16.msra.mxu0 0
        %580 = vmatpush.bf16.msra.mxu0 0
        %581 = vmatpush.bf16.msra.mxu0 %v372
        %582 = vmatmul.bf16.gmra.mxu0 %v341
        %v583 = vpop.f32.mrf.mxu0
        %v584 = vadd.f32 0.0, %v583
        %v585 = vpop.f32.mrf.mxu0
        %586 = vdwg.mxu0
        %587 = vmatpush.bf16.msra.mxu0 0
        %588 = vmatpush.bf16.msra.mxu0 0
        %589 = vmatpush.bf16.msra.mxu0 0
        %590 = vmatpush.bf16.msra.mxu0 0
        %591 = vmatpush.bf16.msra.mxu0 0
        %592 = vmatpush.bf16.msra.mxu0 0
        %593 = vmatpush.bf16.msra.mxu0 0
        %594 = vmatpush.bf16.msra.mxu0 %v374
        %595 = vmatmul.bf16.gmra.mxu0 %v341
        %v596 = vpop.f32.mrf.mxu0
        %v597 = vadd.f32 0.0, %v596
        %v598 = vpop.f32.mrf.mxu0
        %599 = vdwg.mxu0
        %600 = vmatpush.bf16.msra.mxu0 0
        %601 = vmatpush.bf16.msra.mxu0 0
        %602 = vmatpush.bf16.msra.mxu0 0
        %603 = vmatpush.bf16.msra.mxu0 0
        %604 = vmatpush.bf16.msra.mxu0 0
        %605 = vmatpush.bf16.msra.mxu0 0
        %606 = vmatpush.bf16.msra.mxu0 0
        %607 = vmatpush.bf16.msra.mxu0 %v376
        %608 = vmatmul.bf16.gmra.mxu0 %v341
        %v609 = vpop.f32.mrf.mxu0
        %v610 = vadd.f32 0.0, %v609
        %v611 = vpop.f32.mrf.mxu0
        %612 = vdwg.mxu0
        %613 = vmatpush.bf16.msra.mxu0 0
        %614 = vmatpush.bf16.msra.mxu0 0
        %615 = vmatpush.bf16.msra.mxu0 0
        %616 = vmatpush.bf16.msra.mxu0 0
        %617 = vmatpush.bf16.msra.mxu0 0
        %618 = vmatpush.bf16.msra.mxu0 0
        %619 = vmatpush.bf16.msra.mxu0 0
        %620 = vmatpush.bf16.msra.mxu0 %v378
        %621 = vmatmul.bf16.gmra.mxu0 %v341
        %v622 = vpop.f32.mrf.mxu0
        %v623 = vadd.f32 0.0, %v622
        %v624 = vpop.f32.mrf.mxu0
        %625 = vdwg.mxu0
        %626 = vmatpush.bf16.msra.mxu0 0
        %627 = vmatpush.bf16.msra.mxu0 0
        %628 = vmatpush.bf16.msra.mxu0 0
        %629 = vmatpush.bf16.msra.mxu0 0
        %630 = vmatpush.bf16.msra.mxu0 0
        %631 = vmatpush.bf16.msra.mxu0 0
        %632 = vmatpush.bf16.msra.mxu0 0
        %633 = vmatpush.bf16.msra.mxu0 %v380
        %634 = vmatmul.bf16.gmra.mxu0 %v341
        %v635 = vpop.f32.mrf.mxu0
        %v636 = vadd.f32 0.0, %v635
        %v637 = vpop.f32.mrf.mxu0
        %638 = vdwg.mxu0
        %639 = vmatpush.bf16.msra.mxu0 0
        %640 = vmatpush.bf16.msra.mxu0 0
        %641 = vmatpush.bf16.msra.mxu0 0
        %642 = vmatpush.bf16.msra.mxu0 0
        %643 = vmatpush.bf16.msra.mxu0 0
        %644 = vmatpush.bf16.msra.mxu0 0
        %645 = vmatpush.bf16.msra.mxu0 0
        %646 = vmatpush.bf16.msra.mxu0 %v382
        %647 = vmatmul.bf16.gmra.mxu0 %v341
        %v648 = vpop.f32.mrf.mxu0
        %v649 = vadd.f32 0.0, %v648
        %v650 = vpop.f32.mrf.mxu0
        %651 = vdwg.mxu0
        %652 = vmatpush.bf16.msra.mxu0 0
        %653 = vmatpush.bf16.msra.mxu0 0
        %654 = vmatpush.bf16.msra.mxu0 0
        %655 = vmatpush.bf16.msra.mxu0 0
        %656 = vmatpush.bf16.msra.mxu0 0
        %657 = vmatpush.bf16.msra.mxu0 0
        %658 = vmatpush.bf16.msra.mxu0 0
        %659 = vmatpush.bf16.msra.mxu0 %v384
        %660 = vmatmul.bf16.gmra.mxu0 %v341
        %v661 = vpop.f32.mrf.mxu0
        %v662 = vadd.f32 0.0, %v661
        %v663 = vpop.f32.mrf.mxu0
        %664 = vdwg.mxu0
        %665 = vmatpush.bf16.msra.mxu0 0
        %666 = vmatpush.bf16.msra.mxu0 0
        %667 = vmatpush.bf16.msra.mxu0 0
        %668 = vmatpush.bf16.msra.mxu0 0
        %669 = vmatpush.bf16.msra.mxu0 0
        %670 = vmatpush.bf16.msra.mxu0 0
        %671 = vmatpush.bf16.msra.mxu0 0
        %672 = vmatpush.bf16.msra.mxu0 %v386
        %673 = vmatmul.bf16.gmra.mxu0 %v341
        %v674 = vpop.f32.mrf.mxu0
        %v675 = vadd.f32 0.0, %v674
        %v676 = vpop.f32.mrf.mxu0
        %677 = vdwg.mxu0
        %678 = vmatpush.bf16.msra.mxu0 0
        %679 = vmatpush.bf16.msra.mxu0 0
        %680 = vmatpush.bf16.msra.mxu0 0
        %681 = vmatpush.bf16.msra.mxu0 0
        %682 = vmatpush.bf16.msra.mxu0 0
        %683 = vmatpush.bf16.msra.mxu0 0
        %684 = vmatpush.bf16.msra.mxu0 0
        %685 = vmatpush.bf16.msra.mxu0 %v388
        %686 = vmatmul.bf16.gmra.mxu0 %v341
        %v687 = vpop.f32.mrf.mxu0
        %v688 = vadd.f32 0.0, %v687
        %v689 = vpop.f32.mrf.mxu0
        %690 = vdwg.mxu0
        %691 = vmatpush.bf16.msra.mxu0 0
        %692 = vmatpush.bf16.msra.mxu0 0
        %693 = vmatpush.bf16.msra.mxu0 0
        %694 = vmatpush.bf16.msra.mxu0 0
        %695 = vmatpush.bf16.msra.mxu0 0
        %696 = vmatpush.bf16.msra.mxu0 0
        %697 = vmatpush.bf16.msra.mxu0 0
        %698 = vmatpush.bf16.msra.mxu0 %v390
        %699 = vmatmul.bf16.gmra.mxu0 %v341
        %v700 = vpop.f32.mrf.mxu0
        %v701 = vadd.f32 0.0, %v700
        %v702 = vpop.f32.mrf.mxu0
        %703 = vdwg.mxu0
        %704 = vrot.lane.b32.xlu0 %v402, 19
        %v705 = vpop.permute.xlu0 %704
        %706 = vrot.lane.b32.xlu0 %v415, 19
        %v707 = vpop.permute.xlu0 %706
        %708 = vrot.lane.b32.xlu0 %v428, 19
        %v709 = vpop.permute.xlu0 %708
        %710 = vrot.lane.b32.xlu0 %v441, 19
        %v711 = vpop.permute.xlu0 %710
        %712 = vrot.lane.b32.xlu0 %v454, 19
        %v713 = vpop.permute.xlu0 %712
        %714 = vrot.lane.b32.xlu0 %v467, 19
        %v715 = vpop.permute.xlu0 %714
        %716 = vrot.lane.b32.xlu0 %v480, 19
        %v717 = vpop.permute.xlu0 %716
        %718 = vrot.lane.b32.xlu0 %v493, 19
        %v719 = vpop.permute.xlu0 %718
        %720 = vrot.lane.b32.xlu0 %v506, 19
        %v721 = vpop.permute.xlu0 %720
        %722 = vrot.lane.b32.xlu0 %v519, 19
        %v723 = vpop.permute.xlu0 %722
        %724 = vrot.lane.b32.xlu0 %v532, 19
        %v725 = vpop.permute.xlu0 %724
        %726 = vrot.lane.b32.xlu0 %v545, 19
        %v727 = vpop.permute.xlu0 %726
        %728 = vrot.lane.b32.xlu0 %v558, 19
        %v729 = vpop.permute.xlu0 %728
        %730 = vrot.lane.b32.xlu0 %v571, 19
        %v731 = vpop.permute.xlu0 %730
        %732 = vrot.lane.b32.xlu0 %v584, 19
        %v733 = vpop.permute.xlu0 %732
        %734 = vrot.lane.b32.xlu0 %v597, 19
        %v735 = vpop.permute.xlu0 %734
        %736 = vrot.lane.b32.xlu0 %v610, 19
        %v737 = vpop.permute.xlu0 %736
        %738 = vrot.lane.b32.xlu0 %v623, 19
        %v739 = vpop.permute.xlu0 %738
        %740 = vrot.lane.b32.xlu0 %v636, 19
        %v741 = vpop.permute.xlu0 %740
        %742 = vrot.lane.b32.xlu0 %v649, 19
        %v743 = vpop.permute.xlu0 %742
        %744 = vrot.lane.b32.xlu0 %v662, 19
        %v745 = vpop.permute.xlu0 %744
        %746 = vrot.lane.b32.xlu0 %v675, 19
        %v747 = vpop.permute.xlu0 %746
        %748 = vrot.lane.b32.xlu0 %v688, 19
        %v749 = vpop.permute.xlu0 %748
        %750 = vrot.lane.b32.xlu0 %v701, 19
        %v751 = vpop.permute.xlu0 %750
        %v752 = vlaneseq
        %v753 = vand.u32 %v752, 127
        %vm754 = vcmp.lt.s32.totalorder %v753, 19
        %v755 = vsel %vm754, %v749, %v751
        %v756 = vsel %vm754, %v747, %v749
        %v757 = vsel %vm754, %v745, %v747
        %v758 = vsel %vm754, %v743, %v745
        %v759 = vsel %vm754, %v741, %v743
        %v760 = vsel %vm754, %v739, %v741
        %v761 = vsel %vm754, %v737, %v739
        %v762 = vsel %vm754, %v735, %v737
        %v763 = vsel %vm754, %v733, %v735
        %v764 = vsel %vm754, %v731, %v733
        %v765 = vsel %vm754, %v729, %v731
        %v766 = vsel %vm754, %v727, %v729
        %v767 = vsel %vm754, %v725, %v727
        %v768 = vsel %vm754, %v723, %v725
        %v769 = vsel %vm754, %v721, %v723
        %v770 = vsel %vm754, %v719, %v721
        %v771 = vsel %vm754, %v717, %v719
        %v772 = vsel %vm754, %v715, %v717
        %v773 = vsel %vm754, %v713, %v715
        %v774 = vsel %vm754, %v711, %v713
        %v775 = vsel %vm754, %v709, %v711
        %v776 = vsel %vm754, %v707, %v709
        %v777 = vsel %vm754, %v705, %v707
        %v778 = vsel %vm754, %v751, %v705
        %v779 = vadd.f32 %v778, 0.0
        %v780 = vadd.f32 %v777, 0.0
        %v781 = vadd.f32 %v776, 0.0
        %v782 = vadd.f32 %v775, 0.0
        %v783 = vadd.f32 %v774, 0.0
        %v784 = vadd.f32 %v773, 0.0
        %v785 = vadd.f32 %v772, 0.0
        %v786 = vadd.f32 %v771, 0.0
        %v787 = vadd.f32 %v770, 0.0
        %v788 = vadd.f32 %v769, 0.0
        %v789 = vadd.f32 %v768, 0.0
        %v790 = vadd.f32 %v767, 0.0
        %v791 = vadd.f32 %v766, 0.0
        %v792 = vadd.f32 %v765, 0.0
        %v793 = vadd.f32 %v764, 0.0
        %v794 = vadd.f32 %v763, 0.0
        %v795 = vadd.f32 %v762, 0.0
        %v796 = vadd.f32 %v761, 0.0
        %v797 = vadd.f32 %v760, 0.0
        %v798 = vadd.f32 %v759, 0.0
        %v799 = vadd.f32 %v758, 0.0
        %v800 = vadd.f32 %v757, 0.0
        %v801 = vadd.f32 %v756, 0.0
        %v802 = vadd.f32 %v755, 0.0
        %803 = vst [vmem:[#allocation1] ss:$4 sm:$0xff] %v273
        %s804 = scalar_lea.vmem [#allocation1], 32
        %805 = vst [vmem:[%s804] ss:$4 sm:$0xff] %v274
        %v806 = vld.sshfl [vmem:[#allocation1] sm:$0xff pattern:$0x73625140]
        %v807 = vld.sshfl [vmem:[#allocation1 + $0x8] sm:$0xff pattern:$0x73625140]
        %v808 = vld.sshfl [vmem:[#allocation1 + $0x10] sm:$0xff pattern:$0x73625140]
        %v809 = vld.sshfl [vmem:[#allocation1 + $0x18] sm:$0xff pattern:$0x73625140]
        %v810 = vld.sshfl [vmem:[#allocation1 + $0x20] sm:$0xff pattern:$0x73625140]
        %v811 = vld.sshfl [vmem:[#allocation1 + $0x28] sm:$0xff pattern:$0x73625140]
        %v812 = vld.sshfl [vmem:[#allocation1 + $0x30] sm:$0xff pattern:$0x73625140]
        %v813 = vld.sshfl [vmem:[#allocation1 + $0x38] sm:$0xff pattern:$0x73625140]
        %814 = vst [vmem:[#allocation1] ss:$4 sm:$0xff] %v275
        %815 = vst [vmem:[%s804] ss:$4 sm:$0xff] %v276
        %v816 = vld.sshfl [vmem:[#allocation1] sm:$0xff pattern:$0x73625140]
        %v817 = vld.sshfl [vmem:[#allocation1 + $0x8] sm:$0xff pattern:$0x73625140]
        %v818 = vld.sshfl [vmem:[#allocation1 + $0x10] sm:$0xff pattern:$0x73625140]
        %v819 = vld.sshfl [vmem:[#allocation1 + $0x18] sm:$0xff pattern:$0x73625140]
        %v820 = vld.sshfl [vmem:[#allocation1 + $0x20] sm:$0xff pattern:$0x73625140]
        %v821 = vld.sshfl [vmem:[#allocation1 + $0x28] sm:$0xff pattern:$0x73625140]
        %v822 = vld.sshfl [vmem:[#allocation1 + $0x30] sm:$0xff pattern:$0x73625140]
        %v823 = vld.sshfl [vmem:[#allocation1 + $0x38] sm:$0xff pattern:$0x73625140]
        %824 = vst [vmem:[#allocation1] ss:$4 sm:$0xff] %v277
        %825 = vst [vmem:[%s804] ss:$4 sm:$0xff] %v278
        %v826 = vld.sshfl [vmem:[#allocation1] sm:$0xff pattern:$0x73625140]
        %v827 = vld.sshfl [vmem:[#allocation1 + $0x8] sm:$0xff pattern:$0x73625140]
        %v828 = vld.sshfl [vmem:[#allocation1 + $0x10] sm:$0xff pattern:$0x73625140]
        %v829 = vld.sshfl [vmem:[#allocation1 + $0x18] sm:$0xff pattern:$0x73625140]
        %v830 = vld.sshfl [vmem:[#allocation1 + $0x20] sm:$0xff pattern:$0x73625140]
        %v831 = vld.sshfl [vmem:[#allocation1 + $0x28] sm:$0xff pattern:$0x73625140]
        %v832 = vld.sshfl [vmem:[#allocation1 + $0x30] sm:$0xff pattern:$0x73625140]
        %v833 = vld.sshfl [vmem:[#allocation1 + $0x38] sm:$0xff pattern:$0x73625140]
        %v835 = vsel %vm339, %v280, 0
        %v837 = vsel %vm343, %v806, 0
        %v839 = vsel %vm343, %v807, 0
        %v841 = vsel %vm343, %v808, 0
        %v843 = vsel %vm343, %v809, 0
        %v845 = vsel %vm343, %v810, 0
        %v847 = vsel %vm343, %v811, 0
        %v849 = vsel %vm343, %v812, 0
        %v851 = vsel %vm343, %v813, 0
        %v853 = vsel %vm343, %v816, 0
        %v855 = vsel %vm343, %v817, 0
        %v857 = vsel %vm343, %v818, 0
        %v859 = vsel %vm343, %v819, 0
        %v861 = vsel %vm343, %v820, 0
        %v863 = vsel %vm343, %v821, 0
        %v865 = vsel %vm343, %v822, 0
        %v867 = vsel %vm343, %v823, 0
        %v869 = vsel %vm343, %v826, 0
        %v871 = vsel %vm343, %v827, 0
        %v873 = vsel %vm343, %v828, 0
        %v875 = vsel %vm343, %v829, 0
        %v877 = vsel %vm343, %v830, 0
        %v879 = vsel %vm343, %v831, 0
        %v881 = vsel %vm343, %v832, 0
        %v883 = vsel %vm343, %v833, 0
        %885 = vmatpush.bf16.msra.mxu0 0
        %886 = vmatpush.bf16.msra.mxu0 0
        %887 = vmatpush.bf16.msra.mxu0 0
        %888 = vmatpush.bf16.msra.mxu0 0
        %889 = vmatpush.bf16.msra.mxu0 0
        %890 = vmatpush.bf16.msra.mxu0 0
        %891 = vmatpush.bf16.msra.mxu0 0
        %892 = vmatpush.bf16.msra.mxu0 %v837
        %893 = vmatmul.bf16.gmra.mxu0 %v835
        %v894 = vpop.f32.mrf.mxu0
        %v895 = vadd.f32 0.0, %v894
        %v896 = vpop.f32.mrf.mxu0
        %897 = vdwg.mxu0
        %898 = vmatpush.bf16.msra.mxu0 0
        %899 = vmatpush.bf16.msra.mxu0 0
        %900 = vmatpush.bf16.msra.mxu0 0
        %901 = vmatpush.bf16.msra.mxu0 0
        %902 = vmatpush.bf16.msra.mxu0 0
        %903 = vmatpush.bf16.msra.mxu0 0
        %904 = vmatpush.bf16.msra.mxu0 0
        %905 = vmatpush.bf16.msra.mxu0 %v839
        %906 = vmatmul.bf16.gmra.mxu0 %v835
        %v907 = vpop.f32.mrf.mxu0
        %v908 = vadd.f32 0.0, %v907
        %v909 = vpop.f32.mrf.mxu0
        %910 = vdwg.mxu0
        %911 = vmatpush.bf16.msra.mxu0 0
        %912 = vmatpush.bf16.msra.mxu0 0
        %913 = vmatpush.bf16.msra.mxu0 0
        %914 = vmatpush.bf16.msra.mxu0 0
        %915 = vmatpush.bf16.msra.mxu0 0
        %916 = vmatpush.bf16.msra.mxu0 0
        %917 = vmatpush.bf16.msra.mxu0 0
        %918 = vmatpush.bf16.msra.mxu0 %v841
        %919 = vmatmul.bf16.gmra.mxu0 %v835
        %v920 = vpop.f32.mrf.mxu0
        %v921 = vadd.f32 0.0, %v920
        %v922 = vpop.f32.mrf.mxu0
        %923 = vdwg.mxu0
        %924 = vmatpush.bf16.msra.mxu0 0
        %925 = vmatpush.bf16.msra.mxu0 0
        %926 = vmatpush.bf16.msra.mxu0 0
        %927 = vmatpush.bf16.msra.mxu0 0
        %928 = vmatpush.bf16.msra.mxu0 0
        %929 = vmatpush.bf16.msra.mxu0 0
        %930 = vmatpush.bf16.msra.mxu0 0
        %931 = vmatpush.bf16.msra.mxu0 %v843
        %932 = vmatmul.bf16.gmra.mxu0 %v835
        %v933 = vpop.f32.mrf.mxu0
        %v934 = vadd.f32 0.0, %v933
        %v935 = vpop.f32.mrf.mxu0
        %936 = vdwg.mxu0
        %937 = vmatpush.bf16.msra.mxu0 0
        %938 = vmatpush.bf16.msra.mxu0 0
        %939 = vmatpush.bf16.msra.mxu0 0
        %940 = vmatpush.bf16.msra.mxu0 0
        %941 = vmatpush.bf16.msra.mxu0 0
        %942 = vmatpush.bf16.msra.mxu0 0
        %943 = vmatpush.bf16.msra.mxu0 0
        %944 = vmatpush.bf16.msra.mxu0 %v845
        %945 = vmatmul.bf16.gmra.mxu0 %v835
        %v946 = vpop.f32.mrf.mxu0
        %v947 = vadd.f32 0.0, %v946
        %v948 = vpop.f32.mrf.mxu0
        %949 = vdwg.mxu0
        %950 = vmatpush.bf16.msra.mxu0 0
        %951 = vmatpush.bf16.msra.mxu0 0
        %952 = vmatpush.bf16.msra.mxu0 0
        %953 = vmatpush.bf16.msra.mxu0 0
        %954 = vmatpush.bf16.msra.mxu0 0
        %955 = vmatpush.bf16.msra.mxu0 0
        %956 = vmatpush.bf16.msra.mxu0 0
        %957 = vmatpush.bf16.msra.mxu0 %v847
        %958 = vmatmul.bf16.gmra.mxu0 %v835
        %v959 = vpop.f32.mrf.mxu0
        %v960 = vadd.f32 0.0, %v959
        %v961 = vpop.f32.mrf.mxu0
        %962 = vdwg.mxu0
        %963 = vmatpush.bf16.msra.mxu0 0
        %964 = vmatpush.bf16.msra.mxu0 0
        %965 = vmatpush.bf16.msra.mxu0 0
        %966 = vmatpush.bf16.msra.mxu0 0
        %967 = vmatpush.bf16.msra.mxu0 0
        %968 = vmatpush.bf16.msra.mxu0 0
        %969 = vmatpush.bf16.msra.mxu0 0
        %970 = vmatpush.bf16.msra.mxu0 %v849
        %971 = vmatmul.bf16.gmra.mxu0 %v835
        %v972 = vpop.f32.mrf.mxu0
        %v973 = vadd.f32 0.0, %v972
        %v974 = vpop.f32.mrf.mxu0
        %975 = vdwg.mxu0
        %976 = vmatpush.bf16.msra.mxu0 0
        %977 = vmatpush.bf16.msra.mxu0 0
        %978 = vmatpush.bf16.msra.mxu0 0
        %979 = vmatpush.bf16.msra.mxu0 0
        %980 = vmatpush.bf16.msra.mxu0 0
        %981 = vmatpush.bf16.msra.mxu0 0
        %982 = vmatpush.bf16.msra.mxu0 0
        %983 = vmatpush.bf16.msra.mxu0 %v851
        %984 = vmatmul.bf16.gmra.mxu0 %v835
        %v985 = vpop.f32.mrf.mxu0
        %v986 = vadd.f32 0.0, %v985
        %v987 = vpop.f32.mrf.mxu0
        %988 = vdwg.mxu0
        %989 = vmatpush.bf16.msra.mxu0 0
        %990 = vmatpush.bf16.msra.mxu0 0
        %991 = vmatpush.bf16.msra.mxu0 0
        %992 = vmatpush.bf16.msra.mxu0 0
        %993 = vmatpush.bf16.msra.mxu0 0
        %994 = vmatpush.bf16.msra.mxu0 0
        %995 = vmatpush.bf16.msra.mxu0 0
        %996 = vmatpush.bf16.msra.mxu0 %v853
        %997 = vmatmul.bf16.gmra.mxu0 %v835
        %v998 = vpop.f32.mrf.mxu0
        %v999 = vadd.f32 0.0, %v998
        %v1000 = vpop.f32.mrf.mxu0
        %1001 = vdwg.mxu0
        %1002 = vmatpush.bf16.msra.mxu0 0
        %1003 = vmatpush.bf16.msra.mxu0 0
        %1004 = vmatpush.bf16.msra.mxu0 0
        %1005 = vmatpush.bf16.msra.mxu0 0
        %1006 = vmatpush.bf16.msra.mxu0 0
        %1007 = vmatpush.bf16.msra.mxu0 0
        %1008 = vmatpush.bf16.msra.mxu0 0
        %1009 = vmatpush.bf16.msra.mxu0 %v855
        %1010 = vmatmul.bf16.gmra.mxu0 %v835
        %v1011 = vpop.f32.mrf.mxu0
        %v1012 = vadd.f32 0.0, %v1011
        %v1013 = vpop.f32.mrf.mxu0
        %1014 = vdwg.mxu0
        %1015 = vmatpush.bf16.msra.mxu0 0
        %1016 = vmatpush.bf16.msra.mxu0 0
        %1017 = vmatpush.bf16.msra.mxu0 0
        %1018 = vmatpush.bf16.msra.mxu0 0
        %1019 = vmatpush.bf16.msra.mxu0 0
        %1020 = vmatpush.bf16.msra.mxu0 0
        %1021 = vmatpush.bf16.msra.mxu0 0
        %1022 = vmatpush.bf16.msra.mxu0 %v857
        %1023 = vmatmul.bf16.gmra.mxu0 %v835
        %v1024 = vpop.f32.mrf.mxu0
        %v1025 = vadd.f32 0.0, %v1024
        %v1026 = vpop.f32.mrf.mxu0
        %1027 = vdwg.mxu0
        %1028 = vmatpush.bf16.msra.mxu0 0
        %1029 = vmatpush.bf16.msra.mxu0 0
        %1030 = vmatpush.bf16.msra.mxu0 0
        %1031 = vmatpush.bf16.msra.mxu0 0
        %1032 = vmatpush.bf16.msra.mxu0 0
        %1033 = vmatpush.bf16.msra.mxu0 0
        %1034 = vmatpush.bf16.msra.mxu0 0
        %1035 = vmatpush.bf16.msra.mxu0 %v859
        %1036 = vmatmul.bf16.gmra.mxu0 %v835
        %v1037 = vpop.f32.mrf.mxu0
        %v1038 = vadd.f32 0.0, %v1037
        %v1039 = vpop.f32.mrf.mxu0
        %1040 = vdwg.mxu0
        %1041 = vmatpush.bf16.msra.mxu0 0
        %1042 = vmatpush.bf16.msra.mxu0 0
        %1043 = vmatpush.bf16.msra.mxu0 0
        %1044 = vmatpush.bf16.msra.mxu0 0
        %1045 = vmatpush.bf16.msra.mxu0 0
        %1046 = vmatpush.bf16.msra.mxu0 0
        %1047 = vmatpush.bf16.msra.mxu0 0
        %1048 = vmatpush.bf16.msra.mxu0 %v861
        %1049 = vmatmul.bf16.gmra.mxu0 %v835
        %v1050 = vpop.f32.mrf.mxu0
        %v1051 = vadd.f32 0.0, %v1050
        %v1052 = vpop.f32.mrf.mxu0
        %1053 = vdwg.mxu0
        %1054 = vmatpush.bf16.msra.mxu0 0
        %1055 = vmatpush.bf16.msra.mxu0 0
        %1056 = vmatpush.bf16.msra.mxu0 0
        %1057 = vmatpush.bf16.msra.mxu0 0
        %1058 = vmatpush.bf16.msra.mxu0 0
        %1059 = vmatpush.bf16.msra.mxu0 0
        %1060 = vmatpush.bf16.msra.mxu0 0
        %1061 = vmatpush.bf16.msra.mxu0 %v863
        %1062 = vmatmul.bf16.gmra.mxu0 %v835
        %v1063 = vpop.f32.mrf.mxu0
        %v1064 = vadd.f32 0.0, %v1063
        %v1065 = vpop.f32.mrf.mxu0
        %1066 = vdwg.mxu0
        %1067 = vmatpush.bf16.msra.mxu0 0
        %1068 = vmatpush.bf16.msra.mxu0 0
        %1069 = vmatpush.bf16.msra.mxu0 0
        %1070 = vmatpush.bf16.msra.mxu0 0
        %1071 = vmatpush.bf16.msra.mxu0 0
        %1072 = vmatpush.bf16.msra.mxu0 0
        %1073 = vmatpush.bf16.msra.mxu0 0
        %1074 = vmatpush.bf16.msra.mxu0 %v865
        %1075 = vmatmul.bf16.gmra.mxu0 %v835
        %v1076 = vpop.f32.mrf.mxu0
        %v1077 = vadd.f32 0.0, %v1076
        %v1078 = vpop.f32.mrf.mxu0
        %1079 = vdwg.mxu0
        %1080 = vmatpush.bf16.msra.mxu0 0
        %1081 = vmatpush.bf16.msra.mxu0 0
        %1082 = vmatpush.bf16.msra.mxu0 0
        %1083 = vmatpush.bf16.msra.mxu0 0
        %1084 = vmatpush.bf16.msra.mxu0 0
        %1085 = vmatpush.bf16.msra.mxu0 0
        %1086 = vmatpush.bf16.msra.mxu0 0
        %1087 = vmatpush.bf16.msra.mxu0 %v867
        %1088 = vmatmul.bf16.gmra.mxu0 %v835
        %v1089 = vpop.f32.mrf.mxu0
        %v1090 = vadd.f32 0.0, %v1089
        %v1091 = vpop.f32.mrf.mxu0
        %1092 = vdwg.mxu0
        %1093 = vmatpush.bf16.msra.mxu0 0
        %1094 = vmatpush.bf16.msra.mxu0 0
        %1095 = vmatpush.bf16.msra.mxu0 0
        %1096 = vmatpush.bf16.msra.mxu0 0
        %1097 = vmatpush.bf16.msra.mxu0 0
        %1098 = vmatpush.bf16.msra.mxu0 0
        %1099 = vmatpush.bf16.msra.mxu0 0
        %1100 = vmatpush.bf16.msra.mxu0 %v869
        %1101 = vmatmul.bf16.gmra.mxu0 %v835
        %v1102 = vpop.f32.mrf.mxu0
        %v1103 = vadd.f32 0.0, %v1102
        %v1104 = vpop.f32.mrf.mxu0
        %1105 = vdwg.mxu0
        %1106 = vmatpush.bf16.msra.mxu0 0
        %1107 = vmatpush.bf16.msra.mxu0 0
        %1108 = vmatpush.bf16.msra.mxu0 0
        %1109 = vmatpush.bf16.msra.mxu0 0
        %1110 = vmatpush.bf16.msra.mxu0 0
        %1111 = vmatpush.bf16.msra.mxu0 0
        %1112 = vmatpush.bf16.msra.mxu0 0
        %1113 = vmatpush.bf16.msra.mxu0 %v871
        %1114 = vmatmul.bf16.gmra.mxu0 %v835
        %v1115 = vpop.f32.mrf.mxu0
        %v1116 = vadd.f32 0.0, %v1115
        %v1117 = vpop.f32.mrf.mxu0
        %1118 = vdwg.mxu0
        %1119 = vmatpush.bf16.msra.mxu0 0
        %1120 = vmatpush.bf16.msra.mxu0 0
        %1121 = vmatpush.bf16.msra.mxu0 0
        %1122 = vmatpush.bf16.msra.mxu0 0
        %1123 = vmatpush.bf16.msra.mxu0 0
        %1124 = vmatpush.bf16.msra.mxu0 0
        %1125 = vmatpush.bf16.msra.mxu0 0
        %1126 = vmatpush.bf16.msra.mxu0 %v873
        %1127 = vmatmul.bf16.gmra.mxu0 %v835
        %v1128 = vpop.f32.mrf.mxu0
        %v1129 = vadd.f32 0.0, %v1128
        %v1130 = vpop.f32.mrf.mxu0
        %1131 = vdwg.mxu0
        %1132 = vmatpush.bf16.msra.mxu0 0
        %1133 = vmatpush.bf16.msra.mxu0 0
        %1134 = vmatpush.bf16.msra.mxu0 0
        %1135 = vmatpush.bf16.msra.mxu0 0
        %1136 = vmatpush.bf16.msra.mxu0 0
        %1137 = vmatpush.bf16.msra.mxu0 0
        %1138 = vmatpush.bf16.msra.mxu0 0
        %1139 = vmatpush.bf16.msra.mxu0 %v875
        %1140 = vmatmul.bf16.gmra.mxu0 %v835
        %v1141 = vpop.f32.mrf.mxu0
        %v1142 = vadd.f32 0.0, %v1141
        %v1143 = vpop.f32.mrf.mxu0
        %1144 = vdwg.mxu0
        %1145 = vmatpush.bf16.msra.mxu0 0
        %1146 = vmatpush.bf16.msra.mxu0 0
        %1147 = vmatpush.bf16.msra.mxu0 0
        %1148 = vmatpush.bf16.msra.mxu0 0
        %1149 = vmatpush.bf16.msra.mxu0 0
        %1150 = vmatpush.bf16.msra.mxu0 0
        %1151 = vmatpush.bf16.msra.mxu0 0
        %1152 = vmatpush.bf16.msra.mxu0 %v877
        %1153 = vmatmul.bf16.gmra.mxu0 %v835
        %v1154 = vpop.f32.mrf.mxu0
        %v1155 = vadd.f32 0.0, %v1154
        %v1156 = vpop.f32.mrf.mxu0
        %1157 = vdwg.mxu0
        %1158 = vmatpush.bf16.msra.mxu0 0
        %1159 = vmatpush.bf16.msra.mxu0 0
        %1160 = vmatpush.bf16.msra.mxu0 0
        %1161 = vmatpush.bf16.msra.mxu0 0
        %1162 = vmatpush.bf16.msra.mxu0 0
        %1163 = vmatpush.bf16.msra.mxu0 0
        %1164 = vmatpush.bf16.msra.mxu0 0
        %1165 = vmatpush.bf16.msra.mxu0 %v879
        %1166 = vmatmul.bf16.gmra.mxu0 %v835
        %v1167 = vpop.f32.mrf.mxu0
        %v1168 = vadd.f32 0.0, %v1167
        %v1169 = vpop.f32.mrf.mxu0
        %1170 = vdwg.mxu0
        %1171 = vmatpush.bf16.msra.mxu0 0
        %1172 = vmatpush.bf16.msra.mxu0 0
        %1173 = vmatpush.bf16.msra.mxu0 0
        %1174 = vmatpush.bf16.msra.mxu0 0
        %1175 = vmatpush.bf16.msra.mxu0 0
        %1176 = vmatpush.bf16.msra.mxu0 0
        %1177 = vmatpush.bf16.msra.mxu0 0
        %1178 = vmatpush.bf16.msra.mxu0 %v881
        %1179 = vmatmul.bf16.gmra.mxu0 %v835
        %v1180 = vpop.f32.mrf.mxu0
        %v1181 = vadd.f32 0.0, %v1180
        %v1182 = vpop.f32.mrf.mxu0
        %1183 = vdwg.mxu0
        %1184 = vmatpush.bf16.msra.mxu0 0
        %1185 = vmatpush.bf16.msra.mxu0 0
        %1186 = vmatpush.bf16.msra.mxu0 0
        %1187 = vmatpush.bf16.msra.mxu0 0
        %1188 = vmatpush.bf16.msra.mxu0 0
        %1189 = vmatpush.bf16.msra.mxu0 0
        %1190 = vmatpush.bf16.msra.mxu0 0
        %1191 = vmatpush.bf16.msra.mxu0 %v883
        %1192 = vmatmul.bf16.gmra.mxu0 %v835
        %v1193 = vpop.f32.mrf.mxu0
        %v1194 = vadd.f32 0.0, %v1193
        %v1195 = vpop.f32.mrf.mxu0
        %1196 = vdwg.mxu0
        %1197 = vrot.lane.b32.xlu0 %v895, 18
        %v1198 = vpop.permute.xlu0 %1197
        %1199 = vrot.lane.b32.xlu0 %v908, 18
        %v1200 = vpop.permute.xlu0 %1199
        %1201 = vrot.lane.b32.xlu0 %v921, 18
        %v1202 = vpop.permute.xlu0 %1201
        %1203 = vrot.lane.b32.xlu0 %v934, 18
        %v1204 = vpop.permute.xlu0 %1203
        %1205 = vrot.lane.b32.xlu0 %v947, 18
        %v1206 = vpop.permute.xlu0 %1205
        %1207 = vrot.lane.b32.xlu0 %v960, 18
        %v1208 = vpop.permute.xlu0 %1207
        %1209 = vrot.lane.b32.xlu0 %v973, 18
        %v1210 = vpop.permute.xlu0 %1209
        %1211 = vrot.lane.b32.xlu0 %v986, 18
        %v1212 = vpop.permute.xlu0 %1211
        %1213 = vrot.lane.b32.xlu0 %v999, 18
        %v1214 = vpop.permute.xlu0 %1213
        %1215 = vrot.lane.b32.xlu0 %v1012, 18
        %v1216 = vpop.permute.xlu0 %1215
        %1217 = vrot.lane.b32.xlu0 %v1025, 18
        %v1218 = vpop.permute.xlu0 %1217
        %1219 = vrot.lane.b32.xlu0 %v1038, 18
        %v1220 = vpop.permute.xlu0 %1219
        %1221 = vrot.lane.b32.xlu0 %v1051, 18
        %v1222 = vpop.permute.xlu0 %1221
        %1223 = vrot.lane.b32.xlu0 %v1064, 18
        %v1224 = vpop.permute.xlu0 %1223
        %1225 = vrot.lane.b32.xlu0 %v1077, 18
        %v1226 = vpop.permute.xlu0 %1225
        %1227 = vrot.lane.b32.xlu0 %v1090, 18
        %v1228 = vpop.permute.xlu0 %1227
        %1229 = vrot.lane.b32.xlu0 %v1103, 18
        %v1230 = vpop.permute.xlu0 %1229
        %1231 = vrot.lane.b32.xlu0 %v1116, 18
        %v1232 = vpop.permute.xlu0 %1231
        %1233 = vrot.lane.b32.xlu0 %v1129, 18
        %v1234 = vpop.permute.xlu0 %1233
        %1235 = vrot.lane.b32.xlu0 %v1142, 18
        %v1236 = vpop.permute.xlu0 %1235
        %1237 = vrot.lane.b32.xlu0 %v1155, 18
        %v1238 = vpop.permute.xlu0 %1237
        %1239 = vrot.lane.b32.xlu0 %v1168, 18
        %v1240 = vpop.permute.xlu0 %1239
        %1241 = vrot.lane.b32.xlu0 %v1181, 18
        %v1242 = vpop.permute.xlu0 %1241
        %1243 = vrot.lane.b32.xlu0 %v1194, 18
        %v1244 = vpop.permute.xlu0 %1243
        %vm1245 = vcmp.lt.s32.totalorder %v753, 18
        %v1246 = vsel %vm1245, %v1242, %v1244
        %v1247 = vsel %vm1245, %v1240, %v1242
        %v1248 = vsel %vm1245, %v1238, %v1240
        %v1249 = vsel %vm1245, %v1236, %v1238
        %v1250 = vsel %vm1245, %v1234, %v1236
        %v1251 = vsel %vm1245, %v1232, %v1234
        %v1252 = vsel %vm1245, %v1230, %v1232
        %v1253 = vsel %vm1245, %v1228, %v1230
        %v1254 = vsel %vm1245, %v1226, %v1228
        %v1255 = vsel %vm1245, %v1224, %v1226
        %v1256 = vsel %vm1245, %v1222, %v1224
        %v1257 = vsel %vm1245, %v1220, %v1222
        %v1258 = vsel %vm1245, %v1218, %v1220
        %v1259 = vsel %vm1245, %v1216, %v1218
        %v1260 = vsel %vm1245, %v1214, %v1216
        %v1261 = vsel %vm1245, %v1212, %v1214
        %v1262 = vsel %vm1245, %v1210, %v1212
        %v1263 = vsel %vm1245, %v1208, %v1210
        %v1264 = vsel %vm1245, %v1206, %v1208
        %v1265 = vsel %vm1245, %v1204, %v1206
        %v1266 = vsel %vm1245, %v1202, %v1204
        %v1267 = vsel %vm1245, %v1200, %v1202
        %v1268 = vsel %vm1245, %v1198, %v1200
        %v1269 = vsel %vm1245, %v1244, %v1198
        %v1270 = vadd.f32 %v779, %v1269
        %v1271 = vadd.f32 %v780, %v1268
        %v1272 = vadd.f32 %v781, %v1267
        %v1273 = vadd.f32 %v782, %v1266
        %v1274 = vadd.f32 %v783, %v1265
        %v1275 = vadd.f32 %v784, %v1264
        %v1276 = vadd.f32 %v785, %v1263
        %v1277 = vadd.f32 %v786, %v1262
        %v1278 = vadd.f32 %v787, %v1261
        %v1279 = vadd.f32 %v788, %v1260
        %v1280 = vadd.f32 %v789, %v1259
        %v1281 = vadd.f32 %v790, %v1258
        %v1282 = vadd.f32 %v791, %v1257
        %v1283 = vadd.f32 %v792, %v1256
        %v1284 = vadd.f32 %v793, %v1255
        %v1285 = vadd.f32 %v794, %v1254
        %v1286 = vadd.f32 %v795, %v1253
        %v1287 = vadd.f32 %v796, %v1252
        %v1288 = vadd.f32 %v797, %v1251
        %v1289 = vadd.f32 %v798, %v1250
        %v1290 = vadd.f32 %v799, %v1249
        %v1291 = vadd.f32 %v800, %v1248
        %v1292 = vadd.f32 %v801, %v1247
        %v1293 = vadd.f32 %v802, %v1246
        %1294 = vst [vmem:[#allocation1] ss:$4 sm:$0xff] %v273
        %s1295 = scalar_lea.vmem [#allocation1], 32
        %1296 = vst [vmem:[%s1295] ss:$4 sm:$0xff] %v274
        %v1297 = vld.sshfl [vmem:[#allocation1] sm:$0xff pattern:$0x73625140]
        %v1298 = vld.sshfl [vmem:[#allocation1 + $0x8] sm:$0xff pattern:$0x73625140]
        %v1299 = vld.sshfl [vmem:[#allocation1 + $0x10] sm:$0xff pattern:$0x73625140]
        %v1300 = vld.sshfl [vmem:[#allocation1 + $0x18] sm:$0xff pattern:$0x73625140]
        %v1301 = vld.sshfl [vmem:[#allocation1 + $0x20] sm:$0xff pattern:$0x73625140]
        %v1302 = vld.sshfl [vmem:[#allocation1 + $0x28] sm:$0xff pattern:$0x73625140]
        %v1303 = vld.sshfl [vmem:[#allocation1 + $0x30] sm:$0xff pattern:$0x73625140]
        %v1304 = vld.sshfl [vmem:[#allocation1 + $0x38] sm:$0xff pattern:$0x73625140]
        %1305 = vst [vmem:[#allocation1] ss:$4 sm:$0xff] %v275
        %1306 = vst [vmem:[%s1295] ss:$4 sm:$0xff] %v276
        %v1307 = vld.sshfl [vmem:[#allocation1] sm:$0xff pattern:$0x73625140]
        %v1308 = vld.sshfl [vmem:[#allocation1 + $0x8] sm:$0xff pattern:$0x73625140]
        %v1309 = vld.sshfl [vmem:[#allocation1 + $0x10] sm:$0xff pattern:$0x73625140]
        %v1310 = vld.sshfl [vmem:[#allocation1 + $0x18] sm:$0xff pattern:$0x73625140]
        %v1311 = vld.sshfl [vmem:[#allocation1 + $0x20] sm:$0xff pattern:$0x73625140]
        %v1312 = vld.sshfl [vmem:[#allocation1 + $0x28] sm:$0xff pattern:$0x73625140]
        %v1313 = vld.sshfl [vmem:[#allocation1 + $0x30] sm:$0xff pattern:$0x73625140]
        %v1314 = vld.sshfl [vmem:[#allocation1 + $0x38] sm:$0xff pattern:$0x73625140]
        %1315 = vst [vmem:[#allocation1] ss:$4 sm:$0xff] %v277
        %1316 = vst [vmem:[%s1295] ss:$4 sm:$0xff] %v278
        %v1317 = vld.sshfl [vmem:[#allocation1] sm:$0xff pattern:$0x73625140]
        %v1318 = vld.sshfl [vmem:[#allocation1 + $0x8] sm:$0xff pattern:$0x73625140]
        %v1319 = vld.sshfl [vmem:[#allocation1 + $0x10] sm:$0xff pattern:$0x73625140]
        %v1320 = vld.sshfl [vmem:[#allocation1 + $0x18] sm:$0xff pattern:$0x73625140]
        %v1321 = vld.sshfl [vmem:[#allocation1 + $0x20] sm:$0xff pattern:$0x73625140]
        %v1322 = vld.sshfl [vmem:[#allocation1 + $0x28] sm:$0xff pattern:$0x73625140]
        %v1323 = vld.sshfl [vmem:[#allocation1 + $0x30] sm:$0xff pattern:$0x73625140]
        %v1324 = vld.sshfl [vmem:[#allocation1 + $0x38] sm:$0xff pattern:$0x73625140]
        %v1326 = vsel %vm339, %v281, 0
        %v1328 = vsel %vm343, %v1297, 0
        %v1330 = vsel %vm343, %v1298, 0
        %v1332 = vsel %vm343, %v1299, 0
        %v1334 = vsel %vm343, %v1300, 0
        %v1336 = vsel %vm343, %v1301, 0
        %v1338 = vsel %vm343, %v1302, 0
        %v1340 = vsel %vm343, %v1303, 0
        %v1342 = vsel %vm343, %v1304, 0
        %v1344 = vsel %vm343, %v1307, 0
        %v1346 = vsel %vm343, %v1308, 0
        %v1348 = vsel %vm343, %v1309, 0
        %v1350 = vsel %vm343, %v1310, 0
        %v1352 = vsel %vm343, %v1311, 0
        %v1354 = vsel %vm343, %v1312, 0
        %v1356 = vsel %vm343, %v1313, 0
        %v1358 = vsel %vm343, %v1314, 0
        %v1360 = vsel %vm343, %v1317, 0
        %v1362 = vsel %vm343, %v1318, 0
        %v1364 = vsel %vm343, %v1319, 0
        %v1366 = vsel %vm343, %v1320, 0
        %v1368 = vsel %vm343, %v1321, 0
        %v1370 = vsel %vm343, %v1322, 0
        %v1372 = vsel %vm343, %v1323, 0
        %v1374 = vsel %vm343, %v1324, 0
        %1376 = vmatpush.bf16.msra.mxu0 0
        %1377 = vmatpush.bf16.msra.mxu0 0
        %1378 = vmatpush.bf16.msra.mxu0 0
        %1379 = vmatpush.bf16.msra.mxu0 0
        %1380 = vmatpush.bf16.msra.mxu0 0
        %1381 = vmatpush.bf16.msra.mxu0 0
        %1382 = vmatpush.bf16.msra.mxu0 0
        %1383 = vmatpush.bf16.msra.mxu0 %v1328
        %1384 = vmatmul.bf16.gmra.mxu0 %v1326
        %v1385 = vpop.f32.mrf.mxu0
        %v1386 = vadd.f32 0.0, %v1385
        %v1387 = vpop.f32.mrf.mxu0
        %1388 = vdwg.mxu0
        %1389 = vmatpush.bf16.msra.mxu0 0
        %1390 = vmatpush.bf16.msra.mxu0 0
        %1391 = vmatpush.bf16.msra.mxu0 0
        %1392 = vmatpush.bf16.msra.mxu0 0
        %1393 = vmatpush.bf16.msra.mxu0 0
        %1394 = vmatpush.bf16.msra.mxu0 0
        %1395 = vmatpush.bf16.msra.mxu0 0
        %1396 = vmatpush.bf16.msra.mxu0 %v1330
        %1397 = vmatmul.bf16.gmra.mxu0 %v1326
        %v1398 = vpop.f32.mrf.mxu0
        %v1399 = vadd.f32 0.0, %v1398
        %v1400 = vpop.f32.mrf.mxu0
        %1401 = vdwg.mxu0
        %1402 = vmatpush.bf16.msra.mxu0 0
        %1403 = vmatpush.bf16.msra.mxu0 0
        %1404 = vmatpush.bf16.msra.mxu0 0
        %1405 = vmatpush.bf16.msra.mxu0 0
        %1406 = vmatpush.bf16.msra.mxu0 0
        %1407 = vmatpush.bf16.msra.mxu0 0
        %1408 = vmatpush.bf16.msra.mxu0 0
        %1409 = vmatpush.bf16.msra.mxu0 %v1332
        %1410 = vmatmul.bf16.gmra.mxu0 %v1326
        %v1411 = vpop.f32.mrf.mxu0
        %v1412 = vadd.f32 0.0, %v1411
        %v1413 = vpop.f32.mrf.mxu0
        %1414 = vdwg.mxu0
        %1415 = vmatpush.bf16.msra.mxu0 0
        %1416 = vmatpush.bf16.msra.mxu0 0
        %1417 = vmatpush.bf16.msra.mxu0 0
        %1418 = vmatpush.bf16.msra.mxu0 0
        %1419 = vmatpush.bf16.msra.mxu0 0
        %1420 = vmatpush.bf16.msra.mxu0 0
        %1421 = vmatpush.bf16.msra.mxu0 0
        %1422 = vmatpush.bf16.msra.mxu0 %v1334
        %1423 = vmatmul.bf16.gmra.mxu0 %v1326
        %v1424 = vpop.f32.mrf.mxu0
        %v1425 = vadd.f32 0.0, %v1424
        %v1426 = vpop.f32.mrf.mxu0
        %1427 = vdwg.mxu0
        %1428 = vmatpush.bf16.msra.mxu0 0
        %1429 = vmatpush.bf16.msra.mxu0 0
        %1430 = vmatpush.bf16.msra.mxu0 0
        %1431 = vmatpush.bf16.msra.mxu0 0
        %1432 = vmatpush.bf16.msra.mxu0 0
        %1433 = vmatpush.bf16.msra.mxu0 0
        %1434 = vmatpush.bf16.msra.mxu0 0
        %1435 = vmatpush.bf16.msra.mxu0 %v1336
        %1436 = vmatmul.bf16.gmra.mxu0 %v1326
        %v1437 = vpop.f32.mrf.mxu0
        %v1438 = vadd.f32 0.0, %v1437
        %v1439 = vpop.f32.mrf.mxu0
        %1440 = vdwg.mxu0
        %1441 = vmatpush.bf16.msra.mxu0 0
        %1442 = vmatpush.bf16.msra.mxu0 0
        %1443 = vmatpush.bf16.msra.mxu0 0
        %1444 = vmatpush.bf16.msra.mxu0 0
        %1445 = vmatpush.bf16.msra.mxu0 0
        %1446 = vmatpush.bf16.msra.mxu0 0
        %1447 = vmatpush.bf16.msra.mxu0 0
        %1448 = vmatpush.bf16.msra.mxu0 %v1338
        %1449 = vmatmul.bf16.gmra.mxu0 %v1326
        %v1450 = vpop.f32.mrf.mxu0
        %v1451 = vadd.f32 0.0, %v1450
        %v1452 = vpop.f32.mrf.mxu0
        %1453 = vdwg.mxu0
        %1454 = vmatpush.bf16.msra.mxu0 0
        %1455 = vmatpush.bf16.msra.mxu0 0
        %1456 = vmatpush.bf16.msra.mxu0 0
        %1457 = vmatpush.bf16.msra.mxu0 0
        %1458 = vmatpush.bf16.msra.mxu0 0
        %1459 = vmatpush.bf16.msra.mxu0 0
        %1460 = vmatpush.bf16.msra.mxu0 0
        %1461 = vmatpush.bf16.msra.mxu0 %v1340
        %1462 = vmatmul.bf16.gmra.mxu0 %v1326
        %v1463 = vpop.f32.mrf.mxu0
        %v1464 = vadd.f32 0.0, %v1463
        %v1465 = vpop.f32.mrf.mxu0
        %1466 = vdwg.mxu0
        %1467 = vmatpush.bf16.msra.mxu0 0
        %1468 = vmatpush.bf16.msra.mxu0 0
        %1469 = vmatpush.bf16.msra.mxu0 0
        %1470 = vmatpush.bf16.msra.mxu0 0
        %1471 = vmatpush.bf16.msra.mxu0 0
        %1472 = vmatpush.bf16.msra.mxu0 0
        %1473 = vmatpush.bf16.msra.mxu0 0
        %1474 = vmatpush.bf16.msra.mxu0 %v1342
        %1475 = vmatmul.bf16.gmra.mxu0 %v1326
        %v1476 = vpop.f32.mrf.mxu0
        %v1477 = vadd.f32 0.0, %v1476
        %v1478 = vpop.f32.mrf.mxu0
        %1479 = vdwg.mxu0
        %1480 = vmatpush.bf16.msra.mxu0 0
        %1481 = vmatpush.bf16.msra.mxu0 0
        %1482 = vmatpush.bf16.msra.mxu0 0
        %1483 = vmatpush.bf16.msra.mxu0 0
        %1484 = vmatpush.bf16.msra.mxu0 0
        %1485 = vmatpush.bf16.msra.mxu0 0
        %1486 = vmatpush.bf16.msra.mxu0 0
        %1487 = vmatpush.bf16.msra.mxu0 %v1344
        %1488 = vmatmul.bf16.gmra.mxu0 %v1326
        %v1489 = vpop.f32.mrf.mxu0
        %v1490 = vadd.f32 0.0, %v1489
        %v1491 = vpop.f32.mrf.mxu0
        %1492 = vdwg.mxu0
        %1493 = vmatpush.bf16.msra.mxu0 0
        %1494 = vmatpush.bf16.msra.mxu0 0
        %1495 = vmatpush.bf16.msra.mxu0 0
        %1496 = vmatpush.bf16.msra.mxu0 0
        %1497 = vmatpush.bf16.msra.mxu0 0
        %1498 = vmatpush.bf16.msra.mxu0 0
        %1499 = vmatpush.bf16.msra.mxu0 0
        %1500 = vmatpush.bf16.msra.mxu0 %v1346
        %1501 = vmatmul.bf16.gmra.mxu0 %v1326
        %v1502 = vpop.f32.mrf.mxu0
        %v1503 = vadd.f32 0.0, %v1502
        %v1504 = vpop.f32.mrf.mxu0
        %1505 = vdwg.mxu0
        %1506 = vmatpush.bf16.msra.mxu0 0
        %1507 = vmatpush.bf16.msra.mxu0 0
        %1508 = vmatpush.bf16.msra.mxu0 0
        %1509 = vmatpush.bf16.msra.mxu0 0
        %1510 = vmatpush.bf16.msra.mxu0 0
        %1511 = vmatpush.bf16.msra.mxu0 0
        %1512 = vmatpush.bf16.msra.mxu0 0
        %1513 = vmatpush.bf16.msra.mxu0 %v1348
        %1514 = vmatmul.bf16.gmra.mxu0 %v1326
        %v1515 = vpop.f32.mrf.mxu0
        %v1516 = vadd.f32 0.0, %v1515
        %v1517 = vpop.f32.mrf.mxu0
        %1518 = vdwg.mxu0
        %1519 = vmatpush.bf16.msra.mxu0 0
        %1520 = vmatpush.bf16.msra.mxu0 0
        %1521 = vmatpush.bf16.msra.mxu0 0
        %1522 = vmatpush.bf16.msra.mxu0 0
        %1523 = vmatpush.bf16.msra.mxu0 0
        %1524 = vmatpush.bf16.msra.mxu0 0
        %1525 = vmatpush.bf16.msra.mxu0 0
        %1526 = vmatpush.bf16.msra.mxu0 %v1350
        %1527 = vmatmul.bf16.gmra.mxu0 %v1326
        %v1528 = vpop.f32.mrf.mxu0
        %v1529 = vadd.f32 0.0, %v1528
        %v1530 = vpop.f32.mrf.mxu0
        %1531 = vdwg.mxu0
        %1532 = vmatpush.bf16.msra.mxu0 0
        %1533 = vmatpush.bf16.msra.mxu0 0
        %1534 = vmatpush.bf16.msra.mxu0 0
        %1535 = vmatpush.bf16.msra.mxu0 0
        %1536 = vmatpush.bf16.msra.mxu0 0
        %1537 = vmatpush.bf16.msra.mxu0 0
        %1538 = vmatpush.bf16.msra.mxu0 0
        %1539 = vmatpush.bf16.msra.mxu0 %v1352
        %1540 = vmatmul.bf16.gmra.mxu0 %v1326
        %v1541 = vpop.f32.mrf.mxu0
        %v1542 = vadd.f32 0.0, %v1541
        %v1543 = vpop.f32.mrf.mxu0
        %1544 = vdwg.mxu0
        %1545 = vmatpush.bf16.msra.mxu0 0
        %1546 = vmatpush.bf16.msra.mxu0 0
        %1547 = vmatpush.bf16.msra.mxu0 0
        %1548 = vmatpush.bf16.msra.mxu0 0
        %1549 = vmatpush.bf16.msra.mxu0 0
        %1550 = vmatpush.bf16.msra.mxu0 0
        %1551 = vmatpush.bf16.msra.mxu0 0
        %1552 = vmatpush.bf16.msra.mxu0 %v1354
        %1553 = vmatmul.bf16.gmra.mxu0 %v1326
        %v1554 = vpop.f32.mrf.mxu0
        %v1555 = vadd.f32 0.0, %v1554
        %v1556 = vpop.f32.mrf.mxu0
        %1557 = vdwg.mxu0
        %1558 = vmatpush.bf16.msra.mxu0 0
        %1559 = vmatpush.bf16.msra.mxu0 0
        %1560 = vmatpush.bf16.msra.mxu0 0
        %1561 = vmatpush.bf16.msra.mxu0 0
        %1562 = vmatpush.bf16.msra.mxu0 0
        %1563 = vmatpush.bf16.msra.mxu0 0
        %1564 = vmatpush.bf16.msra.mxu0 0
        %1565 = vmatpush.bf16.msra.mxu0 %v1356
        %1566 = vmatmul.bf16.gmra.mxu0 %v1326
        %v1567 = vpop.f32.mrf.mxu0
        %v1568 = vadd.f32 0.0, %v1567
        %v1569 = vpop.f32.mrf.mxu0
        %1570 = vdwg.mxu0
        %1571 = vmatpush.bf16.msra.mxu0 0
        %1572 = vmatpush.bf16.msra.mxu0 0
        %1573 = vmatpush.bf16.msra.mxu0 0
        %1574 = vmatpush.bf16.msra.mxu0 0
        %1575 = vmatpush.bf16.msra.mxu0 0
        %1576 = vmatpush.bf16.msra.mxu0 0
        %1577 = vmatpush.bf16.msra.mxu0 0
        %1578 = vmatpush.bf16.msra.mxu0 %v1358
        %1579 = vmatmul.bf16.gmra.mxu0 %v1326
        %v1580 = vpop.f32.mrf.mxu0
        %v1581 = vadd.f32 0.0, %v1580
        %v1582 = vpop.f32.mrf.mxu0
        %1583 = vdwg.mxu0
        %1584 = vmatpush.bf16.msra.mxu0 0
        %1585 = vmatpush.bf16.msra.mxu0 0
        %1586 = vmatpush.bf16.msra.mxu0 0
        %1587 = vmatpush.bf16.msra.mxu0 0
        %1588 = vmatpush.bf16.msra.mxu0 0
        %1589 = vmatpush.bf16.msra.mxu0 0
        %1590 = vmatpush.bf16.msra.mxu0 0
        %1591 = vmatpush.bf16.msra.mxu0 %v1360
        %1592 = vmatmul.bf16.gmra.mxu0 %v1326
        %v1593 = vpop.f32.mrf.mxu0
        %v1594 = vadd.f32 0.0, %v1593
        %v1595 = vpop.f32.mrf.mxu0
        %1596 = vdwg.mxu0
        %1597 = vmatpush.bf16.msra.mxu0 0
        %1598 = vmatpush.bf16.msra.mxu0 0
        %1599 = vmatpush.bf16.msra.mxu0 0
        %1600 = vmatpush.bf16.msra.mxu0 0
        %1601 = vmatpush.bf16.msra.mxu0 0
        %1602 = vmatpush.bf16.msra.mxu0 0
        %1603 = vmatpush.bf16.msra.mxu0 0
        %1604 = vmatpush.bf16.msra.mxu0 %v1362
        %1605 = vmatmul.bf16.gmra.mxu0 %v1326
        %v1606 = vpop.f32.mrf.mxu0
        %v1607 = vadd.f32 0.0, %v1606
        %v1608 = vpop.f32.mrf.mxu0
        %1609 = vdwg.mxu0
        %1610 = vmatpush.bf16.msra.mxu0 0
        %1611 = vmatpush.bf16.msra.mxu0 0
        %1612 = vmatpush.bf16.msra.mxu0 0
        %1613 = vmatpush.bf16.msra.mxu0 0
        %1614 = vmatpush.bf16.msra.mxu0 0
        %1615 = vmatpush.bf16.msra.mxu0 0
        %1616 = vmatpush.bf16.msra.mxu0 0
        %1617 = vmatpush.bf16.msra.mxu0 %v1364
        %1618 = vmatmul.bf16.gmra.mxu0 %v1326
        %v1619 = vpop.f32.mrf.mxu0
        %v1620 = vadd.f32 0.0, %v1619
        %v1621 = vpop.f32.mrf.mxu0
        %1622 = vdwg.mxu0
        %1623 = vmatpush.bf16.msra.mxu0 0
        %1624 = vmatpush.bf16.msra.mxu0 0
        %1625 = vmatpush.bf16.msra.mxu0 0
        %1626 = vmatpush.bf16.msra.mxu0 0
        %1627 = vmatpush.bf16.msra.mxu0 0
        %1628 = vmatpush.bf16.msra.mxu0 0
        %1629 = vmatpush.bf16.msra.mxu0 0
        %1630 = vmatpush.bf16.msra.mxu0 %v1366
        %1631 = vmatmul.bf16.gmra.mxu0 %v1326
        %v1632 = vpop.f32.mrf.mxu0
        %v1633 = vadd.f32 0.0, %v1632
        %v1634 = vpop.f32.mrf.mxu0
        %1635 = vdwg.mxu0
        %1636 = vmatpush.bf16.msra.mxu0 0
        %1637 = vmatpush.bf16.msra.mxu0 0
        %1638 = vmatpush.bf16.msra.mxu0 0
        %1639 = vmatpush.bf16.msra.mxu0 0
        %1640 = vmatpush.bf16.msra.mxu0 0
        %1641 = vmatpush.bf16.msra.mxu0 0
        %1642 = vmatpush.bf16.msra.mxu0 0
        %1643 = vmatpush.bf16.msra.mxu0 %v1368
        %1644 = vmatmul.bf16.gmra.mxu0 %v1326
        %v1645 = vpop.f32.mrf.mxu0
        %v1646 = vadd.f32 0.0, %v1645
        %v1647 = vpop.f32.mrf.mxu0
        %1648 = vdwg.mxu0
        %1649 = vmatpush.bf16.msra.mxu0 0
        %1650 = vmatpush.bf16.msra.mxu0 0
        %1651 = vmatpush.bf16.msra.mxu0 0
        %1652 = vmatpush.bf16.msra.mxu0 0
        %1653 = vmatpush.bf16.msra.mxu0 0
        %1654 = vmatpush.bf16.msra.mxu0 0
        %1655 = vmatpush.bf16.msra.mxu0 0
        %1656 = vmatpush.bf16.msra.mxu0 %v1370
        %1657 = vmatmul.bf16.gmra.mxu0 %v1326
        %v1658 = vpop.f32.mrf.mxu0
        %v1659 = vadd.f32 0.0, %v1658
        %v1660 = vpop.f32.mrf.mxu0
        %1661 = vdwg.mxu0
        %1662 = vmatpush.bf16.msra.mxu0 0
        %1663 = vmatpush.bf16.msra.mxu0 0
        %1664 = vmatpush.bf16.msra.mxu0 0
        %1665 = vmatpush.bf16.msra.mxu0 0
        %1666 = vmatpush.bf16.msra.mxu0 0
        %1667 = vmatpush.bf16.msra.mxu0 0
        %1668 = vmatpush.bf16.msra.mxu0 0
        %1669 = vmatpush.bf16.msra.mxu0 %v1372
        %1670 = vmatmul.bf16.gmra.mxu0 %v1326
        %v1671 = vpop.f32.mrf.mxu0
        %v1672 = vadd.f32 0.0, %v1671
        %v1673 = vpop.f32.mrf.mxu0
        %1674 = vdwg.mxu0
        %1675 = vmatpush.bf16.msra.mxu0 0
        %1676 = vmatpush.bf16.msra.mxu0 0
        %1677 = vmatpush.bf16.msra.mxu0 0
        %1678 = vmatpush.bf16.msra.mxu0 0
        %1679 = vmatpush.bf16.msra.mxu0 0
        %1680 = vmatpush.bf16.msra.mxu0 0
        %1681 = vmatpush.bf16.msra.mxu0 0
        %1682 = vmatpush.bf16.msra.mxu0 %v1374
        %1683 = vmatmul.bf16.gmra.mxu0 %v1326
        %v1684 = vpop.f32.mrf.mxu0
        %v1685 = vadd.f32 0.0, %v1684
        %v1686 = vpop.f32.mrf.mxu0
        %1687 = vdwg.mxu0
        %1688 = vrot.lane.b32.xlu0 %v1386, 17
        %v1689 = vpop.permute.xlu0 %1688
        %1690 = vrot.lane.b32.xlu0 %v1399, 17
        %v1691 = vpop.permute.xlu0 %1690
        %1692 = vrot.lane.b32.xlu0 %v1412, 17
        %v1693 = vpop.permute.xlu0 %1692
        %1694 = vrot.lane.b32.xlu0 %v1425, 17
        %v1695 = vpop.permute.xlu0 %1694
        %1696 = vrot.lane.b32.xlu0 %v1438, 17
        %v1697 = vpop.permute.xlu0 %1696
        %1698 = vrot.lane.b32.xlu0 %v1451, 17
        %v1699 = vpop.permute.xlu0 %1698
        %1700 = vrot.lane.b32.xlu0 %v1464, 17
        %v1701 = vpop.permute.xlu0 %1700
        %1702 = vrot.lane.b32.xlu0 %v1477, 17
        %v1703 = vpop.permute.xlu0 %1702
        %1704 = vrot.lane.b32.xlu0 %v1490, 17
        %v1705 = vpop.permute.xlu0 %1704
        %1706 = vrot.lane.b32.xlu0 %v1503, 17
        %v1707 = vpop.permute.xlu0 %1706
        %1708 = vrot.lane.b32.xlu0 %v1516, 17
        %v1709 = vpop.permute.xlu0 %1708
        %1710 = vrot.lane.b32.xlu0 %v1529, 17
        %v1711 = vpop.permute.xlu0 %1710
        %1712 = vrot.lane.b32.xlu0 %v1542, 17
        %v1713 = vpop.permute.xlu0 %1712
        %1714 = vrot.lane.b32.xlu0 %v1555, 17
        %v1715 = vpop.permute.xlu0 %1714
        %1716 = vrot.lane.b32.xlu0 %v1568, 17
        %v1717 = vpop.permute.xlu0 %1716
        %1718 = vrot.lane.b32.xlu0 %v1581, 17
        %v1719 = vpop.permute.xlu0 %1718
        %1720 = vrot.lane.b32.xlu0 %v1594, 17
        %v1721 = vpop.permute.xlu0 %1720
        %1722 = vrot.lane.b32.xlu0 %v1607, 17
        %v1723 = vpop.permute.xlu0 %1722
        %1724 = vrot.lane.b32.xlu0 %v1620, 17
        %v1725 = vpop.permute.xlu0 %1724
        %1726 = vrot.lane.b32.xlu0 %v1633, 17
        %v1727 = vpop.permute.xlu0 %1726
        %1728 = vrot.lane.b32.xlu0 %v1646, 17
        %v1729 = vpop.permute.xlu0 %1728
        %1730 = vrot.lane.b32.xlu0 %v1659, 17
        %v1731 = vpop.permute.xlu0 %1730
        %1732 = vrot.lane.b32.xlu0 %v1672, 17
        %v1733 = vpop.permute.xlu0 %1732
        %1734 = vrot.lane.b32.xlu0 %v1685, 17
        %v1735 = vpop.permute.xlu0 %1734
        %vm1736 = vcmp.lt.s32.totalorder %v753, 17
        %v1737 = vsel %vm1736, %v1733, %v1735
        %v1738 = vsel %vm1736, %v1731, %v1733
        %v1739 = vsel %vm1736, %v1729, %v1731
        %v1740 = vsel %vm1736, %v1727, %v1729
        %v1741 = vsel %vm1736, %v1725, %v1727
        %v1742 = vsel %vm1736, %v1723, %v1725
        %v1743 = vsel %vm1736, %v1721, %v1723
        %v1744 = vsel %vm1736, %v1719, %v1721
        %v1745 = vsel %vm1736, %v1717, %v1719
        %v1746 = vsel %vm1736, %v1715, %v1717
        %v1747 = vsel %vm1736, %v1713, %v1715
        %v1748 = vsel %vm1736, %v1711, %v1713
        %v1749 = vsel %vm1736, %v1709, %v1711
        %v1750 = vsel %vm1736, %v1707, %v1709
        %v1751 = vsel %vm1736, %v1705, %v1707
        %v1752 = vsel %vm1736, %v1703, %v1705
        %v1753 = vsel %vm1736, %v1701, %v1703
        %v1754 = vsel %vm1736, %v1699, %v1701
        %v1755 = vsel %vm1736, %v1697, %v1699
        %v1756 = vsel %vm1736, %v1695, %v1697
        %v1757 = vsel %vm1736, %v1693, %v1695
        %v1758 = vsel %vm1736, %v1691, %v1693
        %v1759 = vsel %vm1736, %v1689, %v1691
        %v1760 = vsel %vm1736, %v1735, %v1689
        %v1761 = vadd.f32 %v1270, %v1760
        %v1762 = vadd.f32 %v1271, %v1759
        %v1763 = vadd.f32 %v1272, %v1758
        %v1764 = vadd.f32 %v1273, %v1757
        %v1765 = vadd.f32 %v1274, %v1756
        %v1766 = vadd.f32 %v1275, %v1755
        %v1767 = vadd.f32 %v1276, %v1754
        %v1768 = vadd.f32 %v1277, %v1753
        %v1769 = vadd.f32 %v1278, %v1752
        %v1770 = vadd.f32 %v1279, %v1751
        %v1771 = vadd.f32 %v1280, %v1750
        %v1772 = vadd.f32 %v1281, %v1749
        %v1773 = vadd.f32 %v1282, %v1748
        %v1774 = vadd.f32 %v1283, %v1747
        %v1775 = vadd.f32 %v1284, %v1746
        %v1776 = vadd.f32 %v1285, %v1745
        %v1777 = vadd.f32 %v1286, %v1744
        %v1778 = vadd.f32 %v1287, %v1743
        %v1779 = vadd.f32 %v1288, %v1742
        %v1780 = vadd.f32 %v1289, %v1741
        %v1781 = vadd.f32 %v1290, %v1740
        %v1782 = vadd.f32 %v1291, %v1739
        %v1783 = vadd.f32 %v1292, %v1738
        %v1784 = vadd.f32 %v1293, %v1737
        %1785 = vst [vmem:[#allocation1] ss:$4 sm:$0xff] %v273
        %s1786 = scalar_lea.vmem [#allocation1], 32
        %1787 = vst [vmem:[%s1786] ss:$4 sm:$0xff] %v274
        %v1788 = vld.sshfl [vmem:[#allocation1] sm:$0xff pattern:$0x73625140]
        %v1789 = vld.sshfl [vmem:[#allocation1 + $0x8] sm:$0xff pattern:$0x73625140]
        %v1790 = vld.sshfl [vmem:[#allocation1 + $0x10] sm:$0xff pattern:$0x73625140]
        %v1791 = vld.sshfl [vmem:[#allocation1 + $0x18] sm:$0xff pattern:$0x73625140]
        %v1792 = vld.sshfl [vmem:[#allocation1 + $0x20] sm:$0xff pattern:$0x73625140]
        %v1793 = vld.sshfl [vmem:[#allocation1 + $0x28] sm:$0xff pattern:$0x73625140]
        %v1794 = vld.sshfl [vmem:[#allocation1 + $0x30] sm:$0xff pattern:$0x73625140]
        %v1795 = vld.sshfl [vmem:[#allocation1 + $0x38] sm:$0xff pattern:$0x73625140]
        %1796 = vst [vmem:[#allocation1] ss:$4 sm:$0xff] %v275
        %1797 = vst [vmem:[%s1786] ss:$4 sm:$0xff] %v276
        %v1798 = vld.sshfl [vmem:[#allocation1] sm:$0xff pattern:$0x73625140]
        %v1799 = vld.sshfl [vmem:[#allocation1 + $0x8] sm:$0xff pattern:$0x73625140]
        %v1800 = vld.sshfl [vmem:[#allocation1 + $0x10] sm:$0xff pattern:$0x73625140]
        %v1801 = vld.sshfl [vmem:[#allocation1 + $0x18] sm:$0xff pattern:$0x73625140]
        %v1802 = vld.sshfl [vmem:[#allocation1 + $0x20] sm:$0xff pattern:$0x73625140]
        %v1803 = vld.sshfl [vmem:[#allocation1 + $0x28] sm:$0xff pattern:$0x73625140]
        %v1804 = vld.sshfl [vmem:[#allocation1 + $0x30] sm:$0xff pattern:$0x73625140]
        %v1805 = vld.sshfl [vmem:[#allocation1 + $0x38] sm:$0xff pattern:$0x73625140]
        %1806 = vst [vmem:[#allocation1] ss:$4 sm:$0xff] %v277
        %1807 = vst [vmem:[%s1786] ss:$4 sm:$0xff] %v278
        %v1808 = vld.sshfl [vmem:[#allocation1] sm:$0xff pattern:$0x73625140]
        %v1809 = vld.sshfl [vmem:[#allocation1 + $0x8] sm:$0xff pattern:$0x73625140]
        %v1810 = vld.sshfl [vmem:[#allocation1 + $0x10] sm:$0xff pattern:$0x73625140]
        %v1811 = vld.sshfl [vmem:[#allocation1 + $0x18] sm:$0xff pattern:$0x73625140]
        %v1812 = vld.sshfl [vmem:[#allocation1 + $0x20] sm:$0xff pattern:$0x73625140]
        %v1813 = vld.sshfl [vmem:[#allocation1 + $0x28] sm:$0xff pattern:$0x73625140]
        %v1814 = vld.sshfl [vmem:[#allocation1 + $0x30] sm:$0xff pattern:$0x73625140]
        %v1815 = vld.sshfl [vmem:[#allocation1 + $0x38] sm:$0xff pattern:$0x73625140]
        %v1817 = vsel %vm339, %v282, 0
        %v1819 = vsel %vm343, %v1788, 0
        %v1821 = vsel %vm343, %v1789, 0
        %v1823 = vsel %vm343, %v1790, 0
        %v1825 = vsel %vm343, %v1791, 0
        %v1827 = vsel %vm343, %v1792, 0
        %v1829 = vsel %vm343, %v1793, 0
        %v1831 = vsel %vm343, %v1794, 0
        %v1833 = vsel %vm343, %v1795, 0
        %v1835 = vsel %vm343, %v1798, 0
        %v1837 = vsel %vm343, %v1799, 0
        %v1839 = vsel %vm343, %v1800, 0
        %v1841 = vsel %vm343, %v1801, 0
        %v1843 = vsel %vm343, %v1802, 0
        %v1845 = vsel %vm343, %v1803, 0
        %v1847 = vsel %vm343, %v1804, 0
        %v1849 = vsel %vm343, %v1805, 0
        %v1851 = vsel %vm343, %v1808, 0
        %v1853 = vsel %vm343, %v1809, 0
        %v1855 = vsel %vm343, %v1810, 0
        %v1857 = vsel %vm343, %v1811, 0
        %v1859 = vsel %vm343, %v1812, 0
        %v1861 = vsel %vm343, %v1813, 0
        %v1863 = vsel %vm343, %v1814, 0
        %v1865 = vsel %vm343, %v1815, 0
        %1867 = vmatpush.bf16.msra.mxu0 0
        %1868 = vmatpush.bf16.msra.mxu0 0
        %1869 = vmatpush.bf16.msra.mxu0 0
        %1870 = vmatpush.bf16.msra.mxu0 0
        %1871 = vmatpush.bf16.msra.mxu0 0
        %1872 = vmatpush.bf16.msra.mxu0 0
        %1873 = vmatpush.bf16.msra.mxu0 0
        %1874 = vmatpush.bf16.msra.mxu0 %v1819
        %1875 = vmatmul.bf16.gmra.mxu0 %v1817
        %v1876 = vpop.f32.mrf.mxu0
        %v1877 = vadd.f32 0.0, %v1876
        %v1878 = vpop.f32.mrf.mxu0
        %1879 = vdwg.mxu0
        %1880 = vmatpush.bf16.msra.mxu0 0
        %1881 = vmatpush.bf16.msra.mxu0 0
        %1882 = vmatpush.bf16.msra.mxu0 0
        %1883 = vmatpush.bf16.msra.mxu0 0
        %1884 = vmatpush.bf16.msra.mxu0 0
        %1885 = vmatpush.bf16.msra.mxu0 0
        %1886 = vmatpush.bf16.msra.mxu0 0
        %1887 = vmatpush.bf16.msra.mxu0 %v1821
        %1888 = vmatmul.bf16.gmra.mxu0 %v1817
        %v1889 = vpop.f32.mrf.mxu0
        %v1890 = vadd.f32 0.0, %v1889
        %v1891 = vpop.f32.mrf.mxu0
        %1892 = vdwg.mxu0
        %1893 = vmatpush.bf16.msra.mxu0 0
        %1894 = vmatpush.bf16.msra.mxu0 0
        %1895 = vmatpush.bf16.msra.mxu0 0
        %1896 = vmatpush.bf16.msra.mxu0 0
        %1897 = vmatpush.bf16.msra.mxu0 0
        %1898 = vmatpush.bf16.msra.mxu0 0
        %1899 = vmatpush.bf16.msra.mxu0 0
        %1900 = vmatpush.bf16.msra.mxu0 %v1823
        %1901 = vmatmul.bf16.gmra.mxu0 %v1817
        %v1902 = vpop.f32.mrf.mxu0
        %v1903 = vadd.f32 0.0, %v1902
        %v1904 = vpop.f32.mrf.mxu0
        %1905 = vdwg.mxu0
        %1906 = vmatpush.bf16.msra.mxu0 0
        %1907 = vmatpush.bf16.msra.mxu0 0
        %1908 = vmatpush.bf16.msra.mxu0 0
        %1909 = vmatpush.bf16.msra.mxu0 0
        %1910 = vmatpush.bf16.msra.mxu0 0
        %1911 = vmatpush.bf16.msra.mxu0 0
        %1912 = vmatpush.bf16.msra.mxu0 0
        %1913 = vmatpush.bf16.msra.mxu0 %v1825
        %1914 = vmatmul.bf16.gmra.mxu0 %v1817
        %v1915 = vpop.f32.mrf.mxu0
        %v1916 = vadd.f32 0.0, %v1915
        %v1917 = vpop.f32.mrf.mxu0
        %1918 = vdwg.mxu0
        %1919 = vmatpush.bf16.msra.mxu0 0
        %1920 = vmatpush.bf16.msra.mxu0 0
        %1921 = vmatpush.bf16.msra.mxu0 0
        %1922 = vmatpush.bf16.msra.mxu0 0
        %1923 = vmatpush.bf16.msra.mxu0 0
        %1924 = vmatpush.bf16.msra.mxu0 0
        %1925 = vmatpush.bf16.msra.mxu0 0
        %1926 = vmatpush.bf16.msra.mxu0 %v1827
        %1927 = vmatmul.bf16.gmra.mxu0 %v1817
        %v1928 = vpop.f32.mrf.mxu0
        %v1929 = vadd.f32 0.0, %v1928
        %v1930 = vpop.f32.mrf.mxu0
        %1931 = vdwg.mxu0
        %1932 = vmatpush.bf16.msra.mxu0 0
        %1933 = vmatpush.bf16.msra.mxu0 0
        %1934 = vmatpush.bf16.msra.mxu0 0
        %1935 = vmatpush.bf16.msra.mxu0 0
        %1936 = vmatpush.bf16.msra.mxu0 0
        %1937 = vmatpush.bf16.msra.mxu0 0
        %1938 = vmatpush.bf16.msra.mxu0 0
        %1939 = vmatpush.bf16.msra.mxu0 %v1829
        %1940 = vmatmul.bf16.gmra.mxu0 %v1817
        %v1941 = vpop.f32.mrf.mxu0
        %v1942 = vadd.f32 0.0, %v1941
        %v1943 = vpop.f32.mrf.mxu0
        %1944 = vdwg.mxu0
        %1945 = vmatpush.bf16.msra.mxu0 0
        %1946 = vmatpush.bf16.msra.mxu0 0
        %1947 = vmatpush.bf16.msra.mxu0 0
        %1948 = vmatpush.bf16.msra.mxu0 0
        %1949 = vmatpush.bf16.msra.mxu0 0
        %1950 = vmatpush.bf16.msra.mxu0 0
        %1951 = vmatpush.bf16.msra.mxu0 0
        %1952 = vmatpush.bf16.msra.mxu0 %v1831
        %1953 = vmatmul.bf16.gmra.mxu0 %v1817
        %v1954 = vpop.f32.mrf.mxu0
        %v1955 = vadd.f32 0.0, %v1954
        %v1956 = vpop.f32.mrf.mxu0
        %1957 = vdwg.mxu0
        %1958 = vmatpush.bf16.msra.mxu0 0
        %1959 = vmatpush.bf16.msra.mxu0 0
        %1960 = vmatpush.bf16.msra.mxu0 0
        %1961 = vmatpush.bf16.msra.mxu0 0
        %1962 = vmatpush.bf16.msra.mxu0 0
        %1963 = vmatpush.bf16.msra.mxu0 0
        %1964 = vmatpush.bf16.msra.mxu0 0
        %1965 = vmatpush.bf16.msra.mxu0 %v1833
        %1966 = vmatmul.bf16.gmra.mxu0 %v1817
        %v1967 = vpop.f32.mrf.mxu0
        %v1968 = vadd.f32 0.0, %v1967
        %v1969 = vpop.f32.mrf.mxu0
        %1970 = vdwg.mxu0
        %1971 = vmatpush.bf16.msra.mxu0 0
        %1972 = vmatpush.bf16.msra.mxu0 0
        %1973 = vmatpush.bf16.msra.mxu0 0
        %1974 = vmatpush.bf16.msra.mxu0 0
        %1975 = vmatpush.bf16.msra.mxu0 0
        %1976 = vmatpush.bf16.msra.mxu0 0
        %1977 = vmatpush.bf16.msra.mxu0 0
        %1978 = vmatpush.bf16.msra.mxu0 %v1835
        %1979 = vmatmul.bf16.gmra.mxu0 %v1817
        %v1980 = vpop.f32.mrf.mxu0
        %v1981 = vadd.f32 0.0, %v1980
        %v1982 = vpop.f32.mrf.mxu0
        %1983 = vdwg.mxu0
        %1984 = vmatpush.bf16.msra.mxu0 0
        %1985 = vmatpush.bf16.msra.mxu0 0
        %1986 = vmatpush.bf16.msra.mxu0 0
        %1987 = vmatpush.bf16.msra.mxu0 0
        %1988 = vmatpush.bf16.msra.mxu0 0
        %1989 = vmatpush.bf16.msra.mxu0 0
        %1990 = vmatpush.bf16.msra.mxu0 0
        %1991 = vmatpush.bf16.msra.mxu0 %v1837
        %1992 = vmatmul.bf16.gmra.mxu0 %v1817
        %v1993 = vpop.f32.mrf.mxu0
        %v1994 = vadd.f32 0.0, %v1993
        %v1995 = vpop.f32.mrf.mxu0
        %1996 = vdwg.mxu0
        %1997 = vmatpush.bf16.msra.mxu0 0
        %1998 = vmatpush.bf16.msra.mxu0 0
        %1999 = vmatpush.bf16.msra.mxu0 0
        %2000 = vmatpush.bf16.msra.mxu0 0
        %2001 = vmatpush.bf16.msra.mxu0 0
        %2002 = vmatpush.bf16.msra.mxu0 0
        %2003 = vmatpush.bf16.msra.mxu0 0
        %2004 = vmatpush.bf16.msra.mxu0 %v1839
        %2005 = vmatmul.bf16.gmra.mxu0 %v1817
        %v2006 = vpop.f32.mrf.mxu0
        %v2007 = vadd.f32 0.0, %v2006
        %v2008 = vpop.f32.mrf.mxu0
        %2009 = vdwg.mxu0
        %2010 = vmatpush.bf16.msra.mxu0 0
        %2011 = vmatpush.bf16.msra.mxu0 0
        %2012 = vmatpush.bf16.msra.mxu0 0
        %2013 = vmatpush.bf16.msra.mxu0 0
        %2014 = vmatpush.bf16.msra.mxu0 0
        %2015 = vmatpush.bf16.msra.mxu0 0
        %2016 = vmatpush.bf16.msra.mxu0 0
        %2017 = vmatpush.bf16.msra.mxu0 %v1841
        %2018 = vmatmul.bf16.gmra.mxu0 %v1817
        %v2019 = vpop.f32.mrf.mxu0
        %v2020 = vadd.f32 0.0, %v2019
        %v2021 = vpop.f32.mrf.mxu0
        %2022 = vdwg.mxu0
        %2023 = vmatpush.bf16.msra.mxu0 0
        %2024 = vmatpush.bf16.msra.mxu0 0
        %2025 = vmatpush.bf16.msra.mxu0 0
        %2026 = vmatpush.bf16.msra.mxu0 0
        %2027 = vmatpush.bf16.msra.mxu0 0
        %2028 = vmatpush.bf16.msra.mxu0 0
        %2029 = vmatpush.bf16.msra.mxu0 0
        %2030 = vmatpush.bf16.msra.mxu0 %v1843
        %2031 = vmatmul.bf16.gmra.mxu0 %v1817
        %v2032 = vpop.f32.mrf.mxu0
        %v2033 = vadd.f32 0.0, %v2032
        %v2034 = vpop.f32.mrf.mxu0
        %2035 = vdwg.mxu0
        %2036 = vmatpush.bf16.msra.mxu0 0
        %2037 = vmatpush.bf16.msra.mxu0 0
        %2038 = vmatpush.bf16.msra.mxu0 0
        %2039 = vmatpush.bf16.msra.mxu0 0
        %2040 = vmatpush.bf16.msra.mxu0 0
        %2041 = vmatpush.bf16.msra.mxu0 0
        %2042 = vmatpush.bf16.msra.mxu0 0
        %2043 = vmatpush.bf16.msra.mxu0 %v1845
        %2044 = vmatmul.bf16.gmra.mxu0 %v1817
        %v2045 = vpop.f32.mrf.mxu0
        %v2046 = vadd.f32 0.0, %v2045
        %v2047 = vpop.f32.mrf.mxu0
        %2048 = vdwg.mxu0
        %2049 = vmatpush.bf16.msra.mxu0 0
        %2050 = vmatpush.bf16.msra.mxu0 0
        %2051 = vmatpush.bf16.msra.mxu0 0
        %2052 = vmatpush.bf16.msra.mxu0 0
        %2053 = vmatpush.bf16.msra.mxu0 0
        %2054 = vmatpush.bf16.msra.mxu0 0
        %2055 = vmatpush.bf16.msra.mxu0 0
        %2056 = vmatpush.bf16.msra.mxu0 %v1847
        %2057 = vmatmul.bf16.gmra.mxu0 %v1817
        %v2058 = vpop.f32.mrf.mxu0
        %v2059 = vadd.f32 0.0, %v2058
        %v2060 = vpop.f32.mrf.mxu0
        %2061 = vdwg.mxu0
        %2062 = vmatpush.bf16.msra.mxu0 0
        %2063 = vmatpush.bf16.msra.mxu0 0
        %2064 = vmatpush.bf16.msra.mxu0 0
        %2065 = vmatpush.bf16.msra.mxu0 0
        %2066 = vmatpush.bf16.msra.mxu0 0
        %2067 = vmatpush.bf16.msra.mxu0 0
        %2068 = vmatpush.bf16.msra.mxu0 0
        %2069 = vmatpush.bf16.msra.mxu0 %v1849
        %2070 = vmatmul.bf16.gmra.mxu0 %v1817
        %v2071 = vpop.f32.mrf.mxu0
        %v2072 = vadd.f32 0.0, %v2071
        %v2073 = vpop.f32.mrf.mxu0
        %2074 = vdwg.mxu0
        %2075 = vmatpush.bf16.msra.mxu0 0
        %2076 = vmatpush.bf16.msra.mxu0 0
        %2077 = vmatpush.bf16.msra.mxu0 0
        %2078 = vmatpush.bf16.msra.mxu0 0
        %2079 = vmatpush.bf16.msra.mxu0 0
        %2080 = vmatpush.bf16.msra.mxu0 0
        %2081 = vmatpush.bf16.msra.mxu0 0
        %2082 = vmatpush.bf16.msra.mxu0 %v1851
        %2083 = vmatmul.bf16.gmra.mxu0 %v1817
        %v2084 = vpop.f32.mrf.mxu0
        %v2085 = vadd.f32 0.0, %v2084
        %v2086 = vpop.f32.mrf.mxu0
        %2087 = vdwg.mxu0
        %2088 = vmatpush.bf16.msra.mxu0 0
        %2089 = vmatpush.bf16.msra.mxu0 0
        %2090 = vmatpush.bf16.msra.mxu0 0
        %2091 = vmatpush.bf16.msra.mxu0 0
        %2092 = vmatpush.bf16.msra.mxu0 0
        %2093 = vmatpush.bf16.msra.mxu0 0
        %2094 = vmatpush.bf16.msra.mxu0 0
        %2095 = vmatpush.bf16.msra.mxu0 %v1853
        %2096 = vmatmul.bf16.gmra.mxu0 %v1817
        %v2097 = vpop.f32.mrf.mxu0
        %v2098 = vadd.f32 0.0, %v2097
        %v2099 = vpop.f32.mrf.mxu0
        %2100 = vdwg.mxu0
        %2101 = vmatpush.bf16.msra.mxu0 0
        %2102 = vmatpush.bf16.msra.mxu0 0
        %2103 = vmatpush.bf16.msra.mxu0 0
        %2104 = vmatpush.bf16.msra.mxu0 0
        %2105 = vmatpush.bf16.msra.mxu0 0
        %2106 = vmatpush.bf16.msra.mxu0 0
        %2107 = vmatpush.bf16.msra.mxu0 0
        %2108 = vmatpush.bf16.msra.mxu0 %v1855
        %2109 = vmatmul.bf16.gmra.mxu0 %v1817
        %v2110 = vpop.f32.mrf.mxu0
        %v2111 = vadd.f32 0.0, %v2110
        %v2112 = vpop.f32.mrf.mxu0
        %2113 = vdwg.mxu0
        %2114 = vmatpush.bf16.msra.mxu0 0
        %2115 = vmatpush.bf16.msra.mxu0 0
        %2116 = vmatpush.bf16.msra.mxu0 0
        %2117 = vmatpush.bf16.msra.mxu0 0
        %2118 = vmatpush.bf16.msra.mxu0 0
        %2119 = vmatpush.bf16.msra.mxu0 0
        %2120 = vmatpush.bf16.msra.mxu0 0
        %2121 = vmatpush.bf16.msra.mxu0 %v1857
        %2122 = vmatmul.bf16.gmra.mxu0 %v1817
        %v2123 = vpop.f32.mrf.mxu0
        %v2124 = vadd.f32 0.0, %v2123
        %v2125 = vpop.f32.mrf.mxu0
        %2126 = vdwg.mxu0
        %2127 = vmatpush.bf16.msra.mxu0 0
        %2128 = vmatpush.bf16.msra.mxu0 0
        %2129 = vmatpush.bf16.msra.mxu0 0
        %2130 = vmatpush.bf16.msra.mxu0 0
        %2131 = vmatpush.bf16.msra.mxu0 0
        %2132 = vmatpush.bf16.msra.mxu0 0
        %2133 = vmatpush.bf16.msra.mxu0 0
        %2134 = vmatpush.bf16.msra.mxu0 %v1859
        %2135 = vmatmul.bf16.gmra.mxu0 %v1817
        %v2136 = vpop.f32.mrf.mxu0
        %v2137 = vadd.f32 0.0, %v2136
        %v2138 = vpop.f32.mrf.mxu0
        %2139 = vdwg.mxu0
        %2140 = vmatpush.bf16.msra.mxu0 0
        %2141 = vmatpush.bf16.msra.mxu0 0
        %2142 = vmatpush.bf16.msra.mxu0 0
        %2143 = vmatpush.bf16.msra.mxu0 0
        %2144 = vmatpush.bf16.msra.mxu0 0
        %2145 = vmatpush.bf16.msra.mxu0 0
        %2146 = vmatpush.bf16.msra.mxu0 0
        %2147 = vmatpush.bf16.msra.mxu0 %v1861
        %2148 = vmatmul.bf16.gmra.mxu0 %v1817
        %v2149 = vpop.f32.mrf.mxu0
        %v2150 = vadd.f32 0.0, %v2149
        %v2151 = vpop.f32.mrf.mxu0
        %2152 = vdwg.mxu0
        %2153 = vmatpush.bf16.msra.mxu0 0
        %2154 = vmatpush.bf16.msra.mxu0 0
        %2155 = vmatpush.bf16.msra.mxu0 0
        %2156 = vmatpush.bf16.msra.mxu0 0
        %2157 = vmatpush.bf16.msra.mxu0 0
        %2158 = vmatpush.bf16.msra.mxu0 0
        %2159 = vmatpush.bf16.msra.mxu0 0
        %2160 = vmatpush.bf16.msra.mxu0 %v1863
        %2161 = vmatmul.bf16.gmra.mxu0 %v1817
        %v2162 = vpop.f32.mrf.mxu0
        %v2163 = vadd.f32 0.0, %v2162
        %v2164 = vpop.f32.mrf.mxu0
        %2165 = vdwg.mxu0
        %2166 = vmatpush.bf16.msra.mxu0 0
        %2167 = vmatpush.bf16.msra.mxu0 0
        %2168 = vmatpush.bf16.msra.mxu0 0
        %2169 = vmatpush.bf16.msra.mxu0 0
        %2170 = vmatpush.bf16.msra.mxu0 0
        %2171 = vmatpush.bf16.msra.mxu0 0
        %2172 = vmatpush.bf16.msra.mxu0 0
        %2173 = vmatpush.bf16.msra.mxu0 %v1865
        %2174 = vmatmul.bf16.gmra.mxu0 %v1817
        %v2175 = vpop.f32.mrf.mxu0
        %v2176 = vadd.f32 0.0, %v2175
        %v2177 = vpop.f32.mrf.mxu0
        %2178 = vdwg.mxu0
        %2179 = vrot.lane.b32.xlu0 %v1877, 1
        %v2180 = vpop.permute.xlu0 %2179
        %2181 = vrot.lane.b32.xlu0 %v1890, 1
        %v2182 = vpop.permute.xlu0 %2181
        %2183 = vrot.lane.b32.xlu0 %v1903, 1
        %v2184 = vpop.permute.xlu0 %2183
        %2185 = vrot.lane.b32.xlu0 %v1916, 1
        %v2186 = vpop.permute.xlu0 %2185
        %2187 = vrot.lane.b32.xlu0 %v1929, 1
        %v2188 = vpop.permute.xlu0 %2187
        %2189 = vrot.lane.b32.xlu0 %v1942, 1
        %v2190 = vpop.permute.xlu0 %2189
        %2191 = vrot.lane.b32.xlu0 %v1955, 1
        %v2192 = vpop.permute.xlu0 %2191
        %2193 = vrot.lane.b32.xlu0 %v1968, 1
        %v2194 = vpop.permute.xlu0 %2193
        %2195 = vrot.lane.b32.xlu0 %v1981, 1
        %v2196 = vpop.permute.xlu0 %2195
        %2197 = vrot.lane.b32.xlu0 %v1994, 1
        %v2198 = vpop.permute.xlu0 %2197
        %2199 = vrot.lane.b32.xlu0 %v2007, 1
        %v2200 = vpop.permute.xlu0 %2199
        %2201 = vrot.lane.b32.xlu0 %v2020, 1
        %v2202 = vpop.permute.xlu0 %2201
        %2203 = vrot.lane.b32.xlu0 %v2033, 1
        %v2204 = vpop.permute.xlu0 %2203
        %2205 = vrot.lane.b32.xlu0 %v2046, 1
        %v2206 = vpop.permute.xlu0 %2205
        %2207 = vrot.lane.b32.xlu0 %v2059, 1
        %v2208 = vpop.permute.xlu0 %2207
        %2209 = vrot.lane.b32.xlu0 %v2072, 1
        %v2210 = vpop.permute.xlu0 %2209
        %2211 = vrot.lane.b32.xlu0 %v2085, 1
        %v2212 = vpop.permute.xlu0 %2211
        %2213 = vrot.lane.b32.xlu0 %v2098, 1
        %v2214 = vpop.permute.xlu0 %2213
        %2215 = vrot.lane.b32.xlu0 %v2111, 1
        %v2216 = vpop.permute.xlu0 %2215
        %2217 = vrot.lane.b32.xlu0 %v2124, 1
        %v2218 = vpop.permute.xlu0 %2217
        %2219 = vrot.lane.b32.xlu0 %v2137, 1
        %v2220 = vpop.permute.xlu0 %2219
        %2221 = vrot.lane.b32.xlu0 %v2150, 1
        %v2222 = vpop.permute.xlu0 %2221
        %2223 = vrot.lane.b32.xlu0 %v2163, 1
        %v2224 = vpop.permute.xlu0 %2223
        %2225 = vrot.lane.b32.xlu0 %v2176, 1
        %v2226 = vpop.permute.xlu0 %2225
        %vm2227 = vcmp.lt.s32.totalorder %v753, 1
        %v2228 = vsel %vm2227, %v2224, %v2226
        %v2229 = vsel %vm2227, %v2222, %v2224
        %v2230 = vsel %vm2227, %v2220, %v2222
        %v2231 = vsel %vm2227, %v2218, %v2220
        %v2232 = vsel %vm2227, %v2216, %v2218
        %v2233 = vsel %vm2227, %v2214, %v2216
        %v2234 = vsel %vm2227, %v2212, %v2214
        %v2235 = vsel %vm2227, %v2210, %v2212
        %v2236 = vsel %vm2227, %v2208, %v2210
        %v2237 = vsel %vm2227, %v2206, %v2208
        %v2238 = vsel %vm2227, %v2204, %v2206
        %v2239 = vsel %vm2227, %v2202, %v2204
        %v2240 = vsel %vm2227, %v2200, %v2202
        %v2241 = vsel %vm2227, %v2198, %v2200
        %v2242 = vsel %vm2227, %v2196, %v2198
        %v2243 = vsel %vm2227, %v2194, %v2196
        %v2244 = vsel %vm2227, %v2192, %v2194
        %v2245 = vsel %vm2227, %v2190, %v2192
        %v2246 = vsel %vm2227, %v2188, %v2190
        %v2247 = vsel %vm2227, %v2186, %v2188
        %v2248 = vsel %vm2227, %v2184, %v2186
        %v2249 = vsel %vm2227, %v2182, %v2184
        %v2250 = vsel %vm2227, %v2180, %v2182
        %v2251 = vsel %vm2227, %v2226, %v2180
        %v2252 = vadd.f32 %v1761, %v2251
        %v2253 = vadd.f32 %v1762, %v2250
        %v2254 = vadd.f32 %v1763, %v2249
        %v2255 = vadd.f32 %v1764, %v2248
        %v2256 = vadd.f32 %v1765, %v2247
        %v2257 = vadd.f32 %v1766, %v2246
        %v2258 = vadd.f32 %v1767, %v2245
        %v2259 = vadd.f32 %v1768, %v2244
        %v2260 = vadd.f32 %v1769, %v2243
        %v2261 = vadd.f32 %v1770, %v2242
        %v2262 = vadd.f32 %v1771, %v2241
        %v2263 = vadd.f32 %v1772, %v2240
        %v2264 = vadd.f32 %v1773, %v2239
        %v2265 = vadd.f32 %v1774, %v2238
        %v2266 = vadd.f32 %v1775, %v2237
        %v2267 = vadd.f32 %v1776, %v2236
        %v2268 = vadd.f32 %v1777, %v2235
        %v2269 = vadd.f32 %v1778, %v2234
        %v2270 = vadd.f32 %v1779, %v2233
        %v2271 = vadd.f32 %v1780, %v2232
        %v2272 = vadd.f32 %v1781, %v2231
        %v2273 = vadd.f32 %v1782, %v2230
        %v2274 = vadd.f32 %v1783, %v2229
        %v2275 = vadd.f32 %v1784, %v2228
        %2276 = vst [vmem:[#allocation1] ss:$4 sm:$0xff] %v273
        %s2277 = scalar_lea.vmem [#allocation1], 32
        %2278 = vst [vmem:[%s2277] ss:$4 sm:$0xff] %v274
        %v2279 = vld.sshfl [vmem:[#allocation1] sm:$0xff pattern:$0x73625140]
        %v2280 = vld.sshfl [vmem:[#allocation1 + $0x8] sm:$0xff pattern:$0x73625140]
        %v2281 = vld.sshfl [vmem:[#allocation1 + $0x10] sm:$0xff pattern:$0x73625140]
        %v2282 = vld.sshfl [vmem:[#allocation1 + $0x18] sm:$0xff pattern:$0x73625140]
        %v2283 = vld.sshfl [vmem:[#allocation1 + $0x20] sm:$0xff pattern:$0x73625140]
        %v2284 = vld.sshfl [vmem:[#allocation1 + $0x28] sm:$0xff pattern:$0x73625140]
        %v2285 = vld.sshfl [vmem:[#allocation1 + $0x30] sm:$0xff pattern:$0x73625140]
        %v2286 = vld.sshfl [vmem:[#allocation1 + $0x38] sm:$0xff pattern:$0x73625140]
        %2287 = vst [vmem:[#allocation1] ss:$4 sm:$0xff] %v275
        %2288 = vst [vmem:[%s2277] ss:$4 sm:$0xff] %v276
        %v2289 = vld.sshfl [vmem:[#allocation1] sm:$0xff pattern:$0x73625140]
        %v2290 = vld.sshfl [vmem:[#allocation1 + $0x8] sm:$0xff pattern:$0x73625140]
        %v2291 = vld.sshfl [vmem:[#allocation1 + $0x10] sm:$0xff pattern:$0x73625140]
        %v2292 = vld.sshfl [vmem:[#allocation1 + $0x18] sm:$0xff pattern:$0x73625140]
        %v2293 = vld.sshfl [vmem:[#allocation1 + $0x20] sm:$0xff pattern:$0x73625140]
        %v2294 = vld.sshfl [vmem:[#allocation1 + $0x28] sm:$0xff pattern:$0x73625140]
        %v2295 = vld.sshfl [vmem:[#allocation1 + $0x30] sm:$0xff pattern:$0x73625140]
        %v2296 = vld.sshfl [vmem:[#allocation1 + $0x38] sm:$0xff pattern:$0x73625140]
        %2297 = vst [vmem:[#allocation1] ss:$4 sm:$0xff] %v277
        %2298 = vst [vmem:[%s2277] ss:$4 sm:$0xff] %v278
        %v2299 = vld.sshfl [vmem:[#allocation1] sm:$0xff pattern:$0x73625140]
        %v2300 = vld.sshfl [vmem:[#allocation1 + $0x8] sm:$0xff pattern:$0x73625140]
        %v2301 = vld.sshfl [vmem:[#allocation1 + $0x10] sm:$0xff pattern:$0x73625140]
        %v2302 = vld.sshfl [vmem:[#allocation1 + $0x18] sm:$0xff pattern:$0x73625140]
        %v2303 = vld.sshfl [vmem:[#allocation1 + $0x20] sm:$0xff pattern:$0x73625140]
        %v2304 = vld.sshfl [vmem:[#allocation1 + $0x28] sm:$0xff pattern:$0x73625140]
        %v2305 = vld.sshfl [vmem:[#allocation1 + $0x30] sm:$0xff pattern:$0x73625140]
        %v2306 = vld.sshfl [vmem:[#allocation1 + $0x38] sm:$0xff pattern:$0x73625140]
        %v2308 = vsel %vm339, %v283, 0
        %v2310 = vsel %vm343, %v2279, 0
        %v2312 = vsel %vm343, %v2280, 0
        %v2314 = vsel %vm343, %v2281, 0
        %v2316 = vsel %vm343, %v2282, 0
        %v2318 = vsel %vm343, %v2283, 0
        %v2320 = vsel %vm343, %v2284, 0
        %v2322 = vsel %vm343, %v2285, 0
        %v2324 = vsel %vm343, %v2286, 0
        %v2326 = vsel %vm343, %v2289, 0
        %v2328 = vsel %vm343, %v2290, 0
        %v2330 = vsel %vm343, %v2291, 0
        %v2332 = vsel %vm343, %v2292, 0
        %v2334 = vsel %vm343, %v2293, 0
        %v2336 = vsel %vm343, %v2294, 0
        %v2338 = vsel %vm343, %v2295, 0
        %v2340 = vsel %vm343, %v2296, 0
        %v2342 = vsel %vm343, %v2299, 0
        %v2344 = vsel %vm343, %v2300, 0
        %v2346 = vsel %vm343, %v2301, 0
        %v2348 = vsel %vm343, %v2302, 0
        %v2350 = vsel %vm343, %v2303, 0
        %v2352 = vsel %vm343, %v2304, 0
        %v2354 = vsel %vm343, %v2305, 0
        %v2356 = vsel %vm343, %v2306, 0
        %2358 = vmatpush.bf16.msra.mxu0 0
        %2359 = vmatpush.bf16.msra.mxu0 0
        %2360 = vmatpush.bf16.msra.mxu0 0
        %2361 = vmatpush.bf16.msra.mxu0 0
        %2362 = vmatpush.bf16.msra.mxu0 0
        %2363 = vmatpush.bf16.msra.mxu0 0
        %2364 = vmatpush.bf16.msra.mxu0 0
        %2365 = vmatpush.bf16.msra.mxu0 %v2310
        %2366 = vmatmul.bf16.gmra.mxu0 %v2308
        %v2367 = vpop.f32.mrf.mxu0
        %v2368 = vadd.f32 0.0, %v2367
        %v2369 = vpop.f32.mrf.mxu0
        %2370 = vdwg.mxu0
        %2371 = vmatpush.bf16.msra.mxu0 0
        %2372 = vmatpush.bf16.msra.mxu0 0
        %2373 = vmatpush.bf16.msra.mxu0 0
        %2374 = vmatpush.bf16.msra.mxu0 0
        %2375 = vmatpush.bf16.msra.mxu0 0
        %2376 = vmatpush.bf16.msra.mxu0 0
        %2377 = vmatpush.bf16.msra.mxu0 0
        %2378 = vmatpush.bf16.msra.mxu0 %v2312
        %2379 = vmatmul.bf16.gmra.mxu0 %v2308
        %v2380 = vpop.f32.mrf.mxu0
        %v2381 = vadd.f32 0.0, %v2380
        %v2382 = vpop.f32.mrf.mxu0
        %2383 = vdwg.mxu0
        %2384 = vmatpush.bf16.msra.mxu0 0
        %2385 = vmatpush.bf16.msra.mxu0 0
        %2386 = vmatpush.bf16.msra.mxu0 0
        %2387 = vmatpush.bf16.msra.mxu0 0
        %2388 = vmatpush.bf16.msra.mxu0 0
        %2389 = vmatpush.bf16.msra.mxu0 0
        %2390 = vmatpush.bf16.msra.mxu0 0
        %2391 = vmatpush.bf16.msra.mxu0 %v2314
        %2392 = vmatmul.bf16.gmra.mxu0 %v2308
        %v2393 = vpop.f32.mrf.mxu0
        %v2394 = vadd.f32 0.0, %v2393
        %v2395 = vpop.f32.mrf.mxu0
        %2396 = vdwg.mxu0
        %2397 = vmatpush.bf16.msra.mxu0 0
        %2398 = vmatpush.bf16.msra.mxu0 0
        %2399 = vmatpush.bf16.msra.mxu0 0
        %2400 = vmatpush.bf16.msra.mxu0 0
        %2401 = vmatpush.bf16.msra.mxu0 0
        %2402 = vmatpush.bf16.msra.mxu0 0
        %2403 = vmatpush.bf16.msra.mxu0 0
        %2404 = vmatpush.bf16.msra.mxu0 %v2316
        %2405 = vmatmul.bf16.gmra.mxu0 %v2308
        %v2406 = vpop.f32.mrf.mxu0
        %v2407 = vadd.f32 0.0, %v2406
        %v2408 = vpop.f32.mrf.mxu0
        %2409 = vdwg.mxu0
        %2410 = vmatpush.bf16.msra.mxu0 0
        %2411 = vmatpush.bf16.msra.mxu0 0
        %2412 = vmatpush.bf16.msra.mxu0 0
        %2413 = vmatpush.bf16.msra.mxu0 0
        %2414 = vmatpush.bf16.msra.mxu0 0
        %2415 = vmatpush.bf16.msra.mxu0 0
        %2416 = vmatpush.bf16.msra.mxu0 0
        %2417 = vmatpush.bf16.msra.mxu0 %v2318
        %2418 = vmatmul.bf16.gmra.mxu0 %v2308
        %v2419 = vpop.f32.mrf.mxu0
        %v2420 = vadd.f32 0.0, %v2419
        %v2421 = vpop.f32.mrf.mxu0
        %2422 = vdwg.mxu0
        %2423 = vmatpush.bf16.msra.mxu0 0
        %2424 = vmatpush.bf16.msra.mxu0 0
        %2425 = vmatpush.bf16.msra.mxu0 0
        %2426 = vmatpush.bf16.msra.mxu0 0
        %2427 = vmatpush.bf16.msra.mxu0 0
        %2428 = vmatpush.bf16.msra.mxu0 0
        %2429 = vmatpush.bf16.msra.mxu0 0
        %2430 = vmatpush.bf16.msra.mxu0 %v2320
        %2431 = vmatmul.bf16.gmra.mxu0 %v2308
        %v2432 = vpop.f32.mrf.mxu0
        %v2433 = vadd.f32 0.0, %v2432
        %v2434 = vpop.f32.mrf.mxu0
        %2435 = vdwg.mxu0
        %2436 = vmatpush.bf16.msra.mxu0 0
        %2437 = vmatpush.bf16.msra.mxu0 0
        %2438 = vmatpush.bf16.msra.mxu0 0
        %2439 = vmatpush.bf16.msra.mxu0 0
        %2440 = vmatpush.bf16.msra.mxu0 0
        %2441 = vmatpush.bf16.msra.mxu0 0
        %2442 = vmatpush.bf16.msra.mxu0 0
        %2443 = vmatpush.bf16.msra.mxu0 %v2322
        %2444 = vmatmul.bf16.gmra.mxu0 %v2308
        %v2445 = vpop.f32.mrf.mxu0
        %v2446 = vadd.f32 0.0, %v2445
        %v2447 = vpop.f32.mrf.mxu0
        %2448 = vdwg.mxu0
        %2449 = vmatpush.bf16.msra.mxu0 0
        %2450 = vmatpush.bf16.msra.mxu0 0
        %2451 = vmatpush.bf16.msra.mxu0 0
        %2452 = vmatpush.bf16.msra.mxu0 0
        %2453 = vmatpush.bf16.msra.mxu0 0
        %2454 = vmatpush.bf16.msra.mxu0 0
        %2455 = vmatpush.bf16.msra.mxu0 0
        %2456 = vmatpush.bf16.msra.mxu0 %v2324
        %2457 = vmatmul.bf16.gmra.mxu0 %v2308
        %v2458 = vpop.f32.mrf.mxu0
        %v2459 = vadd.f32 0.0, %v2458
        %v2460 = vpop.f32.mrf.mxu0
        %2461 = vdwg.mxu0
        %2462 = vmatpush.bf16.msra.mxu0 0
        %2463 = vmatpush.bf16.msra.mxu0 0
        %2464 = vmatpush.bf16.msra.mxu0 0
        %2465 = vmatpush.bf16.msra.mxu0 0
        %2466 = vmatpush.bf16.msra.mxu0 0
        %2467 = vmatpush.bf16.msra.mxu0 0
        %2468 = vmatpush.bf16.msra.mxu0 0
        %2469 = vmatpush.bf16.msra.mxu0 %v2326
        %2470 = vmatmul.bf16.gmra.mxu0 %v2308
        %v2471 = vpop.f32.mrf.mxu0
        %v2472 = vadd.f32 0.0, %v2471
        %v2473 = vpop.f32.mrf.mxu0
        %2474 = vdwg.mxu0
        %2475 = vmatpush.bf16.msra.mxu0 0
        %2476 = vmatpush.bf16.msra.mxu0 0
        %2477 = vmatpush.bf16.msra.mxu0 0
        %2478 = vmatpush.bf16.msra.mxu0 0
        %2479 = vmatpush.bf16.msra.mxu0 0
        %2480 = vmatpush.bf16.msra.mxu0 0
        %2481 = vmatpush.bf16.msra.mxu0 0
        %2482 = vmatpush.bf16.msra.mxu0 %v2328
        %2483 = vmatmul.bf16.gmra.mxu0 %v2308
        %v2484 = vpop.f32.mrf.mxu0
        %v2485 = vadd.f32 0.0, %v2484
        %v2486 = vpop.f32.mrf.mxu0
        %2487 = vdwg.mxu0
        %2488 = vmatpush.bf16.msra.mxu0 0
        %2489 = vmatpush.bf16.msra.mxu0 0
        %2490 = vmatpush.bf16.msra.mxu0 0
        %2491 = vmatpush.bf16.msra.mxu0 0
        %2492 = vmatpush.bf16.msra.mxu0 0
        %2493 = vmatpush.bf16.msra.mxu0 0
        %2494 = vmatpush.bf16.msra.mxu0 0
        %2495 = vmatpush.bf16.msra.mxu0 %v2330
        %2496 = vmatmul.bf16.gmra.mxu0 %v2308
        %v2497 = vpop.f32.mrf.mxu0
        %v2498 = vadd.f32 0.0, %v2497
        %v2499 = vpop.f32.mrf.mxu0
        %2500 = vdwg.mxu0
        %2501 = vmatpush.bf16.msra.mxu0 0
        %2502 = vmatpush.bf16.msra.mxu0 0
        %2503 = vmatpush.bf16.msra.mxu0 0
        %2504 = vmatpush.bf16.msra.mxu0 0
        %2505 = vmatpush.bf16.msra.mxu0 0
        %2506 = vmatpush.bf16.msra.mxu0 0
        %2507 = vmatpush.bf16.msra.mxu0 0
        %2508 = vmatpush.bf16.msra.mxu0 %v2332
        %2509 = vmatmul.bf16.gmra.mxu0 %v2308
        %v2510 = vpop.f32.mrf.mxu0
        %v2511 = vadd.f32 0.0, %v2510
        %v2512 = vpop.f32.mrf.mxu0
        %2513 = vdwg.mxu0
        %2514 = vmatpush.bf16.msra.mxu0 0
        %2515 = vmatpush.bf16.msra.mxu0 0
        %2516 = vmatpush.bf16.msra.mxu0 0
        %2517 = vmatpush.bf16.msra.mxu0 0
        %2518 = vmatpush.bf16.msra.mxu0 0
        %2519 = vmatpush.bf16.msra.mxu0 0
        %2520 = vmatpush.bf16.msra.mxu0 0
        %2521 = vmatpush.bf16.msra.mxu0 %v2334
        %2522 = vmatmul.bf16.gmra.mxu0 %v2308
        %v2523 = vpop.f32.mrf.mxu0
        %v2524 = vadd.f32 0.0, %v2523
        %v2525 = vpop.f32.mrf.mxu0
        %2526 = vdwg.mxu0
        %2527 = vmatpush.bf16.msra.mxu0 0
        %2528 = vmatpush.bf16.msra.mxu0 0
        %2529 = vmatpush.bf16.msra.mxu0 0
        %2530 = vmatpush.bf16.msra.mxu0 0
        %2531 = vmatpush.bf16.msra.mxu0 0
        %2532 = vmatpush.bf16.msra.mxu0 0
        %2533 = vmatpush.bf16.msra.mxu0 0
        %2534 = vmatpush.bf16.msra.mxu0 %v2336
        %2535 = vmatmul.bf16.gmra.mxu0 %v2308
        %v2536 = vpop.f32.mrf.mxu0
        %v2537 = vadd.f32 0.0, %v2536
        %v2538 = vpop.f32.mrf.mxu0
        %2539 = vdwg.mxu0
        %2540 = vmatpush.bf16.msra.mxu0 0
        %2541 = vmatpush.bf16.msra.mxu0 0
        %2542 = vmatpush.bf16.msra.mxu0 0
        %2543 = vmatpush.bf16.msra.mxu0 0
        %2544 = vmatpush.bf16.msra.mxu0 0
        %2545 = vmatpush.bf16.msra.mxu0 0
        %2546 = vmatpush.bf16.msra.mxu0 0
        %2547 = vmatpush.bf16.msra.mxu0 %v2338
        %2548 = vmatmul.bf16.gmra.mxu0 %v2308
        %v2549 = vpop.f32.mrf.mxu0
        %v2550 = vadd.f32 0.0, %v2549
        %v2551 = vpop.f32.mrf.mxu0
        %2552 = vdwg.mxu0
        %2553 = vmatpush.bf16.msra.mxu0 0
        %2554 = vmatpush.bf16.msra.mxu0 0
        %2555 = vmatpush.bf16.msra.mxu0 0
        %2556 = vmatpush.bf16.msra.mxu0 0
        %2557 = vmatpush.bf16.msra.mxu0 0
        %2558 = vmatpush.bf16.msra.mxu0 0
        %2559 = vmatpush.bf16.msra.mxu0 0
        %2560 = vmatpush.bf16.msra.mxu0 %v2340
        %2561 = vmatmul.bf16.gmra.mxu0 %v2308
        %v2562 = vpop.f32.mrf.mxu0
        %v2563 = vadd.f32 0.0, %v2562
        %v2564 = vpop.f32.mrf.mxu0
        %2565 = vdwg.mxu0
        %2566 = vmatpush.bf16.msra.mxu0 0
        %2567 = vmatpush.bf16.msra.mxu0 0
        %2568 = vmatpush.bf16.msra.mxu0 0
        %2569 = vmatpush.bf16.msra.mxu0 0
        %2570 = vmatpush.bf16.msra.mxu0 0
        %2571 = vmatpush.bf16.msra.mxu0 0
        %2572 = vmatpush.bf16.msra.mxu0 0
        %2573 = vmatpush.bf16.msra.mxu0 %v2342
        %2574 = vmatmul.bf16.gmra.mxu0 %v2308
        %v2575 = vpop.f32.mrf.mxu0
        %v2576 = vadd.f32 0.0, %v2575
        %v2577 = vpop.f32.mrf.mxu0
        %2578 = vdwg.mxu0
        %2579 = vmatpush.bf16.msra.mxu0 0
        %2580 = vmatpush.bf16.msra.mxu0 0
        %2581 = vmatpush.bf16.msra.mxu0 0
        %2582 = vmatpush.bf16.msra.mxu0 0
        %2583 = vmatpush.bf16.msra.mxu0 0
        %2584 = vmatpush.bf16.msra.mxu0 0
        %2585 = vmatpush.bf16.msra.mxu0 0
        %2586 = vmatpush.bf16.msra.mxu0 %v2344
        %2587 = vmatmul.bf16.gmra.mxu0 %v2308
        %v2588 = vpop.f32.mrf.mxu0
        %v2589 = vadd.f32 0.0, %v2588
        %v2590 = vpop.f32.mrf.mxu0
        %2591 = vdwg.mxu0
        %2592 = vmatpush.bf16.msra.mxu0 0
        %2593 = vmatpush.bf16.msra.mxu0 0
        %2594 = vmatpush.bf16.msra.mxu0 0
        %2595 = vmatpush.bf16.msra.mxu0 0
        %2596 = vmatpush.bf16.msra.mxu0 0
        %2597 = vmatpush.bf16.msra.mxu0 0
        %2598 = vmatpush.bf16.msra.mxu0 0
        %2599 = vmatpush.bf16.msra.mxu0 %v2346
        %2600 = vmatmul.bf16.gmra.mxu0 %v2308
        %v2601 = vpop.f32.mrf.mxu0
        %v2602 = vadd.f32 0.0, %v2601
        %v2603 = vpop.f32.mrf.mxu0
        %2604 = vdwg.mxu0
        %2605 = vmatpush.bf16.msra.mxu0 0
        %2606 = vmatpush.bf16.msra.mxu0 0
        %2607 = vmatpush.bf16.msra.mxu0 0
        %2608 = vmatpush.bf16.msra.mxu0 0
        %2609 = vmatpush.bf16.msra.mxu0 0
        %2610 = vmatpush.bf16.msra.mxu0 0
        %2611 = vmatpush.bf16.msra.mxu0 0
        %2612 = vmatpush.bf16.msra.mxu0 %v2348
        %2613 = vmatmul.bf16.gmra.mxu0 %v2308
        %v2614 = vpop.f32.mrf.mxu0
        %v2615 = vadd.f32 0.0, %v2614
        %v2616 = vpop.f32.mrf.mxu0
        %2617 = vdwg.mxu0
        %2618 = vmatpush.bf16.msra.mxu0 0
        %2619 = vmatpush.bf16.msra.mxu0 0
        %2620 = vmatpush.bf16.msra.mxu0 0
        %2621 = vmatpush.bf16.msra.mxu0 0
        %2622 = vmatpush.bf16.msra.mxu0 0
        %2623 = vmatpush.bf16.msra.mxu0 0
        %2624 = vmatpush.bf16.msra.mxu0 0
        %2625 = vmatpush.bf16.msra.mxu0 %v2350
        %2626 = vmatmul.bf16.gmra.mxu0 %v2308
        %v2627 = vpop.f32.mrf.mxu0
        %v2628 = vadd.f32 0.0, %v2627
        %v2629 = vpop.f32.mrf.mxu0
        %2630 = vdwg.mxu0
        %2631 = vmatpush.bf16.msra.mxu0 0
        %2632 = vmatpush.bf16.msra.mxu0 0
        %2633 = vmatpush.bf16.msra.mxu0 0
        %2634 = vmatpush.bf16.msra.mxu0 0
        %2635 = vmatpush.bf16.msra.mxu0 0
        %2636 = vmatpush.bf16.msra.mxu0 0
        %2637 = vmatpush.bf16.msra.mxu0 0
        %2638 = vmatpush.bf16.msra.mxu0 %v2352
        %2639 = vmatmul.bf16.gmra.mxu0 %v2308
        %v2640 = vpop.f32.mrf.mxu0
        %v2641 = vadd.f32 0.0, %v2640
        %v2642 = vpop.f32.mrf.mxu0
        %2643 = vdwg.mxu0
        %2644 = vmatpush.bf16.msra.mxu0 0
        %2645 = vmatpush.bf16.msra.mxu0 0
        %2646 = vmatpush.bf16.msra.mxu0 0
        %2647 = vmatpush.bf16.msra.mxu0 0
        %2648 = vmatpush.bf16.msra.mxu0 0
        %2649 = vmatpush.bf16.msra.mxu0 0
        %2650 = vmatpush.bf16.msra.mxu0 0
        %2651 = vmatpush.bf16.msra.mxu0 %v2354
        %2652 = vmatmul.bf16.gmra.mxu0 %v2308
        %v2653 = vpop.f32.mrf.mxu0
        %v2654 = vadd.f32 0.0, %v2653
        %v2655 = vpop.f32.mrf.mxu0
        %2656 = vdwg.mxu0
        %2657 = vmatpush.bf16.msra.mxu0 0
        %2658 = vmatpush.bf16.msra.mxu0 0
        %2659 = vmatpush.bf16.msra.mxu0 0
        %2660 = vmatpush.bf16.msra.mxu0 0
        %2661 = vmatpush.bf16.msra.mxu0 0
        %2662 = vmatpush.bf16.msra.mxu0 0
        %2663 = vmatpush.bf16.msra.mxu0 0
        %2664 = vmatpush.bf16.msra.mxu0 %v2356
        %2665 = vmatmul.bf16.gmra.mxu0 %v2308
        %v2666 = vpop.f32.mrf.mxu0
        %v2667 = vadd.f32 0.0, %v2666
        %v2668 = vpop.f32.mrf.mxu0
        %2669 = vdwg.mxu0
        %v2670 = vadd.f32 %v2252, %v2368
        %v2671 = vadd.f32 %v2253, %v2381
        %v2672 = vadd.f32 %v2254, %v2394
        %v2673 = vadd.f32 %v2255, %v2407
        %v2674 = vadd.f32 %v2256, %v2420
        %v2675 = vadd.f32 %v2257, %v2433
        %v2676 = vadd.f32 %v2258, %v2446
        %v2677 = vadd.f32 %v2259, %v2459
        %v2678 = vadd.f32 %v2260, %v2472
        %v2679 = vadd.f32 %v2261, %v2485
        %v2680 = vadd.f32 %v2262, %v2498
        %v2681 = vadd.f32 %v2263, %v2511
        %v2682 = vadd.f32 %v2264, %v2524
        %v2683 = vadd.f32 %v2265, %v2537
        %v2684 = vadd.f32 %v2266, %v2550
        %v2685 = vadd.f32 %v2267, %v2563
        %v2686 = vadd.f32 %v2268, %v2576
        %v2687 = vadd.f32 %v2269, %v2589
        %v2688 = vadd.f32 %v2270, %v2602
        %v2689 = vadd.f32 %v2271, %v2615
        %v2690 = vadd.f32 %v2272, %v2628
        %v2691 = vadd.f32 %v2273, %v2641
        %v2692 = vadd.f32 %v2274, %v2654
        %v2693 = vadd.f32 %v2275, %v2667
        %2694 = vst [vmem:[#allocation1] ss:$4 sm:$0xff] %v273
        %s2695 = scalar_lea.vmem [#allocation1], 32
        %2696 = vst [vmem:[%s2695] ss:$4 sm:$0xff] %v274
        %v2697 = vld.sshfl [vmem:[#allocation1] sm:$0xff pattern:$0x73625140]
        %v2698 = vld.sshfl [vmem:[#allocation1 + $0x8] sm:$0xff pattern:$0x73625140]
        %v2699 = vld.sshfl [vmem:[#allocation1 + $0x10] sm:$0xff pattern:$0x73625140]
        %v2700 = vld.sshfl [vmem:[#allocation1 + $0x18] sm:$0xff pattern:$0x73625140]
        %v2701 = vld.sshfl [vmem:[#allocation1 + $0x20] sm:$0xff pattern:$0x73625140]
        %v2702 = vld.sshfl [vmem:[#allocation1 + $0x28] sm:$0xff pattern:$0x73625140]
        %v2703 = vld.sshfl [vmem:[#allocation1 + $0x30] sm:$0xff pattern:$0x73625140]
        %v2704 = vld.sshfl [vmem:[#allocation1 + $0x38] sm:$0xff pattern:$0x73625140]
        %2705 = vst [vmem:[#allocation1] ss:$4 sm:$0xff] %v275
        %2706 = vst [vmem:[%s2695] ss:$4 sm:$0xff] %v276
        %v2707 = vld.sshfl [vmem:[#allocation1] sm:$0xff pattern:$0x73625140]
        %v2708 = vld.sshfl [vmem:[#allocation1 + $0x8] sm:$0xff pattern:$0x73625140]
        %v2709 = vld.sshfl [vmem:[#allocation1 + $0x10] sm:$0xff pattern:$0x73625140]
        %v2710 = vld.sshfl [vmem:[#allocation1 + $0x18] sm:$0xff pattern:$0x73625140]
        %v2711 = vld.sshfl [vmem:[#allocation1 + $0x20] sm:$0xff pattern:$0x73625140]
        %v2712 = vld.sshfl [vmem:[#allocation1 + $0x28] sm:$0xff pattern:$0x73625140]
        %v2713 = vld.sshfl [vmem:[#allocation1 + $0x30] sm:$0xff pattern:$0x73625140]
        %v2714 = vld.sshfl [vmem:[#allocation1 + $0x38] sm:$0xff pattern:$0x73625140]
        %2715 = vst [vmem:[#allocation1] ss:$4 sm:$0xff] %v277
        %2716 = vst [vmem:[%s2695] ss:$4 sm:$0xff] %v278
        %v2717 = vld.sshfl [vmem:[#allocation1] sm:$0xff pattern:$0x73625140]
        %v2718 = vld.sshfl [vmem:[#allocation1 + $0x8] sm:$0xff pattern:$0x73625140]
        %v2719 = vld.sshfl [vmem:[#allocation1 + $0x10] sm:$0xff pattern:$0x73625140]
        %v2720 = vld.sshfl [vmem:[#allocation1 + $0x18] sm:$0xff pattern:$0x73625140]
        %v2721 = vld.sshfl [vmem:[#allocation1 + $0x20] sm:$0xff pattern:$0x73625140]
        %v2722 = vld.sshfl [vmem:[#allocation1 + $0x28] sm:$0xff pattern:$0x73625140]
        %v2723 = vld.sshfl [vmem:[#allocation1 + $0x30] sm:$0xff pattern:$0x73625140]
        %v2724 = vld.sshfl [vmem:[#allocation1 + $0x38] sm:$0xff pattern:$0x73625140]
        %v2726 = vsel %vm339, %v284, 0
        %v2728 = vsel %vm343, %v2697, 0
        %v2730 = vsel %vm343, %v2698, 0
        %v2732 = vsel %vm343, %v2699, 0
        %v2734 = vsel %vm343, %v2700, 0
        %v2736 = vsel %vm343, %v2701, 0
        %v2738 = vsel %vm343, %v2702, 0
        %v2740 = vsel %vm343, %v2703, 0
        %v2742 = vsel %vm343, %v2704, 0
        %v2744 = vsel %vm343, %v2707, 0
        %v2746 = vsel %vm343, %v2708, 0
        %v2748 = vsel %vm343, %v2709, 0
        %v2750 = vsel %vm343, %v2710, 0
        %v2752 = vsel %vm343, %v2711, 0
        %v2754 = vsel %vm343, %v2712, 0
        %v2756 = vsel %vm343, %v2713, 0
        %v2758 = vsel %vm343, %v2714, 0
        %v2760 = vsel %vm343, %v2717, 0
        %v2762 = vsel %vm343, %v2718, 0
        %v2764 = vsel %vm343, %v2719, 0
        %v2766 = vsel %vm343, %v2720, 0
        %v2768 = vsel %vm343, %v2721, 0
        %v2770 = vsel %vm343, %v2722, 0
        %v2772 = vsel %vm343, %v2723, 0
        %v2774 = vsel %vm343, %v2724, 0
        %2776 = vmatpush.bf16.msra.mxu0 0
        %2777 = vmatpush.bf16.msra.mxu0 0
        %2778 = vmatpush.bf16.msra.mxu0 0
        %2779 = vmatpush.bf16.msra.mxu0 0
        %2780 = vmatpush.bf16.msra.mxu0 0
        %2781 = vmatpush.bf16.msra.mxu0 0
        %2782 = vmatpush.bf16.msra.mxu0 0
        %2783 = vmatpush.bf16.msra.mxu0 %v2728
        %2784 = vmatmul.bf16.gmra.mxu0 %v2726
        %v2785 = vpop.f32.mrf.mxu0
        %v2786 = vadd.f32 0.0, %v2785
        %v2787 = vpop.f32.mrf.mxu0
        %2788 = vdwg.mxu0
        %2789 = vmatpush.bf16.msra.mxu0 0
        %2790 = vmatpush.bf16.msra.mxu0 0
        %2791 = vmatpush.bf16.msra.mxu0 0
        %2792 = vmatpush.bf16.msra.mxu0 0
        %2793 = vmatpush.bf16.msra.mxu0 0
        %2794 = vmatpush.bf16.msra.mxu0 0
        %2795 = vmatpush.bf16.msra.mxu0 0
        %2796 = vmatpush.bf16.msra.mxu0 %v2730
        %2797 = vmatmul.bf16.gmra.mxu0 %v2726
        %v2798 = vpop.f32.mrf.mxu0
        %v2799 = vadd.f32 0.0, %v2798
        %v2800 = vpop.f32.mrf.mxu0
        %2801 = vdwg.mxu0
        %2802 = vmatpush.bf16.msra.mxu0 0
        %2803 = vmatpush.bf16.msra.mxu0 0
        %2804 = vmatpush.bf16.msra.mxu0 0
        %2805 = vmatpush.bf16.msra.mxu0 0
        %2806 = vmatpush.bf16.msra.mxu0 0
        %2807 = vmatpush.bf16.msra.mxu0 0
        %2808 = vmatpush.bf16.msra.mxu0 0
        %2809 = vmatpush.bf16.msra.mxu0 %v2732
        %2810 = vmatmul.bf16.gmra.mxu0 %v2726
        %v2811 = vpop.f32.mrf.mxu0
        %v2812 = vadd.f32 0.0, %v2811
        %v2813 = vpop.f32.mrf.mxu0
        %2814 = vdwg.mxu0
        %2815 = vmatpush.bf16.msra.mxu0 0
        %2816 = vmatpush.bf16.msra.mxu0 0
        %2817 = vmatpush.bf16.msra.mxu0 0
        %2818 = vmatpush.bf16.msra.mxu0 0
        %2819 = vmatpush.bf16.msra.mxu0 0
        %2820 = vmatpush.bf16.msra.mxu0 0
        %2821 = vmatpush.bf16.msra.mxu0 0
        %2822 = vmatpush.bf16.msra.mxu0 %v2734
        %2823 = vmatmul.bf16.gmra.mxu0 %v2726
        %v2824 = vpop.f32.mrf.mxu0
        %v2825 = vadd.f32 0.0, %v2824
        %v2826 = vpop.f32.mrf.mxu0
        %2827 = vdwg.mxu0
        %2828 = vmatpush.bf16.msra.mxu0 0
        %2829 = vmatpush.bf16.msra.mxu0 0
        %2830 = vmatpush.bf16.msra.mxu0 0
        %2831 = vmatpush.bf16.msra.mxu0 0
        %2832 = vmatpush.bf16.msra.mxu0 0
        %2833 = vmatpush.bf16.msra.mxu0 0
        %2834 = vmatpush.bf16.msra.mxu0 0
        %2835 = vmatpush.bf16.msra.mxu0 %v2736
        %2836 = vmatmul.bf16.gmra.mxu0 %v2726
        %v2837 = vpop.f32.mrf.mxu0
        %v2838 = vadd.f32 0.0, %v2837
        %v2839 = vpop.f32.mrf.mxu0
        %2840 = vdwg.mxu0
        %2841 = vmatpush.bf16.msra.mxu0 0
        %2842 = vmatpush.bf16.msra.mxu0 0
        %2843 = vmatpush.bf16.msra.mxu0 0
        %2844 = vmatpush.bf16.msra.mxu0 0
        %2845 = vmatpush.bf16.msra.mxu0 0
        %2846 = vmatpush.bf16.msra.mxu0 0
        %2847 = vmatpush.bf16.msra.mxu0 0
        %2848 = vmatpush.bf16.msra.mxu0 %v2738
        %2849 = vmatmul.bf16.gmra.mxu0 %v2726
        %v2850 = vpop.f32.mrf.mxu0
        %v2851 = vadd.f32 0.0, %v2850
        %v2852 = vpop.f32.mrf.mxu0
        %2853 = vdwg.mxu0
        %2854 = vmatpush.bf16.msra.mxu0 0
        %2855 = vmatpush.bf16.msra.mxu0 0
        %2856 = vmatpush.bf16.msra.mxu0 0
        %2857 = vmatpush.bf16.msra.mxu0 0
        %2858 = vmatpush.bf16.msra.mxu0 0
        %2859 = vmatpush.bf16.msra.mxu0 0
        %2860 = vmatpush.bf16.msra.mxu0 0
        %2861 = vmatpush.bf16.msra.mxu0 %v2740
        %2862 = vmatmul.bf16.gmra.mxu0 %v2726
        %v2863 = vpop.f32.mrf.mxu0
        %v2864 = vadd.f32 0.0, %v2863
        %v2865 = vpop.f32.mrf.mxu0
        %2866 = vdwg.mxu0
        %2867 = vmatpush.bf16.msra.mxu0 0
        %2868 = vmatpush.bf16.msra.mxu0 0
        %2869 = vmatpush.bf16.msra.mxu0 0
        %2870 = vmatpush.bf16.msra.mxu0 0
        %2871 = vmatpush.bf16.msra.mxu0 0
        %2872 = vmatpush.bf16.msra.mxu0 0
        %2873 = vmatpush.bf16.msra.mxu0 0
        %2874 = vmatpush.bf16.msra.mxu0 %v2742
        %2875 = vmatmul.bf16.gmra.mxu0 %v2726
        %v2876 = vpop.f32.mrf.mxu0
        %v2877 = vadd.f32 0.0, %v2876
        %v2878 = vpop.f32.mrf.mxu0
        %2879 = vdwg.mxu0
        %2880 = vmatpush.bf16.msra.mxu0 0
        %2881 = vmatpush.bf16.msra.mxu0 0
        %2882 = vmatpush.bf16.msra.mxu0 0
        %2883 = vmatpush.bf16.msra.mxu0 0
        %2884 = vmatpush.bf16.msra.mxu0 0
        %2885 = vmatpush.bf16.msra.mxu0 0
        %2886 = vmatpush.bf16.msra.mxu0 0
        %2887 = vmatpush.bf16.msra.mxu0 %v2744
        %2888 = vmatmul.bf16.gmra.mxu0 %v2726
        %v2889 = vpop.f32.mrf.mxu0
        %v2890 = vadd.f32 0.0, %v2889
        %v2891 = vpop.f32.mrf.mxu0
        %2892 = vdwg.mxu0
        %2893 = vmatpush.bf16.msra.mxu0 0
        %2894 = vmatpush.bf16.msra.mxu0 0
        %2895 = vmatpush.bf16.msra.mxu0 0
        %2896 = vmatpush.bf16.msra.mxu0 0
        %2897 = vmatpush.bf16.msra.mxu0 0
        %2898 = vmatpush.bf16.msra.mxu0 0
        %2899 = vmatpush.bf16.msra.mxu0 0
        %2900 = vmatpush.bf16.msra.mxu0 %v2746
        %2901 = vmatmul.bf16.gmra.mxu0 %v2726
        %v2902 = vpop.f32.mrf.mxu0
        %v2903 = vadd.f32 0.0, %v2902
        %v2904 = vpop.f32.mrf.mxu0
        %2905 = vdwg.mxu0
        %2906 = vmatpush.bf16.msra.mxu0 0
        %2907 = vmatpush.bf16.msra.mxu0 0
        %2908 = vmatpush.bf16.msra.mxu0 0
        %2909 = vmatpush.bf16.msra.mxu0 0
        %2910 = vmatpush.bf16.msra.mxu0 0
        %2911 = vmatpush.bf16.msra.mxu0 0
        %2912 = vmatpush.bf16.msra.mxu0 0
        %2913 = vmatpush.bf16.msra.mxu0 %v2748
        %2914 = vmatmul.bf16.gmra.mxu0 %v2726
        %v2915 = vpop.f32.mrf.mxu0
        %v2916 = vadd.f32 0.0, %v2915
        %v2917 = vpop.f32.mrf.mxu0
        %2918 = vdwg.mxu0
        %2919 = vmatpush.bf16.msra.mxu0 0
        %2920 = vmatpush.bf16.msra.mxu0 0
        %2921 = vmatpush.bf16.msra.mxu0 0
        %2922 = vmatpush.bf16.msra.mxu0 0
        %2923 = vmatpush.bf16.msra.mxu0 0
        %2924 = vmatpush.bf16.msra.mxu0 0
        %2925 = vmatpush.bf16.msra.mxu0 0
        %2926 = vmatpush.bf16.msra.mxu0 %v2750
        %2927 = vmatmul.bf16.gmra.mxu0 %v2726
        %v2928 = vpop.f32.mrf.mxu0
        %v2929 = vadd.f32 0.0, %v2928
        %v2930 = vpop.f32.mrf.mxu0
        %2931 = vdwg.mxu0
        %2932 = vmatpush.bf16.msra.mxu0 0
        %2933 = vmatpush.bf16.msra.mxu0 0
        %2934 = vmatpush.bf16.msra.mxu0 0
        %2935 = vmatpush.bf16.msra.mxu0 0
        %2936 = vmatpush.bf16.msra.mxu0 0
        %2937 = vmatpush.bf16.msra.mxu0 0
        %2938 = vmatpush.bf16.msra.mxu0 0
        %2939 = vmatpush.bf16.msra.mxu0 %v2752
        %2940 = vmatmul.bf16.gmra.mxu0 %v2726
        %v2941 = vpop.f32.mrf.mxu0
        %v2942 = vadd.f32 0.0, %v2941
        %v2943 = vpop.f32.mrf.mxu0
        %2944 = vdwg.mxu0
        %2945 = vmatpush.bf16.msra.mxu0 0
        %2946 = vmatpush.bf16.msra.mxu0 0
        %2947 = vmatpush.bf16.msra.mxu0 0
        %2948 = vmatpush.bf16.msra.mxu0 0
        %2949 = vmatpush.bf16.msra.mxu0 0
        %2950 = vmatpush.bf16.msra.mxu0 0
        %2951 = vmatpush.bf16.msra.mxu0 0
        %2952 = vmatpush.bf16.msra.mxu0 %v2754
        %2953 = vmatmul.bf16.gmra.mxu0 %v2726
        %v2954 = vpop.f32.mrf.mxu0
        %v2955 = vadd.f32 0.0, %v2954
        %v2956 = vpop.f32.mrf.mxu0
        %2957 = vdwg.mxu0
        %2958 = vmatpush.bf16.msra.mxu0 0
        %2959 = vmatpush.bf16.msra.mxu0 0
        %2960 = vmatpush.bf16.msra.mxu0 0
        %2961 = vmatpush.bf16.msra.mxu0 0
        %2962 = vmatpush.bf16.msra.mxu0 0
        %2963 = vmatpush.bf16.msra.mxu0 0
        %2964 = vmatpush.bf16.msra.mxu0 0
        %2965 = vmatpush.bf16.msra.mxu0 %v2756
        %2966 = vmatmul.bf16.gmra.mxu0 %v2726
        %v2967 = vpop.f32.mrf.mxu0
        %v2968 = vadd.f32 0.0, %v2967
        %v2969 = vpop.f32.mrf.mxu0
        %2970 = vdwg.mxu0
        %2971 = vmatpush.bf16.msra.mxu0 0
        %2972 = vmatpush.bf16.msra.mxu0 0
        %2973 = vmatpush.bf16.msra.mxu0 0
        %2974 = vmatpush.bf16.msra.mxu0 0
        %2975 = vmatpush.bf16.msra.mxu0 0
        %2976 = vmatpush.bf16.msra.mxu0 0
        %2977 = vmatpush.bf16.msra.mxu0 0
        %2978 = vmatpush.bf16.msra.mxu0 %v2758
        %2979 = vmatmul.bf16.gmra.mxu0 %v2726
        %v2980 = vpop.f32.mrf.mxu0
        %v2981 = vadd.f32 0.0, %v2980
        %v2982 = vpop.f32.mrf.mxu0
        %2983 = vdwg.mxu0
        %2984 = vmatpush.bf16.msra.mxu0 0
        %2985 = vmatpush.bf16.msra.mxu0 0
        %2986 = vmatpush.bf16.msra.mxu0 0
        %2987 = vmatpush.bf16.msra.mxu0 0
        %2988 = vmatpush.bf16.msra.mxu0 0
        %2989 = vmatpush.bf16.msra.mxu0 0
        %2990 = vmatpush.bf16.msra.mxu0 0
        %2991 = vmatpush.bf16.msra.mxu0 %v2760
        %2992 = vmatmul.bf16.gmra.mxu0 %v2726
        %v2993 = vpop.f32.mrf.mxu0
        %v2994 = vadd.f32 0.0, %v2993
        %v2995 = vpop.f32.mrf.mxu0
        %2996 = vdwg.mxu0
        %2997 = vmatpush.bf16.msra.mxu0 0
        %2998 = vmatpush.bf16.msra.mxu0 0
        %2999 = vmatpush.bf16.msra.mxu0 0
        %3000 = vmatpush.bf16.msra.mxu0 0
        %3001 = vmatpush.bf16.msra.mxu0 0
        %3002 = vmatpush.bf16.msra.mxu0 0
        %3003 = vmatpush.bf16.msra.mxu0 0
        %3004 = vmatpush.bf16.msra.mxu0 %v2762
        %3005 = vmatmul.bf16.gmra.mxu0 %v2726
        %v3006 = vpop.f32.mrf.mxu0
        %v3007 = vadd.f32 0.0, %v3006
        %v3008 = vpop.f32.mrf.mxu0
        %3009 = vdwg.mxu0
        %3010 = vmatpush.bf16.msra.mxu0 0
        %3011 = vmatpush.bf16.msra.mxu0 0
        %3012 = vmatpush.bf16.msra.mxu0 0
        %3013 = vmatpush.bf16.msra.mxu0 0
        %3014 = vmatpush.bf16.msra.mxu0 0
        %3015 = vmatpush.bf16.msra.mxu0 0
        %3016 = vmatpush.bf16.msra.mxu0 0
        %3017 = vmatpush.bf16.msra.mxu0 %v2764
        %3018 = vmatmul.bf16.gmra.mxu0 %v2726
        %v3019 = vpop.f32.mrf.mxu0
        %v3020 = vadd.f32 0.0, %v3019
        %v3021 = vpop.f32.mrf.mxu0
        %3022 = vdwg.mxu0
        %3023 = vmatpush.bf16.msra.mxu0 0
        %3024 = vmatpush.bf16.msra.mxu0 0
        %3025 = vmatpush.bf16.msra.mxu0 0
        %3026 = vmatpush.bf16.msra.mxu0 0
        %3027 = vmatpush.bf16.msra.mxu0 0
        %3028 = vmatpush.bf16.msra.mxu0 0
        %3029 = vmatpush.bf16.msra.mxu0 0
        %3030 = vmatpush.bf16.msra.mxu0 %v2766
        %3031 = vmatmul.bf16.gmra.mxu0 %v2726
        %v3032 = vpop.f32.mrf.mxu0
        %v3033 = vadd.f32 0.0, %v3032
        %v3034 = vpop.f32.mrf.mxu0
        %3035 = vdwg.mxu0
        %3036 = vmatpush.bf16.msra.mxu0 0
        %3037 = vmatpush.bf16.msra.mxu0 0
        %3038 = vmatpush.bf16.msra.mxu0 0
        %3039 = vmatpush.bf16.msra.mxu0 0
        %3040 = vmatpush.bf16.msra.mxu0 0
        %3041 = vmatpush.bf16.msra.mxu0 0
        %3042 = vmatpush.bf16.msra.mxu0 0
        %3043 = vmatpush.bf16.msra.mxu0 %v2768
        %3044 = vmatmul.bf16.gmra.mxu0 %v2726
        %v3045 = vpop.f32.mrf.mxu0
        %v3046 = vadd.f32 0.0, %v3045
        %v3047 = vpop.f32.mrf.mxu0
        %3048 = vdwg.mxu0
        %3049 = vmatpush.bf16.msra.mxu0 0
        %3050 = vmatpush.bf16.msra.mxu0 0
        %3051 = vmatpush.bf16.msra.mxu0 0
        %3052 = vmatpush.bf16.msra.mxu0 0
        %3053 = vmatpush.bf16.msra.mxu0 0
        %3054 = vmatpush.bf16.msra.mxu0 0
        %3055 = vmatpush.bf16.msra.mxu0 0
        %3056 = vmatpush.bf16.msra.mxu0 %v2770
        %3057 = vmatmul.bf16.gmra.mxu0 %v2726
        %v3058 = vpop.f32.mrf.mxu0
        %v3059 = vadd.f32 0.0, %v3058
        %v3060 = vpop.f32.mrf.mxu0
        %3061 = vdwg.mxu0
        %3062 = vmatpush.bf16.msra.mxu0 0
        %3063 = vmatpush.bf16.msra.mxu0 0
        %3064 = vmatpush.bf16.msra.mxu0 0
        %3065 = vmatpush.bf16.msra.mxu0 0
        %3066 = vmatpush.bf16.msra.mxu0 0
        %3067 = vmatpush.bf16.msra.mxu0 0
        %3068 = vmatpush.bf16.msra.mxu0 0
        %3069 = vmatpush.bf16.msra.mxu0 %v2772
        %3070 = vmatmul.bf16.gmra.mxu0 %v2726
        %v3071 = vpop.f32.mrf.mxu0
        %v3072 = vadd.f32 0.0, %v3071
        %v3073 = vpop.f32.mrf.mxu0
        %3074 = vdwg.mxu0
        %3075 = vmatpush.bf16.msra.mxu0 0
        %3076 = vmatpush.bf16.msra.mxu0 0
        %3077 = vmatpush.bf16.msra.mxu0 0
        %3078 = vmatpush.bf16.msra.mxu0 0
        %3079 = vmatpush.bf16.msra.mxu0 0
        %3080 = vmatpush.bf16.msra.mxu0 0
        %3081 = vmatpush.bf16.msra.mxu0 0
        %3082 = vmatpush.bf16.msra.mxu0 %v2774
        %3083 = vmatmul.bf16.gmra.mxu0 %v2726
        %v3084 = vpop.f32.mrf.mxu0
        %v3085 = vadd.f32 0.0, %v3084
        %v3086 = vpop.f32.mrf.mxu0
        %3087 = vdwg.mxu0
        %3088 = vrot.lane.b32.xlu0 %v2786, 127
        %v3089 = vpop.permute.xlu0 %3088
        %3090 = vrot.lane.b32.xlu0 %v2799, 127
        %v3091 = vpop.permute.xlu0 %3090
        %3092 = vrot.lane.b32.xlu0 %v2812, 127
        %v3093 = vpop.permute.xlu0 %3092
        %3094 = vrot.lane.b32.xlu0 %v2825, 127
        %v3095 = vpop.permute.xlu0 %3094
        %3096 = vrot.lane.b32.xlu0 %v2838, 127
        %v3097 = vpop.permute.xlu0 %3096
        %3098 = vrot.lane.b32.xlu0 %v2851, 127
        %v3099 = vpop.permute.xlu0 %3098
        %3100 = vrot.lane.b32.xlu0 %v2864, 127
        %v3101 = vpop.permute.xlu0 %3100
        %3102 = vrot.lane.b32.xlu0 %v2877, 127
        %v3103 = vpop.permute.xlu0 %3102
        %3104 = vrot.lane.b32.xlu0 %v2890, 127
        %v3105 = vpop.permute.xlu0 %3104
        %3106 = vrot.lane.b32.xlu0 %v2903, 127
        %v3107 = vpop.permute.xlu0 %3106
        %3108 = vrot.lane.b32.xlu0 %v2916, 127
        %v3109 = vpop.permute.xlu0 %3108
        %3110 = vrot.lane.b32.xlu0 %v2929, 127
        %v3111 = vpop.permute.xlu0 %3110
        %3112 = vrot.lane.b32.xlu0 %v2942, 127
        %v3113 = vpop.permute.xlu0 %3112
        %3114 = vrot.lane.b32.xlu0 %v2955, 127
        %v3115 = vpop.permute.xlu0 %3114
        %3116 = vrot.lane.b32.xlu0 %v2968, 127
        %v3117 = vpop.permute.xlu0 %3116
        %3118 = vrot.lane.b32.xlu0 %v2981, 127
        %v3119 = vpop.permute.xlu0 %3118
        %3120 = vrot.lane.b32.xlu0 %v2994, 127
        %v3121 = vpop.permute.xlu0 %3120
        %3122 = vrot.lane.b32.xlu0 %v3007, 127
        %v3123 = vpop.permute.xlu0 %3122
        %3124 = vrot.lane.b32.xlu0 %v3020, 127
        %v3125 = vpop.permute.xlu0 %3124
        %3126 = vrot.lane.b32.xlu0 %v3033, 127
        %v3127 = vpop.permute.xlu0 %3126
        %3128 = vrot.lane.b32.xlu0 %v3046, 127
        %v3129 = vpop.permute.xlu0 %3128
        %3130 = vrot.lane.b32.xlu0 %v3059, 127
        %v3131 = vpop.permute.xlu0 %3130
        %3132 = vrot.lane.b32.xlu0 %v3072, 127
        %v3133 = vpop.permute.xlu0 %3132
        %3134 = vrot.lane.b32.xlu0 %v3085, 127
        %v3135 = vpop.permute.xlu0 %3134
        %vm3136 = vcmp.lt.s32.totalorder %v753, 127
        %v3137 = vsel %vm3136, %v3133, %v3135
        %v3138 = vsel %vm3136, %v3131, %v3133
        %v3139 = vsel %vm3136, %v3129, %v3131
        %v3140 = vsel %vm3136, %v3127, %v3129
        %v3141 = vsel %vm3136, %v3125, %v3127
        %v3142 = vsel %vm3136, %v3123, %v3125
        %v3143 = vsel %vm3136, %v3121, %v3123
        %v3144 = vsel %vm3136, %v3119, %v3121
        %v3145 = vsel %vm3136, %v3117, %v3119
        %v3146 = vsel %vm3136, %v3115, %v3117
        %v3147 = vsel %vm3136, %v3113, %v3115
        %v3148 = vsel %vm3136, %v3111, %v3113
        %v3149 = vsel %vm3136, %v3109, %v3111
        %v3150 = vsel %vm3136, %v3107, %v3109
        %v3151 = vsel %vm3136, %v3105, %v3107
        %v3152 = vsel %vm3136, %v3103, %v3105
        %v3153 = vsel %vm3136, %v3101, %v3103
        %v3154 = vsel %vm3136, %v3099, %v3101
        %v3155 = vsel %vm3136, %v3097, %v3099
        %v3156 = vsel %vm3136, %v3095, %v3097
        %v3157 = vsel %vm3136, %v3093, %v3095
        %v3158 = vsel %vm3136, %v3091, %v3093
        %v3159 = vsel %vm3136, %v3089, %v3091
        %v3160 = vsel %vm3136, %v3135, %v3089
        %v3161 = vadd.f32 %v2670, %v3159
        %v3162 = vadd.f32 %v2671, %v3158
        %v3163 = vadd.f32 %v2672, %v3157
        %v3164 = vadd.f32 %v2673, %v3156
        %v3165 = vadd.f32 %v2674, %v3155
        %v3166 = vadd.f32 %v2675, %v3154
        %v3167 = vadd.f32 %v2676, %v3153
        %v3168 = vadd.f32 %v2677, %v3152
        %v3169 = vadd.f32 %v2678, %v3151
        %v3170 = vadd.f32 %v2679, %v3150
        %v3171 = vadd.f32 %v2680, %v3149
        %v3172 = vadd.f32 %v2681, %v3148
        %v3173 = vadd.f32 %v2682, %v3147
        %v3174 = vadd.f32 %v2683, %v3146
        %v3175 = vadd.f32 %v2684, %v3145
        %v3176 = vadd.f32 %v2685, %v3144
        %v3177 = vadd.f32 %v2686, %v3143
        %v3178 = vadd.f32 %v2687, %v3142
        %v3179 = vadd.f32 %v2688, %v3141
        %v3180 = vadd.f32 %v2689, %v3140
        %v3181 = vadd.f32 %v2690, %v3139
        %v3182 = vadd.f32 %v2691, %v3138
        %v3183 = vadd.f32 %v2692, %v3137
        %v3184 = vadd.f32 %v2693, %v3160
        %3185 = vst [vmem:[#allocation1] ss:$4 sm:$0xff] %v273
        %s3186 = scalar_lea.vmem [#allocation1], 32
        %3187 = vst [vmem:[%s3186] ss:$4 sm:$0xff] %v274
        %v3188 = vld.sshfl [vmem:[#allocation1] sm:$0xff pattern:$0x73625140]
        %v3189 = vld.sshfl [vmem:[#allocation1 + $0x8] sm:$0xff pattern:$0x73625140]
        %v3190 = vld.sshfl [vmem:[#allocation1 + $0x10] sm:$0xff pattern:$0x73625140]
        %v3191 = vld.sshfl [vmem:[#allocation1 + $0x18] sm:$0xff pattern:$0x73625140]
        %v3192 = vld.sshfl [vmem:[#allocation1 + $0x20] sm:$0xff pattern:$0x73625140]
        %v3193 = vld.sshfl [vmem:[#allocation1 + $0x28] sm:$0xff pattern:$0x73625140]
        %v3194 = vld.sshfl [vmem:[#allocation1 + $0x30] sm:$0xff pattern:$0x73625140]
        %v3195 = vld.sshfl [vmem:[#allocation1 + $0x38] sm:$0xff pattern:$0x73625140]
        %3196 = vst [vmem:[#allocation1] ss:$4 sm:$0xff] %v275
        %3197 = vst [vmem:[%s3186] ss:$4 sm:$0xff] %v276
        %v3198 = vld.sshfl [vmem:[#allocation1] sm:$0xff pattern:$0x73625140]
        %v3199 = vld.sshfl [vmem:[#allocation1 + $0x8] sm:$0xff pattern:$0x73625140]
        %v3200 = vld.sshfl [vmem:[#allocation1 + $0x10] sm:$0xff pattern:$0x73625140]
        %v3201 = vld.sshfl [vmem:[#allocation1 + $0x18] sm:$0xff pattern:$0x73625140]
        %v3202 = vld.sshfl [vmem:[#allocation1 + $0x20] sm:$0xff pattern:$0x73625140]
        %v3203 = vld.sshfl [vmem:[#allocation1 + $0x28] sm:$0xff pattern:$0x73625140]
        %v3204 = vld.sshfl [vmem:[#allocation1 + $0x30] sm:$0xff pattern:$0x73625140]
        %v3205 = vld.sshfl [vmem:[#allocation1 + $0x38] sm:$0xff pattern:$0x73625140]
        %3206 = vst [vmem:[#allocation1] ss:$4 sm:$0xff] %v277
        %3207 = vst [vmem:[%s3186] ss:$4 sm:$0xff] %v278
        %v3208 = vld.sshfl [vmem:[#allocation1] sm:$0xff pattern:$0x73625140]
        %v3209 = vld.sshfl [vmem:[#allocation1 + $0x8] sm:$0xff pattern:$0x73625140]
        %v3210 = vld.sshfl [vmem:[#allocation1 + $0x10] sm:$0xff pattern:$0x73625140]
        %v3211 = vld.sshfl [vmem:[#allocation1 + $0x18] sm:$0xff pattern:$0x73625140]
        %v3212 = vld.sshfl [vmem:[#allocation1 + $0x20] sm:$0xff pattern:$0x73625140]
        %v3213 = vld.sshfl [vmem:[#allocation1 + $0x28] sm:$0xff pattern:$0x73625140]
        %v3214 = vld.sshfl [vmem:[#allocation1 + $0x30] sm:$0xff pattern:$0x73625140]
        %v3215 = vld.sshfl [vmem:[#allocation1 + $0x38] sm:$0xff pattern:$0x73625140]
        %v3217 = vsel %vm339, %v285, 0
        %v3219 = vsel %vm343, %v3188, 0
        %v3221 = vsel %vm343, %v3189, 0
        %v3223 = vsel %vm343, %v3190, 0
        %v3225 = vsel %vm343, %v3191, 0
        %v3227 = vsel %vm343, %v3192, 0
        %v3229 = vsel %vm343, %v3193, 0
        %v3231 = vsel %vm343, %v3194, 0
        %v3233 = vsel %vm343, %v3195, 0
        %v3235 = vsel %vm343, %v3198, 0
        %v3237 = vsel %vm343, %v3199, 0
        %v3239 = vsel %vm343, %v3200, 0
        %v3241 = vsel %vm343, %v3201, 0
        %v3243 = vsel %vm343, %v3202, 0
        %v3245 = vsel %vm343, %v3203, 0
        %v3247 = vsel %vm343, %v3204, 0
        %v3249 = vsel %vm343, %v3205, 0
        %v3251 = vsel %vm343, %v3208, 0
        %v3253 = vsel %vm343, %v3209, 0
        %v3255 = vsel %vm343, %v3210, 0
        %v3257 = vsel %vm343, %v3211, 0
        %v3259 = vsel %vm343, %v3212, 0
        %v3261 = vsel %vm343, %v3213, 0
        %v3263 = vsel %vm343, %v3214, 0
        %v3265 = vsel %vm343, %v3215, 0
        %3267 = vmatpush.bf16.msra.mxu0 0
        %3268 = vmatpush.bf16.msra.mxu0 0
        %3269 = vmatpush.bf16.msra.mxu0 0
        %3270 = vmatpush.bf16.msra.mxu0 0
        %3271 = vmatpush.bf16.msra.mxu0 0
        %3272 = vmatpush.bf16.msra.mxu0 0
        %3273 = vmatpush.bf16.msra.mxu0 0
        %3274 = vmatpush.bf16.msra.mxu0 %v3219
        %3275 = vmatmul.bf16.gmra.mxu0 %v3217
        %v3276 = vpop.f32.mrf.mxu0
        %v3277 = vadd.f32 0.0, %v3276
        %v3278 = vpop.f32.mrf.mxu0
        %3279 = vdwg.mxu0
        %3280 = vmatpush.bf16.msra.mxu0 0
        %3281 = vmatpush.bf16.msra.mxu0 0
        %3282 = vmatpush.bf16.msra.mxu0 0
        %3283 = vmatpush.bf16.msra.mxu0 0
        %3284 = vmatpush.bf16.msra.mxu0 0
        %3285 = vmatpush.bf16.msra.mxu0 0
        %3286 = vmatpush.bf16.msra.mxu0 0
        %3287 = vmatpush.bf16.msra.mxu0 %v3221
        %3288 = vmatmul.bf16.gmra.mxu0 %v3217
        %v3289 = vpop.f32.mrf.mxu0
        %v3290 = vadd.f32 0.0, %v3289
        %v3291 = vpop.f32.mrf.mxu0
        %3292 = vdwg.mxu0
        %3293 = vmatpush.bf16.msra.mxu0 0
        %3294 = vmatpush.bf16.msra.mxu0 0
        %3295 = vmatpush.bf16.msra.mxu0 0
        %3296 = vmatpush.bf16.msra.mxu0 0
        %3297 = vmatpush.bf16.msra.mxu0 0
        %3298 = vmatpush.bf16.msra.mxu0 0
        %3299 = vmatpush.bf16.msra.mxu0 0
        %3300 = vmatpush.bf16.msra.mxu0 %v3223
        %3301 = vmatmul.bf16.gmra.mxu0 %v3217
        %v3302 = vpop.f32.mrf.mxu0
        %v3303 = vadd.f32 0.0, %v3302
        %v3304 = vpop.f32.mrf.mxu0
        %3305 = vdwg.mxu0
        %3306 = vmatpush.bf16.msra.mxu0 0
        %3307 = vmatpush.bf16.msra.mxu0 0
        %3308 = vmatpush.bf16.msra.mxu0 0
        %3309 = vmatpush.bf16.msra.mxu0 0
        %3310 = vmatpush.bf16.msra.mxu0 0
        %3311 = vmatpush.bf16.msra.mxu0 0
        %3312 = vmatpush.bf16.msra.mxu0 0
        %3313 = vmatpush.bf16.msra.mxu0 %v3225
        %3314 = vmatmul.bf16.gmra.mxu0 %v3217
        %v3315 = vpop.f32.mrf.mxu0
        %v3316 = vadd.f32 0.0, %v3315
        %v3317 = vpop.f32.mrf.mxu0
        %3318 = vdwg.mxu0
        %3319 = vmatpush.bf16.msra.mxu0 0
        %3320 = vmatpush.bf16.msra.mxu0 0
        %3321 = vmatpush.bf16.msra.mxu0 0
        %3322 = vmatpush.bf16.msra.mxu0 0
        %3323 = vmatpush.bf16.msra.mxu0 0
        %3324 = vmatpush.bf16.msra.mxu0 0
        %3325 = vmatpush.bf16.msra.mxu0 0
        %3326 = vmatpush.bf16.msra.mxu0 %v3227
        %3327 = vmatmul.bf16.gmra.mxu0 %v3217
        %v3328 = vpop.f32.mrf.mxu0
        %v3329 = vadd.f32 0.0, %v3328
        %v3330 = vpop.f32.mrf.mxu0
        %3331 = vdwg.mxu0
        %3332 = vmatpush.bf16.msra.mxu0 0
        %3333 = vmatpush.bf16.msra.mxu0 0
        %3334 = vmatpush.bf16.msra.mxu0 0
        %3335 = vmatpush.bf16.msra.mxu0 0
        %3336 = vmatpush.bf16.msra.mxu0 0
        %3337 = vmatpush.bf16.msra.mxu0 0
        %3338 = vmatpush.bf16.msra.mxu0 0
        %3339 = vmatpush.bf16.msra.mxu0 %v3229
        %3340 = vmatmul.bf16.gmra.mxu0 %v3217
        %v3341 = vpop.f32.mrf.mxu0
        %v3342 = vadd.f32 0.0, %v3341
        %v3343 = vpop.f32.mrf.mxu0
        %3344 = vdwg.mxu0
        %3345 = vmatpush.bf16.msra.mxu0 0
        %3346 = vmatpush.bf16.msra.mxu0 0
        %3347 = vmatpush.bf16.msra.mxu0 0
        %3348 = vmatpush.bf16.msra.mxu0 0
        %3349 = vmatpush.bf16.msra.mxu0 0
        %3350 = vmatpush.bf16.msra.mxu0 0
        %3351 = vmatpush.bf16.msra.mxu0 0
        %3352 = vmatpush.bf16.msra.mxu0 %v3231
        %3353 = vmatmul.bf16.gmra.mxu0 %v3217
        %v3354 = vpop.f32.mrf.mxu0
        %v3355 = vadd.f32 0.0, %v3354
        %v3356 = vpop.f32.mrf.mxu0
        %3357 = vdwg.mxu0
        %3358 = vmatpush.bf16.msra.mxu0 0
        %3359 = vmatpush.bf16.msra.mxu0 0
        %3360 = vmatpush.bf16.msra.mxu0 0
        %3361 = vmatpush.bf16.msra.mxu0 0
        %3362 = vmatpush.bf16.msra.mxu0 0
        %3363 = vmatpush.bf16.msra.mxu0 0
        %3364 = vmatpush.bf16.msra.mxu0 0
        %3365 = vmatpush.bf16.msra.mxu0 %v3233
        %3366 = vmatmul.bf16.gmra.mxu0 %v3217
        %v3367 = vpop.f32.mrf.mxu0
        %v3368 = vadd.f32 0.0, %v3367
        %v3369 = vpop.f32.mrf.mxu0
        %3370 = vdwg.mxu0
        %3371 = vmatpush.bf16.msra.mxu0 0
        %3372 = vmatpush.bf16.msra.mxu0 0
        %3373 = vmatpush.bf16.msra.mxu0 0
        %3374 = vmatpush.bf16.msra.mxu0 0
        %3375 = vmatpush.bf16.msra.mxu0 0
        %3376 = vmatpush.bf16.msra.mxu0 0
        %3377 = vmatpush.bf16.msra.mxu0 0
        %3378 = vmatpush.bf16.msra.mxu0 %v3235
        %3379 = vmatmul.bf16.gmra.mxu0 %v3217
        %v3380 = vpop.f32.mrf.mxu0
        %v3381 = vadd.f32 0.0, %v3380
        %v3382 = vpop.f32.mrf.mxu0
        %3383 = vdwg.mxu0
        %3384 = vmatpush.bf16.msra.mxu0 0
        %3385 = vmatpush.bf16.msra.mxu0 0
        %3386 = vmatpush.bf16.msra.mxu0 0
        %3387 = vmatpush.bf16.msra.mxu0 0
        %3388 = vmatpush.bf16.msra.mxu0 0
        %3389 = vmatpush.bf16.msra.mxu0 0
        %3390 = vmatpush.bf16.msra.mxu0 0
        %3391 = vmatpush.bf16.msra.mxu0 %v3237
        %3392 = vmatmul.bf16.gmra.mxu0 %v3217
        %v3393 = vpop.f32.mrf.mxu0
        %v3394 = vadd.f32 0.0, %v3393
        %v3395 = vpop.f32.mrf.mxu0
        %3396 = vdwg.mxu0
        %3397 = vmatpush.bf16.msra.mxu0 0
        %3398 = vmatpush.bf16.msra.mxu0 0
        %3399 = vmatpush.bf16.msra.mxu0 0
        %3400 = vmatpush.bf16.msra.mxu0 0
        %3401 = vmatpush.bf16.msra.mxu0 0
        %3402 = vmatpush.bf16.msra.mxu0 0
        %3403 = vmatpush.bf16.msra.mxu0 0
        %3404 = vmatpush.bf16.msra.mxu0 %v3239
        %3405 = vmatmul.bf16.gmra.mxu0 %v3217
        %v3406 = vpop.f32.mrf.mxu0
        %v3407 = vadd.f32 0.0, %v3406
        %v3408 = vpop.f32.mrf.mxu0
        %3409 = vdwg.mxu0
        %3410 = vmatpush.bf16.msra.mxu0 0
        %3411 = vmatpush.bf16.msra.mxu0 0
        %3412 = vmatpush.bf16.msra.mxu0 0
        %3413 = vmatpush.bf16.msra.mxu0 0
        %3414 = vmatpush.bf16.msra.mxu0 0
        %3415 = vmatpush.bf16.msra.mxu0 0
        %3416 = vmatpush.bf16.msra.mxu0 0
        %3417 = vmatpush.bf16.msra.mxu0 %v3241
        %3418 = vmatmul.bf16.gmra.mxu0 %v3217
        %v3419 = vpop.f32.mrf.mxu0
        %v3420 = vadd.f32 0.0, %v3419
        %v3421 = vpop.f32.mrf.mxu0
        %3422 = vdwg.mxu0
        %3423 = vmatpush.bf16.msra.mxu0 0
        %3424 = vmatpush.bf16.msra.mxu0 0
        %3425 = vmatpush.bf16.msra.mxu0 0
        %3426 = vmatpush.bf16.msra.mxu0 0
        %3427 = vmatpush.bf16.msra.mxu0 0
        %3428 = vmatpush.bf16.msra.mxu0 0
        %3429 = vmatpush.bf16.msra.mxu0 0
        %3430 = vmatpush.bf16.msra.mxu0 %v3243
        %3431 = vmatmul.bf16.gmra.mxu0 %v3217
        %v3432 = vpop.f32.mrf.mxu0
        %v3433 = vadd.f32 0.0, %v3432
        %v3434 = vpop.f32.mrf.mxu0
        %3435 = vdwg.mxu0
        %3436 = vmatpush.bf16.msra.mxu0 0
        %3437 = vmatpush.bf16.msra.mxu0 0
        %3438 = vmatpush.bf16.msra.mxu0 0
        %3439 = vmatpush.bf16.msra.mxu0 0
        %3440 = vmatpush.bf16.msra.mxu0 0
        %3441 = vmatpush.bf16.msra.mxu0 0
        %3442 = vmatpush.bf16.msra.mxu0 0
        %3443 = vmatpush.bf16.msra.mxu0 %v3245
        %3444 = vmatmul.bf16.gmra.mxu0 %v3217
        %v3445 = vpop.f32.mrf.mxu0
        %v3446 = vadd.f32 0.0, %v3445
        %v3447 = vpop.f32.mrf.mxu0
        %3448 = vdwg.mxu0
        %3449 = vmatpush.bf16.msra.mxu0 0
        %3450 = vmatpush.bf16.msra.mxu0 0
        %3451 = vmatpush.bf16.msra.mxu0 0
        %3452 = vmatpush.bf16.msra.mxu0 0
        %3453 = vmatpush.bf16.msra.mxu0 0
        %3454 = vmatpush.bf16.msra.mxu0 0
        %3455 = vmatpush.bf16.msra.mxu0 0
        %3456 = vmatpush.bf16.msra.mxu0 %v3247
        %3457 = vmatmul.bf16.gmra.mxu0 %v3217
        %v3458 = vpop.f32.mrf.mxu0
        %v3459 = vadd.f32 0.0, %v3458
        %v3460 = vpop.f32.mrf.mxu0
        %3461 = vdwg.mxu0
        %3462 = vmatpush.bf16.msra.mxu0 0
        %3463 = vmatpush.bf16.msra.mxu0 0
        %3464 = vmatpush.bf16.msra.mxu0 0
        %3465 = vmatpush.bf16.msra.mxu0 0
        %3466 = vmatpush.bf16.msra.mxu0 0
        %3467 = vmatpush.bf16.msra.mxu0 0
        %3468 = vmatpush.bf16.msra.mxu0 0
        %3469 = vmatpush.bf16.msra.mxu0 %v3249
        %3470 = vmatmul.bf16.gmra.mxu0 %v3217
        %v3471 = vpop.f32.mrf.mxu0
        %v3472 = vadd.f32 0.0, %v3471
        %v3473 = vpop.f32.mrf.mxu0
        %3474 = vdwg.mxu0
        %3475 = vmatpush.bf16.msra.mxu0 0
        %3476 = vmatpush.bf16.msra.mxu0 0
        %3477 = vmatpush.bf16.msra.mxu0 0
        %3478 = vmatpush.bf16.msra.mxu0 0
        %3479 = vmatpush.bf16.msra.mxu0 0
        %3480 = vmatpush.bf16.msra.mxu0 0
        %3481 = vmatpush.bf16.msra.mxu0 0
        %3482 = vmatpush.bf16.msra.mxu0 %v3251
        %3483 = vmatmul.bf16.gmra.mxu0 %v3217
        %v3484 = vpop.f32.mrf.mxu0
        %v3485 = vadd.f32 0.0, %v3484
        %v3486 = vpop.f32.mrf.mxu0
        %3487 = vdwg.mxu0
        %3488 = vmatpush.bf16.msra.mxu0 0
        %3489 = vmatpush.bf16.msra.mxu0 0
        %3490 = vmatpush.bf16.msra.mxu0 0
        %3491 = vmatpush.bf16.msra.mxu0 0
        %3492 = vmatpush.bf16.msra.mxu0 0
        %3493 = vmatpush.bf16.msra.mxu0 0
        %3494 = vmatpush.bf16.msra.mxu0 0
        %3495 = vmatpush.bf16.msra.mxu0 %v3253
        %3496 = vmatmul.bf16.gmra.mxu0 %v3217
        %v3497 = vpop.f32.mrf.mxu0
        %v3498 = vadd.f32 0.0, %v3497
        %v3499 = vpop.f32.mrf.mxu0
        %3500 = vdwg.mxu0
        %3501 = vmatpush.bf16.msra.mxu0 0
        %3502 = vmatpush.bf16.msra.mxu0 0
        %3503 = vmatpush.bf16.msra.mxu0 0
        %3504 = vmatpush.bf16.msra.mxu0 0
        %3505 = vmatpush.bf16.msra.mxu0 0
        %3506 = vmatpush.bf16.msra.mxu0 0
        %3507 = vmatpush.bf16.msra.mxu0 0
        %3508 = vmatpush.bf16.msra.mxu0 %v3255
        %3509 = vmatmul.bf16.gmra.mxu0 %v3217
        %v3510 = vpop.f32.mrf.mxu0
        %v3511 = vadd.f32 0.0, %v3510
        %v3512 = vpop.f32.mrf.mxu0
        %3513 = vdwg.mxu0
        %3514 = vmatpush.bf16.msra.mxu0 0
        %3515 = vmatpush.bf16.msra.mxu0 0
        %3516 = vmatpush.bf16.msra.mxu0 0
        %3517 = vmatpush.bf16.msra.mxu0 0
        %3518 = vmatpush.bf16.msra.mxu0 0
        %3519 = vmatpush.bf16.msra.mxu0 0
        %3520 = vmatpush.bf16.msra.mxu0 0
        %3521 = vmatpush.bf16.msra.mxu0 %v3257
        %3522 = vmatmul.bf16.gmra.mxu0 %v3217
        %v3523 = vpop.f32.mrf.mxu0
        %v3524 = vadd.f32 0.0, %v3523
        %v3525 = vpop.f32.mrf.mxu0
        %3526 = vdwg.mxu0
        %3527 = vmatpush.bf16.msra.mxu0 0
        %3528 = vmatpush.bf16.msra.mxu0 0
        %3529 = vmatpush.bf16.msra.mxu0 0
        %3530 = vmatpush.bf16.msra.mxu0 0
        %3531 = vmatpush.bf16.msra.mxu0 0
        %3532 = vmatpush.bf16.msra.mxu0 0
        %3533 = vmatpush.bf16.msra.mxu0 0
        %3534 = vmatpush.bf16.msra.mxu0 %v3259
        %3535 = vmatmul.bf16.gmra.mxu0 %v3217
        %v3536 = vpop.f32.mrf.mxu0
        %v3537 = vadd.f32 0.0, %v3536
        %v3538 = vpop.f32.mrf.mxu0
        %3539 = vdwg.mxu0
        %3540 = vmatpush.bf16.msra.mxu0 0
        %3541 = vmatpush.bf16.msra.mxu0 0
        %3542 = vmatpush.bf16.msra.mxu0 0
        %3543 = vmatpush.bf16.msra.mxu0 0
        %3544 = vmatpush.bf16.msra.mxu0 0
        %3545 = vmatpush.bf16.msra.mxu0 0
        %3546 = vmatpush.bf16.msra.mxu0 0
        %3547 = vmatpush.bf16.msra.mxu0 %v3261
        %3548 = vmatmul.bf16.gmra.mxu0 %v3217
        %v3549 = vpop.f32.mrf.mxu0
        %v3550 = vadd.f32 0.0, %v3549
        %v3551 = vpop.f32.mrf.mxu0
        %3552 = vdwg.mxu0
        %3553 = vmatpush.bf16.msra.mxu0 0
        %3554 = vmatpush.bf16.msra.mxu0 0
        %3555 = vmatpush.bf16.msra.mxu0 0
        %3556 = vmatpush.bf16.msra.mxu0 0
        %3557 = vmatpush.bf16.msra.mxu0 0
        %3558 = vmatpush.bf16.msra.mxu0 0
        %3559 = vmatpush.bf16.msra.mxu0 0
        %3560 = vmatpush.bf16.msra.mxu0 %v3263
        %3561 = vmatmul.bf16.gmra.mxu0 %v3217
        %v3562 = vpop.f32.mrf.mxu0
        %v3563 = vadd.f32 0.0, %v3562
        %v3564 = vpop.f32.mrf.mxu0
        %3565 = vdwg.mxu0
        %3566 = vmatpush.bf16.msra.mxu0 0
        %3567 = vmatpush.bf16.msra.mxu0 0
        %3568 = vmatpush.bf16.msra.mxu0 0
        %3569 = vmatpush.bf16.msra.mxu0 0
        %3570 = vmatpush.bf16.msra.mxu0 0
        %3571 = vmatpush.bf16.msra.mxu0 0
        %3572 = vmatpush.bf16.msra.mxu0 0
        %3573 = vmatpush.bf16.msra.mxu0 %v3265
        %3574 = vmatmul.bf16.gmra.mxu0 %v3217
        %v3575 = vpop.f32.mrf.mxu0
        %v3576 = vadd.f32 0.0, %v3575
        %v3577 = vpop.f32.mrf.mxu0
        %3578 = vdwg.mxu0
        %3579 = vrot.lane.b32.xlu0 %v3277, 111
        %v3580 = vpop.permute.xlu0 %3579
        %3581 = vrot.lane.b32.xlu0 %v3290, 111
        %v3582 = vpop.permute.xlu0 %3581
        %3583 = vrot.lane.b32.xlu0 %v3303, 111
        %v3584 = vpop.permute.xlu0 %3583
        %3585 = vrot.lane.b32.xlu0 %v3316, 111
        %v3586 = vpop.permute.xlu0 %3585
        %3587 = vrot.lane.b32.xlu0 %v3329, 111
        %v3588 = vpop.permute.xlu0 %3587
        %3589 = vrot.lane.b32.xlu0 %v3342, 111
        %v3590 = vpop.permute.xlu0 %3589
        %3591 = vrot.lane.b32.xlu0 %v3355, 111
        %v3592 = vpop.permute.xlu0 %3591
        %3593 = vrot.lane.b32.xlu0 %v3368, 111
        %v3594 = vpop.permute.xlu0 %3593
        %3595 = vrot.lane.b32.xlu0 %v3381, 111
        %v3596 = vpop.permute.xlu0 %3595
        %3597 = vrot.lane.b32.xlu0 %v3394, 111
        %v3598 = vpop.permute.xlu0 %3597
        %3599 = vrot.lane.b32.xlu0 %v3407, 111
        %v3600 = vpop.permute.xlu0 %3599
        %3601 = vrot.lane.b32.xlu0 %v3420, 111
        %v3602 = vpop.permute.xlu0 %3601
        %3603 = vrot.lane.b32.xlu0 %v3433, 111
        %v3604 = vpop.permute.xlu0 %3603
        %3605 = vrot.lane.b32.xlu0 %v3446, 111
        %v3606 = vpop.permute.xlu0 %3605
        %3607 = vrot.lane.b32.xlu0 %v3459, 111
        %v3608 = vpop.permute.xlu0 %3607
        %3609 = vrot.lane.b32.xlu0 %v3472, 111
        %v3610 = vpop.permute.xlu0 %3609
        %3611 = vrot.lane.b32.xlu0 %v3485, 111
        %v3612 = vpop.permute.xlu0 %3611
        %3613 = vrot.lane.b32.xlu0 %v3498, 111
        %v3614 = vpop.permute.xlu0 %3613
        %3615 = vrot.lane.b32.xlu0 %v3511, 111
        %v3616 = vpop.permute.xlu0 %3615
        %3617 = vrot.lane.b32.xlu0 %v3524, 111
        %v3618 = vpop.permute.xlu0 %3617
        %3619 = vrot.lane.b32.xlu0 %v3537, 111
        %v3620 = vpop.permute.xlu0 %3619
        %3621 = vrot.lane.b32.xlu0 %v3550, 111
        %v3622 = vpop.permute.xlu0 %3621
        %3623 = vrot.lane.b32.xlu0 %v3563, 111
        %v3624 = vpop.permute.xlu0 %3623
        %3625 = vrot.lane.b32.xlu0 %v3576, 111
        %v3626 = vpop.permute.xlu0 %3625
        %vm3627 = vcmp.lt.s32.totalorder %v753, 111
        %v3628 = vsel %vm3627, %v3624, %v3626
        %v3629 = vsel %vm3627, %v3622, %v3624
        %v3630 = vsel %vm3627, %v3620, %v3622
        %v3631 = vsel %vm3627, %v3618, %v3620
        %v3632 = vsel %vm3627, %v3616, %v3618
        %v3633 = vsel %vm3627, %v3614, %v3616
        %v3634 = vsel %vm3627, %v3612, %v3614
        %v3635 = vsel %vm3627, %v3610, %v3612
        %v3636 = vsel %vm3627, %v3608, %v3610
        %v3637 = vsel %vm3627, %v3606, %v3608
        %v3638 = vsel %vm3627, %v3604, %v3606
        %v3639 = vsel %vm3627, %v3602, %v3604
        %v3640 = vsel %vm3627, %v3600, %v3602
        %v3641 = vsel %vm3627, %v3598, %v3600
        %v3642 = vsel %vm3627, %v3596, %v3598
        %v3643 = vsel %vm3627, %v3594, %v3596
        %v3644 = vsel %vm3627, %v3592, %v3594
        %v3645 = vsel %vm3627, %v3590, %v3592
        %v3646 = vsel %vm3627, %v3588, %v3590
        %v3647 = vsel %vm3627, %v3586, %v3588
        %v3648 = vsel %vm3627, %v3584, %v3586
        %v3649 = vsel %vm3627, %v3582, %v3584
        %v3650 = vsel %vm3627, %v3580, %v3582
        %v3651 = vsel %vm3627, %v3626, %v3580
        %v3652 = vadd.f32 %v3161, %v3650
        %v3653 = vadd.f32 %v3162, %v3649
        %v3654 = vadd.f32 %v3163, %v3648
        %v3655 = vadd.f32 %v3164, %v3647
        %v3656 = vadd.f32 %v3165, %v3646
        %v3657 = vadd.f32 %v3166, %v3645
        %v3658 = vadd.f32 %v3167, %v3644
        %v3659 = vadd.f32 %v3168, %v3643
        %v3660 = vadd.f32 %v3169, %v3642
        %v3661 = vadd.f32 %v3170, %v3641
        %v3662 = vadd.f32 %v3171, %v3640
        %v3663 = vadd.f32 %v3172, %v3639
        %v3664 = vadd.f32 %v3173, %v3638
        %v3665 = vadd.f32 %v3174, %v3637
        %v3666 = vadd.f32 %v3175, %v3636
        %v3667 = vadd.f32 %v3176, %v3635
        %v3668 = vadd.f32 %v3177, %v3634
        %v3669 = vadd.f32 %v3178, %v3633
        %v3670 = vadd.f32 %v3179, %v3632
        %v3671 = vadd.f32 %v3180, %v3631
        %v3672 = vadd.f32 %v3181, %v3630
        %v3673 = vadd.f32 %v3182, %v3629
        %v3674 = vadd.f32 %v3183, %v3628
        %v3675 = vadd.f32 %v3184, %v3651
        %3676 = vst [vmem:[#allocation1] ss:$4 sm:$0xff] %v273
        %s3677 = scalar_lea.vmem [#allocation1], 32
        %3678 = vst [vmem:[%s3677] ss:$4 sm:$0xff] %v274
        %v3679 = vld.sshfl [vmem:[#allocation1] sm:$0xff pattern:$0x73625140]
        %v3680 = vld.sshfl [vmem:[#allocation1 + $0x8] sm:$0xff pattern:$0x73625140]
        %v3681 = vld.sshfl [vmem:[#allocation1 + $0x10] sm:$0xff pattern:$0x73625140]
        %v3682 = vld.sshfl [vmem:[#allocation1 + $0x18] sm:$0xff pattern:$0x73625140]
        %v3683 = vld.sshfl [vmem:[#allocation1 + $0x20] sm:$0xff pattern:$0x73625140]
        %v3684 = vld.sshfl [vmem:[#allocation1 + $0x28] sm:$0xff pattern:$0x73625140]
        %v3685 = vld.sshfl [vmem:[#allocation1 + $0x30] sm:$0xff pattern:$0x73625140]
        %v3686 = vld.sshfl [vmem:[#allocation1 + $0x38] sm:$0xff pattern:$0x73625140]
        %3687 = vst [vmem:[#allocation1] ss:$4 sm:$0xff] %v275
        %3688 = vst [vmem:[%s3677] ss:$4 sm:$0xff] %v276
        %v3689 = vld.sshfl [vmem:[#allocation1] sm:$0xff pattern:$0x73625140]
        %v3690 = vld.sshfl [vmem:[#allocation1 + $0x8] sm:$0xff pattern:$0x73625140]
        %v3691 = vld.sshfl [vmem:[#allocation1 + $0x10] sm:$0xff pattern:$0x73625140]
        %v3692 = vld.sshfl [vmem:[#allocation1 + $0x18] sm:$0xff pattern:$0x73625140]
        %v3693 = vld.sshfl [vmem:[#allocation1 + $0x20] sm:$0xff pattern:$0x73625140]
        %v3694 = vld.sshfl [vmem:[#allocation1 + $0x28] sm:$0xff pattern:$0x73625140]
        %v3695 = vld.sshfl [vmem:[#allocation1 + $0x30] sm:$0xff pattern:$0x73625140]
        %v3696 = vld.sshfl [vmem:[#allocation1 + $0x38] sm:$0xff pattern:$0x73625140]
        %3697 = vst [vmem:[#allocation1] ss:$4 sm:$0xff] %v277
        %3698 = vst [vmem:[%s3677] ss:$4 sm:$0xff] %v278
        %v3699 = vld.sshfl [vmem:[#allocation1] sm:$0xff pattern:$0x73625140]
        %v3700 = vld.sshfl [vmem:[#allocation1 + $0x8] sm:$0xff pattern:$0x73625140]
        %v3701 = vld.sshfl [vmem:[#allocation1 + $0x10] sm:$0xff pattern:$0x73625140]
        %v3702 = vld.sshfl [vmem:[#allocation1 + $0x18] sm:$0xff pattern:$0x73625140]
        %v3703 = vld.sshfl [vmem:[#allocation1 + $0x20] sm:$0xff pattern:$0x73625140]
        %v3704 = vld.sshfl [vmem:[#allocation1 + $0x28] sm:$0xff pattern:$0x73625140]
        %v3705 = vld.sshfl [vmem:[#allocation1 + $0x30] sm:$0xff pattern:$0x73625140]
        %v3706 = vld.sshfl [vmem:[#allocation1 + $0x38] sm:$0xff pattern:$0x73625140]
        %v3708 = vsel %vm339, %v286, 0
        %v3710 = vsel %vm343, %v3679, 0
        %v3712 = vsel %vm343, %v3680, 0
        %v3714 = vsel %vm343, %v3681, 0
        %v3716 = vsel %vm343, %v3682, 0
        %v3718 = vsel %vm343, %v3683, 0
        %v3720 = vsel %vm343, %v3684, 0
        %v3722 = vsel %vm343, %v3685, 0
        %v3724 = vsel %vm343, %v3686, 0
        %v3726 = vsel %vm343, %v3689, 0
        %v3728 = vsel %vm343, %v3690, 0
        %v3730 = vsel %vm343, %v3691, 0
        %v3732 = vsel %vm343, %v3692, 0
        %v3734 = vsel %vm343, %v3693, 0
        %v3736 = vsel %vm343, %v3694, 0
        %v3738 = vsel %vm343, %v3695, 0
        %v3740 = vsel %vm343, %v3696, 0
        %v3742 = vsel %vm343, %v3699, 0
        %v3744 = vsel %vm343, %v3700, 0
        %v3746 = vsel %vm343, %v3701, 0
        %v3748 = vsel %vm343, %v3702, 0
        %v3750 = vsel %vm343, %v3703, 0
        %v3752 = vsel %vm343, %v3704, 0
        %v3754 = vsel %vm343, %v3705, 0
        %v3756 = vsel %vm343, %v3706, 0
        %3758 = vmatpush.bf16.msra.mxu0 0
        %3759 = vmatpush.bf16.msra.mxu0 0
        %3760 = vmatpush.bf16.msra.mxu0 0
        %3761 = vmatpush.bf16.msra.mxu0 0
        %3762 = vmatpush.bf16.msra.mxu0 0
        %3763 = vmatpush.bf16.msra.mxu0 0
        %3764 = vmatpush.bf16.msra.mxu0 0
        %3765 = vmatpush.bf16.msra.mxu0 %v3710
        %3766 = vmatmul.bf16.gmra.mxu0 %v3708
        %v3767 = vpop.f32.mrf.mxu0
        %v3768 = vadd.f32 0.0, %v3767
        %v3769 = vpop.f32.mrf.mxu0
        %3770 = vdwg.mxu0
        %3771 = vmatpush.bf16.msra.mxu0 0
        %3772 = vmatpush.bf16.msra.mxu0 0
        %3773 = vmatpush.bf16.msra.mxu0 0
        %3774 = vmatpush.bf16.msra.mxu0 0
        %3775 = vmatpush.bf16.msra.mxu0 0
        %3776 = vmatpush.bf16.msra.mxu0 0
        %3777 = vmatpush.bf16.msra.mxu0 0
        %3778 = vmatpush.bf16.msra.mxu0 %v3712
        %3779 = vmatmul.bf16.gmra.mxu0 %v3708
        %v3780 = vpop.f32.mrf.mxu0
        %v3781 = vadd.f32 0.0, %v3780
        %v3782 = vpop.f32.mrf.mxu0
        %3783 = vdwg.mxu0
        %3784 = vmatpush.bf16.msra.mxu0 0
        %3785 = vmatpush.bf16.msra.mxu0 0
        %3786 = vmatpush.bf16.msra.mxu0 0
        %3787 = vmatpush.bf16.msra.mxu0 0
        %3788 = vmatpush.bf16.msra.mxu0 0
        %3789 = vmatpush.bf16.msra.mxu0 0
        %3790 = vmatpush.bf16.msra.mxu0 0
        %3791 = vmatpush.bf16.msra.mxu0 %v3714
        %3792 = vmatmul.bf16.gmra.mxu0 %v3708
        %v3793 = vpop.f32.mrf.mxu0
        %v3794 = vadd.f32 0.0, %v3793
        %v3795 = vpop.f32.mrf.mxu0
        %3796 = vdwg.mxu0
        %3797 = vmatpush.bf16.msra.mxu0 0
        %3798 = vmatpush.bf16.msra.mxu0 0
        %3799 = vmatpush.bf16.msra.mxu0 0
        %3800 = vmatpush.bf16.msra.mxu0 0
        %3801 = vmatpush.bf16.msra.mxu0 0
        %3802 = vmatpush.bf16.msra.mxu0 0
        %3803 = vmatpush.bf16.msra.mxu0 0
        %3804 = vmatpush.bf16.msra.mxu0 %v3716
        %3805 = vmatmul.bf16.gmra.mxu0 %v3708
        %v3806 = vpop.f32.mrf.mxu0
        %v3807 = vadd.f32 0.0, %v3806
        %v3808 = vpop.f32.mrf.mxu0
        %3809 = vdwg.mxu0
        %3810 = vmatpush.bf16.msra.mxu0 0
        %3811 = vmatpush.bf16.msra.mxu0 0
        %3812 = vmatpush.bf16.msra.mxu0 0
        %3813 = vmatpush.bf16.msra.mxu0 0
        %3814 = vmatpush.bf16.msra.mxu0 0
        %3815 = vmatpush.bf16.msra.mxu0 0
        %3816 = vmatpush.bf16.msra.mxu0 0
        %3817 = vmatpush.bf16.msra.mxu0 %v3718
        %3818 = vmatmul.bf16.gmra.mxu0 %v3708
        %v3819 = vpop.f32.mrf.mxu0
        %v3820 = vadd.f32 0.0, %v3819
        %v3821 = vpop.f32.mrf.mxu0
        %3822 = vdwg.mxu0
        %3823 = vmatpush.bf16.msra.mxu0 0
        %3824 = vmatpush.bf16.msra.mxu0 0
        %3825 = vmatpush.bf16.msra.mxu0 0
        %3826 = vmatpush.bf16.msra.mxu0 0
        %3827 = vmatpush.bf16.msra.mxu0 0
        %3828 = vmatpush.bf16.msra.mxu0 0
        %3829 = vmatpush.bf16.msra.mxu0 0
        %3830 = vmatpush.bf16.msra.mxu0 %v3720
        %3831 = vmatmul.bf16.gmra.mxu0 %v3708
        %v3832 = vpop.f32.mrf.mxu0
        %v3833 = vadd.f32 0.0, %v3832
        %v3834 = vpop.f32.mrf.mxu0
        %3835 = vdwg.mxu0
        %3836 = vmatpush.bf16.msra.mxu0 0
        %3837 = vmatpush.bf16.msra.mxu0 0
        %3838 = vmatpush.bf16.msra.mxu0 0
        %3839 = vmatpush.bf16.msra.mxu0 0
        %3840 = vmatpush.bf16.msra.mxu0 0
        %3841 = vmatpush.bf16.msra.mxu0 0
        %3842 = vmatpush.bf16.msra.mxu0 0
        %3843 = vmatpush.bf16.msra.mxu0 %v3722
        %3844 = vmatmul.bf16.gmra.mxu0 %v3708
        %v3845 = vpop.f32.mrf.mxu0
        %v3846 = vadd.f32 0.0, %v3845
        %v3847 = vpop.f32.mrf.mxu0
        %3848 = vdwg.mxu0
        %3849 = vmatpush.bf16.msra.mxu0 0
        %3850 = vmatpush.bf16.msra.mxu0 0
        %3851 = vmatpush.bf16.msra.mxu0 0
        %3852 = vmatpush.bf16.msra.mxu0 0
        %3853 = vmatpush.bf16.msra.mxu0 0
        %3854 = vmatpush.bf16.msra.mxu0 0
        %3855 = vmatpush.bf16.msra.mxu0 0
        %3856 = vmatpush.bf16.msra.mxu0 %v3724
        %3857 = vmatmul.bf16.gmra.mxu0 %v3708
        %v3858 = vpop.f32.mrf.mxu0
        %v3859 = vadd.f32 0.0, %v3858
        %v3860 = vpop.f32.mrf.mxu0
        %3861 = vdwg.mxu0
        %3862 = vmatpush.bf16.msra.mxu0 0
        %3863 = vmatpush.bf16.msra.mxu0 0
        %3864 = vmatpush.bf16.msra.mxu0 0
        %3865 = vmatpush.bf16.msra.mxu0 0
        %3866 = vmatpush.bf16.msra.mxu0 0
        %3867 = vmatpush.bf16.msra.mxu0 0
        %3868 = vmatpush.bf16.msra.mxu0 0
        %3869 = vmatpush.bf16.msra.mxu0 %v3726
        %3870 = vmatmul.bf16.gmra.mxu0 %v3708
        %v3871 = vpop.f32.mrf.mxu0
        %v3872 = vadd.f32 0.0, %v3871
        %v3873 = vpop.f32.mrf.mxu0
        %3874 = vdwg.mxu0
        %3875 = vmatpush.bf16.msra.mxu0 0
        %3876 = vmatpush.bf16.msra.mxu0 0
        %3877 = vmatpush.bf16.msra.mxu0 0
        %3878 = vmatpush.bf16.msra.mxu0 0
        %3879 = vmatpush.bf16.msra.mxu0 0
        %3880 = vmatpush.bf16.msra.mxu0 0
        %3881 = vmatpush.bf16.msra.mxu0 0
        %3882 = vmatpush.bf16.msra.mxu0 %v3728
        %3883 = vmatmul.bf16.gmra.mxu0 %v3708
        %v3884 = vpop.f32.mrf.mxu0
        %v3885 = vadd.f32 0.0, %v3884
        %v3886 = vpop.f32.mrf.mxu0
        %3887 = vdwg.mxu0
        %3888 = vmatpush.bf16.msra.mxu0 0
        %3889 = vmatpush.bf16.msra.mxu0 0
        %3890 = vmatpush.bf16.msra.mxu0 0
        %3891 = vmatpush.bf16.msra.mxu0 0
        %3892 = vmatpush.bf16.msra.mxu0 0
        %3893 = vmatpush.bf16.msra.mxu0 0
        %3894 = vmatpush.bf16.msra.mxu0 0
        %3895 = vmatpush.bf16.msra.mxu0 %v3730
        %3896 = vmatmul.bf16.gmra.mxu0 %v3708
        %v3897 = vpop.f32.mrf.mxu0
        %v3898 = vadd.f32 0.0, %v3897
        %v3899 = vpop.f32.mrf.mxu0
        %3900 = vdwg.mxu0
        %3901 = vmatpush.bf16.msra.mxu0 0
        %3902 = vmatpush.bf16.msra.mxu0 0
        %3903 = vmatpush.bf16.msra.mxu0 0
        %3904 = vmatpush.bf16.msra.mxu0 0
        %3905 = vmatpush.bf16.msra.mxu0 0
        %3906 = vmatpush.bf16.msra.mxu0 0
        %3907 = vmatpush.bf16.msra.mxu0 0
        %3908 = vmatpush.bf16.msra.mxu0 %v3732
        %3909 = vmatmul.bf16.gmra.mxu0 %v3708
        %v3910 = vpop.f32.mrf.mxu0
        %v3911 = vadd.f32 0.0, %v3910
        %v3912 = vpop.f32.mrf.mxu0
        %3913 = vdwg.mxu0
        %3914 = vmatpush.bf16.msra.mxu0 0
        %3915 = vmatpush.bf16.msra.mxu0 0
        %3916 = vmatpush.bf16.msra.mxu0 0
        %3917 = vmatpush.bf16.msra.mxu0 0
        %3918 = vmatpush.bf16.msra.mxu0 0
        %3919 = vmatpush.bf16.msra.mxu0 0
        %3920 = vmatpush.bf16.msra.mxu0 0
        %3921 = vmatpush.bf16.msra.mxu0 %v3734
        %3922 = vmatmul.bf16.gmra.mxu0 %v3708
        %v3923 = vpop.f32.mrf.mxu0
        %v3924 = vadd.f32 0.0, %v3923
        %v3925 = vpop.f32.mrf.mxu0
        %3926 = vdwg.mxu0
        %3927 = vmatpush.bf16.msra.mxu0 0
        %3928 = vmatpush.bf16.msra.mxu0 0
        %3929 = vmatpush.bf16.msra.mxu0 0
        %3930 = vmatpush.bf16.msra.mxu0 0
        %3931 = vmatpush.bf16.msra.mxu0 0
        %3932 = vmatpush.bf16.msra.mxu0 0
        %3933 = vmatpush.bf16.msra.mxu0 0
        %3934 = vmatpush.bf16.msra.mxu0 %v3736
        %3935 = vmatmul.bf16.gmra.mxu0 %v3708
        %v3936 = vpop.f32.mrf.mxu0
        %v3937 = vadd.f32 0.0, %v3936
        %v3938 = vpop.f32.mrf.mxu0
        %3939 = vdwg.mxu0
        %3940 = vmatpush.bf16.msra.mxu0 0
        %3941 = vmatpush.bf16.msra.mxu0 0
        %3942 = vmatpush.bf16.msra.mxu0 0
        %3943 = vmatpush.bf16.msra.mxu0 0
        %3944 = vmatpush.bf16.msra.mxu0 0
        %3945 = vmatpush.bf16.msra.mxu0 0
        %3946 = vmatpush.bf16.msra.mxu0 0
        %3947 = vmatpush.bf16.msra.mxu0 %v3738
        %3948 = vmatmul.bf16.gmra.mxu0 %v3708
        %v3949 = vpop.f32.mrf.mxu0
        %v3950 = vadd.f32 0.0, %v3949
        %v3951 = vpop.f32.mrf.mxu0
        %3952 = vdwg.mxu0
        %3953 = vmatpush.bf16.msra.mxu0 0
        %3954 = vmatpush.bf16.msra.mxu0 0
        %3955 = vmatpush.bf16.msra.mxu0 0
        %3956 = vmatpush.bf16.msra.mxu0 0
        %3957 = vmatpush.bf16.msra.mxu0 0
        %3958 = vmatpush.bf16.msra.mxu0 0
        %3959 = vmatpush.bf16.msra.mxu0 0
        %3960 = vmatpush.bf16.msra.mxu0 %v3740
        %3961 = vmatmul.bf16.gmra.mxu0 %v3708
        %v3962 = vpop.f32.mrf.mxu0
        %v3963 = vadd.f32 0.0, %v3962
        %v3964 = vpop.f32.mrf.mxu0
        %3965 = vdwg.mxu0
        %3966 = vmatpush.bf16.msra.mxu0 0
        %3967 = vmatpush.bf16.msra.mxu0 0
        %3968 = vmatpush.bf16.msra.mxu0 0
        %3969 = vmatpush.bf16.msra.mxu0 0
        %3970 = vmatpush.bf16.msra.mxu0 0
        %3971 = vmatpush.bf16.msra.mxu0 0
        %3972 = vmatpush.bf16.msra.mxu0 0
        %3973 = vmatpush.bf16.msra.mxu0 %v3742
        %3974 = vmatmul.bf16.gmra.mxu0 %v3708
        %v3975 = vpop.f32.mrf.mxu0
        %v3976 = vadd.f32 0.0, %v3975
        %v3977 = vpop.f32.mrf.mxu0
        %3978 = vdwg.mxu0
        %3979 = vmatpush.bf16.msra.mxu0 0
        %3980 = vmatpush.bf16.msra.mxu0 0
        %3981 = vmatpush.bf16.msra.mxu0 0
        %3982 = vmatpush.bf16.msra.mxu0 0
        %3983 = vmatpush.bf16.msra.mxu0 0
        %3984 = vmatpush.bf16.msra.mxu0 0
        %3985 = vmatpush.bf16.msra.mxu0 0
        %3986 = vmatpush.bf16.msra.mxu0 %v3744
        %3987 = vmatmul.bf16.gmra.mxu0 %v3708
        %v3988 = vpop.f32.mrf.mxu0
        %v3989 = vadd.f32 0.0, %v3988
        %v3990 = vpop.f32.mrf.mxu0
        %3991 = vdwg.mxu0
        %3992 = vmatpush.bf16.msra.mxu0 0
        %3993 = vmatpush.bf16.msra.mxu0 0
        %3994 = vmatpush.bf16.msra.mxu0 0
        %3995 = vmatpush.bf16.msra.mxu0 0
        %3996 = vmatpush.bf16.msra.mxu0 0
        %3997 = vmatpush.bf16.msra.mxu0 0
        %3998 = vmatpush.bf16.msra.mxu0 0
        %3999 = vmatpush.bf16.msra.mxu0 %v3746
        %4000 = vmatmul.bf16.gmra.mxu0 %v3708
        %v4001 = vpop.f32.mrf.mxu0
        %v4002 = vadd.f32 0.0, %v4001
        %v4003 = vpop.f32.mrf.mxu0
        %4004 = vdwg.mxu0
        %4005 = vmatpush.bf16.msra.mxu0 0
        %4006 = vmatpush.bf16.msra.mxu0 0
        %4007 = vmatpush.bf16.msra.mxu0 0
        %4008 = vmatpush.bf16.msra.mxu0 0
        %4009 = vmatpush.bf16.msra.mxu0 0
        %4010 = vmatpush.bf16.msra.mxu0 0
        %4011 = vmatpush.bf16.msra.mxu0 0
        %4012 = vmatpush.bf16.msra.mxu0 %v3748
        %4013 = vmatmul.bf16.gmra.mxu0 %v3708
        %v4014 = vpop.f32.mrf.mxu0
        %v4015 = vadd.f32 0.0, %v4014
        %v4016 = vpop.f32.mrf.mxu0
        %4017 = vdwg.mxu0
        %4018 = vmatpush.bf16.msra.mxu0 0
        %4019 = vmatpush.bf16.msra.mxu0 0
        %4020 = vmatpush.bf16.msra.mxu0 0
        %4021 = vmatpush.bf16.msra.mxu0 0
        %4022 = vmatpush.bf16.msra.mxu0 0
        %4023 = vmatpush.bf16.msra.mxu0 0
        %4024 = vmatpush.bf16.msra.mxu0 0
        %4025 = vmatpush.bf16.msra.mxu0 %v3750
        %4026 = vmatmul.bf16.gmra.mxu0 %v3708
        %v4027 = vpop.f32.mrf.mxu0
        %v4028 = vadd.f32 0.0, %v4027
        %v4029 = vpop.f32.mrf.mxu0
        %4030 = vdwg.mxu0
        %4031 = vmatpush.bf16.msra.mxu0 0
        %4032 = vmatpush.bf16.msra.mxu0 0
        %4033 = vmatpush.bf16.msra.mxu0 0
        %4034 = vmatpush.bf16.msra.mxu0 0
        %4035 = vmatpush.bf16.msra.mxu0 0
        %4036 = vmatpush.bf16.msra.mxu0 0
        %4037 = vmatpush.bf16.msra.mxu0 0
        %4038 = vmatpush.bf16.msra.mxu0 %v3752
        %4039 = vmatmul.bf16.gmra.mxu0 %v3708
        %v4040 = vpop.f32.mrf.mxu0
        %v4041 = vadd.f32 0.0, %v4040
        %v4042 = vpop.f32.mrf.mxu0
        %4043 = vdwg.mxu0
        %4044 = vmatpush.bf16.msra.mxu0 0
        %4045 = vmatpush.bf16.msra.mxu0 0
        %4046 = vmatpush.bf16.msra.mxu0 0
        %4047 = vmatpush.bf16.msra.mxu0 0
        %4048 = vmatpush.bf16.msra.mxu0 0
        %4049 = vmatpush.bf16.msra.mxu0 0
        %4050 = vmatpush.bf16.msra.mxu0 0
        %4051 = vmatpush.bf16.msra.mxu0 %v3754
        %4052 = vmatmul.bf16.gmra.mxu0 %v3708
        %v4053 = vpop.f32.mrf.mxu0
        %v4054 = vadd.f32 0.0, %v4053
        %v4055 = vpop.f32.mrf.mxu0
        %4056 = vdwg.mxu0
        %4057 = vmatpush.bf16.msra.mxu0 0
        %4058 = vmatpush.bf16.msra.mxu0 0
        %4059 = vmatpush.bf16.msra.mxu0 0
        %4060 = vmatpush.bf16.msra.mxu0 0
        %4061 = vmatpush.bf16.msra.mxu0 0
        %4062 = vmatpush.bf16.msra.mxu0 0
        %4063 = vmatpush.bf16.msra.mxu0 0
        %4064 = vmatpush.bf16.msra.mxu0 %v3756
        %4065 = vmatmul.bf16.gmra.mxu0 %v3708
        %v4066 = vpop.f32.mrf.mxu0
        %v4067 = vadd.f32 0.0, %v4066
        %v4068 = vpop.f32.mrf.mxu0
        %4069 = vdwg.mxu0
        %4070 = vrot.lane.b32.xlu0 %v3768, 110
        %v4071 = vpop.permute.xlu0 %4070
        %4072 = vrot.lane.b32.xlu0 %v3781, 110
        %v4073 = vpop.permute.xlu0 %4072
        %4074 = vrot.lane.b32.xlu0 %v3794, 110
        %v4075 = vpop.permute.xlu0 %4074
        %4076 = vrot.lane.b32.xlu0 %v3807, 110
        %v4077 = vpop.permute.xlu0 %4076
        %4078 = vrot.lane.b32.xlu0 %v3820, 110
        %v4079 = vpop.permute.xlu0 %4078
        %4080 = vrot.lane.b32.xlu0 %v3833, 110
        %v4081 = vpop.permute.xlu0 %4080
        %4082 = vrot.lane.b32.xlu0 %v3846, 110
        %v4083 = vpop.permute.xlu0 %4082
        %4084 = vrot.lane.b32.xlu0 %v3859, 110
        %v4085 = vpop.permute.xlu0 %4084
        %4086 = vrot.lane.b32.xlu0 %v3872, 110
        %v4087 = vpop.permute.xlu0 %4086
        %4088 = vrot.lane.b32.xlu0 %v3885, 110
        %v4089 = vpop.permute.xlu0 %4088
        %4090 = vrot.lane.b32.xlu0 %v3898, 110
        %v4091 = vpop.permute.xlu0 %4090
        %4092 = vrot.lane.b32.xlu0 %v3911, 110
        %v4093 = vpop.permute.xlu0 %4092
        %4094 = vrot.lane.b32.xlu0 %v3924, 110
        %v4095 = vpop.permute.xlu0 %4094
        %4096 = vrot.lane.b32.xlu0 %v3937, 110
        %v4097 = vpop.permute.xlu0 %4096
        %4098 = vrot.lane.b32.xlu0 %v3950, 110
        %v4099 = vpop.permute.xlu0 %4098
        %4100 = vrot.lane.b32.xlu0 %v3963, 110
        %v4101 = vpop.permute.xlu0 %4100
        %4102 = vrot.lane.b32.xlu0 %v3976, 110
        %v4103 = vpop.permute.xlu0 %4102
        %4104 = vrot.lane.b32.xlu0 %v3989, 110
        %v4105 = vpop.permute.xlu0 %4104
        %4106 = vrot.lane.b32.xlu0 %v4002, 110
        %v4107 = vpop.permute.xlu0 %4106
        %4108 = vrot.lane.b32.xlu0 %v4015, 110
        %v4109 = vpop.permute.xlu0 %4108
        %4110 = vrot.lane.b32.xlu0 %v4028, 110
        %v4111 = vpop.permute.xlu0 %4110
        %4112 = vrot.lane.b32.xlu0 %v4041, 110
        %v4113 = vpop.permute.xlu0 %4112
        %4114 = vrot.lane.b32.xlu0 %v4054, 110
        %v4115 = vpop.permute.xlu0 %4114
        %4116 = vrot.lane.b32.xlu0 %v4067, 110
        %v4117 = vpop.permute.xlu0 %4116
        %vm4118 = vcmp.lt.s32.totalorder %v753, 110
        %v4119 = vsel %vm4118, %v4115, %v4117
        %v4120 = vsel %vm4118, %v4113, %v4115
        %v4121 = vsel %vm4118, %v4111, %v4113
        %v4122 = vsel %vm4118, %v4109, %v4111
        %v4123 = vsel %vm4118, %v4107, %v4109
        %v4124 = vsel %vm4118, %v4105, %v4107
        %v4125 = vsel %vm4118, %v4103, %v4105
        %v4126 = vsel %vm4118, %v4101, %v4103
        %v4127 = vsel %vm4118, %v4099, %v4101
        %v4128 = vsel %vm4118, %v4097, %v4099
        %v4129 = vsel %vm4118, %v4095, %v4097
        %v4130 = vsel %vm4118, %v4093, %v4095
        %v4131 = vsel %vm4118, %v4091, %v4093
        %v4132 = vsel %vm4118, %v4089, %v4091
        %v4133 = vsel %vm4118, %v4087, %v4089
        %v4134 = vsel %vm4118, %v4085, %v4087
        %v4135 = vsel %vm4118, %v4083, %v4085
        %v4136 = vsel %vm4118, %v4081, %v4083
        %v4137 = vsel %vm4118, %v4079, %v4081
        %v4138 = vsel %vm4118, %v4077, %v4079
        %v4139 = vsel %vm4118, %v4075, %v4077
        %v4140 = vsel %vm4118, %v4073, %v4075
        %v4141 = vsel %vm4118, %v4071, %v4073
        %v4142 = vsel %vm4118, %v4117, %v4071
        %v4143 = vadd.f32 %v3652, %v4141
        %v4144 = vadd.f32 %v3653, %v4140
        %v4145 = vadd.f32 %v3654, %v4139
        %v4146 = vadd.f32 %v3655, %v4138
        %v4147 = vadd.f32 %v3656, %v4137
        %v4148 = vadd.f32 %v3657, %v4136
        %v4149 = vadd.f32 %v3658, %v4135
        %v4150 = vadd.f32 %v3659, %v4134
        %v4151 = vadd.f32 %v3660, %v4133
        %v4152 = vadd.f32 %v3661, %v4132
        %v4153 = vadd.f32 %v3662, %v4131
        %v4154 = vadd.f32 %v3663, %v4130
        %v4155 = vadd.f32 %v3664, %v4129
        %v4156 = vadd.f32 %v3665, %v4128
        %v4157 = vadd.f32 %v3666, %v4127
        %v4158 = vadd.f32 %v3667, %v4126
        %v4159 = vadd.f32 %v3668, %v4125
        %v4160 = vadd.f32 %v3669, %v4124
        %v4161 = vadd.f32 %v3670, %v4123
        %v4162 = vadd.f32 %v3671, %v4122
        %v4163 = vadd.f32 %v3672, %v4121
        %v4164 = vadd.f32 %v3673, %v4120
        %v4165 = vadd.f32 %v3674, %v4119
        %v4166 = vadd.f32 %v3675, %v4142
        %4167 = vst [vmem:[#allocation1] ss:$4 sm:$0xff] %v273
        %s4168 = scalar_lea.vmem [#allocation1], 32
        %4169 = vst [vmem:[%s4168] ss:$4 sm:$0xff] %v274
        %v4170 = vld.sshfl [vmem:[#allocation1] sm:$0xff pattern:$0x73625140]
        %v4171 = vld.sshfl [vmem:[#allocation1 + $0x8] sm:$0xff pattern:$0x73625140]
        %v4172 = vld.sshfl [vmem:[#allocation1 + $0x10] sm:$0xff pattern:$0x73625140]
        %v4173 = vld.sshfl [vmem:[#allocation1 + $0x18] sm:$0xff pattern:$0x73625140]
        %v4174 = vld.sshfl [vmem:[#allocation1 + $0x20] sm:$0xff pattern:$0x73625140]
        %v4175 = vld.sshfl [vmem:[#allocation1 + $0x28] sm:$0xff pattern:$0x73625140]
        %v4176 = vld.sshfl [vmem:[#allocation1 + $0x30] sm:$0xff pattern:$0x73625140]
        %v4177 = vld.sshfl [vmem:[#allocation1 + $0x38] sm:$0xff pattern:$0x73625140]
        %4178 = vst [vmem:[#allocation1] ss:$4 sm:$0xff] %v275
        %4179 = vst [vmem:[%s4168] ss:$4 sm:$0xff] %v276
        %v4180 = vld.sshfl [vmem:[#allocation1] sm:$0xff pattern:$0x73625140]
        %v4181 = vld.sshfl [vmem:[#allocation1 + $0x8] sm:$0xff pattern:$0x73625140]
        %v4182 = vld.sshfl [vmem:[#allocation1 + $0x10] sm:$0xff pattern:$0x73625140]
        %v4183 = vld.sshfl [vmem:[#allocation1 + $0x18] sm:$0xff pattern:$0x73625140]
        %v4184 = vld.sshfl [vmem:[#allocation1 + $0x20] sm:$0xff pattern:$0x73625140]
        %v4185 = vld.sshfl [vmem:[#allocation1 + $0x28] sm:$0xff pattern:$0x73625140]
        %v4186 = vld.sshfl [vmem:[#allocation1 + $0x30] sm:$0xff pattern:$0x73625140]
        %v4187 = vld.sshfl [vmem:[#allocation1 + $0x38] sm:$0xff pattern:$0x73625140]
        %4188 = vst [vmem:[#allocation1] ss:$4 sm:$0xff] %v277
        %4189 = vst [vmem:[%s4168] ss:$4 sm:$0xff] %v278
        %v4190 = vld.sshfl [vmem:[#allocation1] sm:$0xff pattern:$0x73625140]
        %v4191 = vld.sshfl [vmem:[#allocation1 + $0x8] sm:$0xff pattern:$0x73625140]
        %v4192 = vld.sshfl [vmem:[#allocation1 + $0x10] sm:$0xff pattern:$0x73625140]
        %v4193 = vld.sshfl [vmem:[#allocation1 + $0x18] sm:$0xff pattern:$0x73625140]
        %v4194 = vld.sshfl [vmem:[#allocation1 + $0x20] sm:$0xff pattern:$0x73625140]
        %v4195 = vld.sshfl [vmem:[#allocation1 + $0x28] sm:$0xff pattern:$0x73625140]
        %v4196 = vld.sshfl [vmem:[#allocation1 + $0x30] sm:$0xff pattern:$0x73625140]
        %v4197 = vld.sshfl [vmem:[#allocation1 + $0x38] sm:$0xff pattern:$0x73625140]
        %v4199 = vsel %vm339, %v287, 0
        %v4201 = vsel %vm343, %v4170, 0
        %v4203 = vsel %vm343, %v4171, 0
        %v4205 = vsel %vm343, %v4172, 0
        %v4207 = vsel %vm343, %v4173, 0
        %v4209 = vsel %vm343, %v4174, 0
        %v4211 = vsel %vm343, %v4175, 0
        %v4213 = vsel %vm343, %v4176, 0
        %v4215 = vsel %vm343, %v4177, 0
        %v4217 = vsel %vm343, %v4180, 0
        %v4219 = vsel %vm343, %v4181, 0
        %v4221 = vsel %vm343, %v4182, 0
        %v4223 = vsel %vm343, %v4183, 0
        %v4225 = vsel %vm343, %v4184, 0
        %v4227 = vsel %vm343, %v4185, 0
        %v4229 = vsel %vm343, %v4186, 0
        %v4231 = vsel %vm343, %v4187, 0
        %v4233 = vsel %vm343, %v4190, 0
        %v4235 = vsel %vm343, %v4191, 0
        %v4237 = vsel %vm343, %v4192, 0
        %v4239 = vsel %vm343, %v4193, 0
        %v4241 = vsel %vm343, %v4194, 0
        %v4243 = vsel %vm343, %v4195, 0
        %v4245 = vsel %vm343, %v4196, 0
        %v4247 = vsel %vm343, %v4197, 0
        %4249 = vmatpush.bf16.msra.mxu0 0
        %4250 = vmatpush.bf16.msra.mxu0 0
        %4251 = vmatpush.bf16.msra.mxu0 0
        %4252 = vmatpush.bf16.msra.mxu0 0
        %4253 = vmatpush.bf16.msra.mxu0 0
        %4254 = vmatpush.bf16.msra.mxu0 0
        %4255 = vmatpush.bf16.msra.mxu0 0
        %4256 = vmatpush.bf16.msra.mxu0 %v4201
        %4257 = vmatmul.bf16.gmra.mxu0 %v4199
        %v4258 = vpop.f32.mrf.mxu0
        %v4259 = vadd.f32 0.0, %v4258
        %v4260 = vpop.f32.mrf.mxu0
        %4261 = vdwg.mxu0
        %4262 = vmatpush.bf16.msra.mxu0 0
        %4263 = vmatpush.bf16.msra.mxu0 0
        %4264 = vmatpush.bf16.msra.mxu0 0
        %4265 = vmatpush.bf16.msra.mxu0 0
        %4266 = vmatpush.bf16.msra.mxu0 0
        %4267 = vmatpush.bf16.msra.mxu0 0
        %4268 = vmatpush.bf16.msra.mxu0 0
        %4269 = vmatpush.bf16.msra.mxu0 %v4203
        %4270 = vmatmul.bf16.gmra.mxu0 %v4199
        %v4271 = vpop.f32.mrf.mxu0
        %v4272 = vadd.f32 0.0, %v4271
        %v4273 = vpop.f32.mrf.mxu0
        %4274 = vdwg.mxu0
        %4275 = vmatpush.bf16.msra.mxu0 0
        %4276 = vmatpush.bf16.msra.mxu0 0
        %4277 = vmatpush.bf16.msra.mxu0 0
        %4278 = vmatpush.bf16.msra.mxu0 0
        %4279 = vmatpush.bf16.msra.mxu0 0
        %4280 = vmatpush.bf16.msra.mxu0 0
        %4281 = vmatpush.bf16.msra.mxu0 0
        %4282 = vmatpush.bf16.msra.mxu0 %v4205
        %4283 = vmatmul.bf16.gmra.mxu0 %v4199
        %v4284 = vpop.f32.mrf.mxu0
        %v4285 = vadd.f32 0.0, %v4284
        %v4286 = vpop.f32.mrf.mxu0
        %4287 = vdwg.mxu0
        %4288 = vmatpush.bf16.msra.mxu0 0
        %4289 = vmatpush.bf16.msra.mxu0 0
        %4290 = vmatpush.bf16.msra.mxu0 0
        %4291 = vmatpush.bf16.msra.mxu0 0
        %4292 = vmatpush.bf16.msra.mxu0 0
        %4293 = vmatpush.bf16.msra.mxu0 0
        %4294 = vmatpush.bf16.msra.mxu0 0
        %4295 = vmatpush.bf16.msra.mxu0 %v4207
        %4296 = vmatmul.bf16.gmra.mxu0 %v4199
        %v4297 = vpop.f32.mrf.mxu0
        %v4298 = vadd.f32 0.0, %v4297
        %v4299 = vpop.f32.mrf.mxu0
        %4300 = vdwg.mxu0
        %4301 = vmatpush.bf16.msra.mxu0 0
        %4302 = vmatpush.bf16.msra.mxu0 0
        %4303 = vmatpush.bf16.msra.mxu0 0
        %4304 = vmatpush.bf16.msra.mxu0 0
        %4305 = vmatpush.bf16.msra.mxu0 0
        %4306 = vmatpush.bf16.msra.mxu0 0
        %4307 = vmatpush.bf16.msra.mxu0 0
        %4308 = vmatpush.bf16.msra.mxu0 %v4209
        %4309 = vmatmul.bf16.gmra.mxu0 %v4199
        %v4310 = vpop.f32.mrf.mxu0
        %v4311 = vadd.f32 0.0, %v4310
        %v4312 = vpop.f32.mrf.mxu0
        %4313 = vdwg.mxu0
        %4314 = vmatpush.bf16.msra.mxu0 0
        %4315 = vmatpush.bf16.msra.mxu0 0
        %4316 = vmatpush.bf16.msra.mxu0 0
        %4317 = vmatpush.bf16.msra.mxu0 0
        %4318 = vmatpush.bf16.msra.mxu0 0
        %4319 = vmatpush.bf16.msra.mxu0 0
        %4320 = vmatpush.bf16.msra.mxu0 0
        %4321 = vmatpush.bf16.msra.mxu0 %v4211
        %4322 = vmatmul.bf16.gmra.mxu0 %v4199
        %v4323 = vpop.f32.mrf.mxu0
        %v4324 = vadd.f32 0.0, %v4323
        %v4325 = vpop.f32.mrf.mxu0
        %4326 = vdwg.mxu0
        %4327 = vmatpush.bf16.msra.mxu0 0
        %4328 = vmatpush.bf16.msra.mxu0 0
        %4329 = vmatpush.bf16.msra.mxu0 0
        %4330 = vmatpush.bf16.msra.mxu0 0
        %4331 = vmatpush.bf16.msra.mxu0 0
        %4332 = vmatpush.bf16.msra.mxu0 0
        %4333 = vmatpush.bf16.msra.mxu0 0
        %4334 = vmatpush.bf16.msra.mxu0 %v4213
        %4335 = vmatmul.bf16.gmra.mxu0 %v4199
        %v4336 = vpop.f32.mrf.mxu0
        %v4337 = vadd.f32 0.0, %v4336
        %v4338 = vpop.f32.mrf.mxu0
        %4339 = vdwg.mxu0
        %4340 = vmatpush.bf16.msra.mxu0 0
        %4341 = vmatpush.bf16.msra.mxu0 0
        %4342 = vmatpush.bf16.msra.mxu0 0
        %4343 = vmatpush.bf16.msra.mxu0 0
        %4344 = vmatpush.bf16.msra.mxu0 0
        %4345 = vmatpush.bf16.msra.mxu0 0
        %4346 = vmatpush.bf16.msra.mxu0 0
        %4347 = vmatpush.bf16.msra.mxu0 %v4215
        %4348 = vmatmul.bf16.gmra.mxu0 %v4199
        %v4349 = vpop.f32.mrf.mxu0
        %v4350 = vadd.f32 0.0, %v4349
        %v4351 = vpop.f32.mrf.mxu0
        %4352 = vdwg.mxu0
        %4353 = vmatpush.bf16.msra.mxu0 0
        %4354 = vmatpush.bf16.msra.mxu0 0
        %4355 = vmatpush.bf16.msra.mxu0 0
        %4356 = vmatpush.bf16.msra.mxu0 0
        %4357 = vmatpush.bf16.msra.mxu0 0
        %4358 = vmatpush.bf16.msra.mxu0 0
        %4359 = vmatpush.bf16.msra.mxu0 0
        %4360 = vmatpush.bf16.msra.mxu0 %v4217
        %4361 = vmatmul.bf16.gmra.mxu0 %v4199
        %v4362 = vpop.f32.mrf.mxu0
        %v4363 = vadd.f32 0.0, %v4362
        %v4364 = vpop.f32.mrf.mxu0
        %4365 = vdwg.mxu0
        %4366 = vmatpush.bf16.msra.mxu0 0
        %4367 = vmatpush.bf16.msra.mxu0 0
        %4368 = vmatpush.bf16.msra.mxu0 0
        %4369 = vmatpush.bf16.msra.mxu0 0
        %4370 = vmatpush.bf16.msra.mxu0 0
        %4371 = vmatpush.bf16.msra.mxu0 0
        %4372 = vmatpush.bf16.msra.mxu0 0
        %4373 = vmatpush.bf16.msra.mxu0 %v4219
        %4374 = vmatmul.bf16.gmra.mxu0 %v4199
        %v4375 = vpop.f32.mrf.mxu0
        %v4376 = vadd.f32 0.0, %v4375
        %v4377 = vpop.f32.mrf.mxu0
        %4378 = vdwg.mxu0
        %4379 = vmatpush.bf16.msra.mxu0 0
        %4380 = vmatpush.bf16.msra.mxu0 0
        %4381 = vmatpush.bf16.msra.mxu0 0
        %4382 = vmatpush.bf16.msra.mxu0 0
        %4383 = vmatpush.bf16.msra.mxu0 0
        %4384 = vmatpush.bf16.msra.mxu0 0
        %4385 = vmatpush.bf16.msra.mxu0 0
        %4386 = vmatpush.bf16.msra.mxu0 %v4221
        %4387 = vmatmul.bf16.gmra.mxu0 %v4199
        %v4388 = vpop.f32.mrf.mxu0
        %v4389 = vadd.f32 0.0, %v4388
        %v4390 = vpop.f32.mrf.mxu0
        %4391 = vdwg.mxu0
        %4392 = vmatpush.bf16.msra.mxu0 0
        %4393 = vmatpush.bf16.msra.mxu0 0
        %4394 = vmatpush.bf16.msra.mxu0 0
        %4395 = vmatpush.bf16.msra.mxu0 0
        %4396 = vmatpush.bf16.msra.mxu0 0
        %4397 = vmatpush.bf16.msra.mxu0 0
        %4398 = vmatpush.bf16.msra.mxu0 0
        %4399 = vmatpush.bf16.msra.mxu0 %v4223
        %4400 = vmatmul.bf16.gmra.mxu0 %v4199
        %v4401 = vpop.f32.mrf.mxu0
        %v4402 = vadd.f32 0.0, %v4401
        %v4403 = vpop.f32.mrf.mxu0
        %4404 = vdwg.mxu0
        %4405 = vmatpush.bf16.msra.mxu0 0
        %4406 = vmatpush.bf16.msra.mxu0 0
        %4407 = vmatpush.bf16.msra.mxu0 0
        %4408 = vmatpush.bf16.msra.mxu0 0
        %4409 = vmatpush.bf16.msra.mxu0 0
        %4410 = vmatpush.bf16.msra.mxu0 0
        %4411 = vmatpush.bf16.msra.mxu0 0
        %4412 = vmatpush.bf16.msra.mxu0 %v4225
        %4413 = vmatmul.bf16.gmra.mxu0 %v4199
        %v4414 = vpop.f32.mrf.mxu0
        %v4415 = vadd.f32 0.0, %v4414
        %v4416 = vpop.f32.mrf.mxu0
        %4417 = vdwg.mxu0
        %4418 = vmatpush.bf16.msra.mxu0 0
        %4419 = vmatpush.bf16.msra.mxu0 0
        %4420 = vmatpush.bf16.msra.mxu0 0
        %4421 = vmatpush.bf16.msra.mxu0 0
        %4422 = vmatpush.bf16.msra.mxu0 0
        %4423 = vmatpush.bf16.msra.mxu0 0
        %4424 = vmatpush.bf16.msra.mxu0 0
        %4425 = vmatpush.bf16.msra.mxu0 %v4227
        %4426 = vmatmul.bf16.gmra.mxu0 %v4199
        %v4427 = vpop.f32.mrf.mxu0
        %v4428 = vadd.f32 0.0, %v4427
        %v4429 = vpop.f32.mrf.mxu0
        %4430 = vdwg.mxu0
        %4431 = vmatpush.bf16.msra.mxu0 0
        %4432 = vmatpush.bf16.msra.mxu0 0
        %4433 = vmatpush.bf16.msra.mxu0 0
        %4434 = vmatpush.bf16.msra.mxu0 0
        %4435 = vmatpush.bf16.msra.mxu0 0
        %4436 = vmatpush.bf16.msra.mxu0 0
        %4437 = vmatpush.bf16.msra.mxu0 0
        %4438 = vmatpush.bf16.msra.mxu0 %v4229
        %4439 = vmatmul.bf16.gmra.mxu0 %v4199
        %v4440 = vpop.f32.mrf.mxu0
        %v4441 = vadd.f32 0.0, %v4440
        %v4442 = vpop.f32.mrf.mxu0
        %4443 = vdwg.mxu0
        %4444 = vmatpush.bf16.msra.mxu0 0
        %4445 = vmatpush.bf16.msra.mxu0 0
        %4446 = vmatpush.bf16.msra.mxu0 0
        %4447 = vmatpush.bf16.msra.mxu0 0
        %4448 = vmatpush.bf16.msra.mxu0 0
        %4449 = vmatpush.bf16.msra.mxu0 0
        %4450 = vmatpush.bf16.msra.mxu0 0
        %4451 = vmatpush.bf16.msra.mxu0 %v4231
        %4452 = vmatmul.bf16.gmra.mxu0 %v4199
        %v4453 = vpop.f32.mrf.mxu0
        %v4454 = vadd.f32 0.0, %v4453
        %v4455 = vpop.f32.mrf.mxu0
        %4456 = vdwg.mxu0
        %4457 = vmatpush.bf16.msra.mxu0 0
        %4458 = vmatpush.bf16.msra.mxu0 0
        %4459 = vmatpush.bf16.msra.mxu0 0
        %4460 = vmatpush.bf16.msra.mxu0 0
        %4461 = vmatpush.bf16.msra.mxu0 0
        %4462 = vmatpush.bf16.msra.mxu0 0
        %4463 = vmatpush.bf16.msra.mxu0 0
        %4464 = vmatpush.bf16.msra.mxu0 %v4233
        %4465 = vmatmul.bf16.gmra.mxu0 %v4199
        %v4466 = vpop.f32.mrf.mxu0
        %v4467 = vadd.f32 0.0, %v4466
        %v4468 = vpop.f32.mrf.mxu0
        %4469 = vdwg.mxu0
        %4470 = vmatpush.bf16.msra.mxu0 0
        %4471 = vmatpush.bf16.msra.mxu0 0
        %4472 = vmatpush.bf16.msra.mxu0 0
        %4473 = vmatpush.bf16.msra.mxu0 0
        %4474 = vmatpush.bf16.msra.mxu0 0
        %4475 = vmatpush.bf16.msra.mxu0 0
        %4476 = vmatpush.bf16.msra.mxu0 0
        %4477 = vmatpush.bf16.msra.mxu0 %v4235
        %4478 = vmatmul.bf16.gmra.mxu0 %v4199
        %v4479 = vpop.f32.mrf.mxu0
        %v4480 = vadd.f32 0.0, %v4479
        %v4481 = vpop.f32.mrf.mxu0
        %4482 = vdwg.mxu0
        %4483 = vmatpush.bf16.msra.mxu0 0
        %4484 = vmatpush.bf16.msra.mxu0 0
        %4485 = vmatpush.bf16.msra.mxu0 0
        %4486 = vmatpush.bf16.msra.mxu0 0
        %4487 = vmatpush.bf16.msra.mxu0 0
        %4488 = vmatpush.bf16.msra.mxu0 0
        %4489 = vmatpush.bf16.msra.mxu0 0
        %4490 = vmatpush.bf16.msra.mxu0 %v4237
        %4491 = vmatmul.bf16.gmra.mxu0 %v4199
        %v4492 = vpop.f32.mrf.mxu0
        %v4493 = vadd.f32 0.0, %v4492
        %v4494 = vpop.f32.mrf.mxu0
        %4495 = vdwg.mxu0
        %4496 = vmatpush.bf16.msra.mxu0 0
        %4497 = vmatpush.bf16.msra.mxu0 0
        %4498 = vmatpush.bf16.msra.mxu0 0
        %4499 = vmatpush.bf16.msra.mxu0 0
        %4500 = vmatpush.bf16.msra.mxu0 0
        %4501 = vmatpush.bf16.msra.mxu0 0
        %4502 = vmatpush.bf16.msra.mxu0 0
        %4503 = vmatpush.bf16.msra.mxu0 %v4239
        %4504 = vmatmul.bf16.gmra.mxu0 %v4199
        %v4505 = vpop.f32.mrf.mxu0
        %v4506 = vadd.f32 0.0, %v4505
        %v4507 = vpop.f32.mrf.mxu0
        %4508 = vdwg.mxu0
        %4509 = vmatpush.bf16.msra.mxu0 0
        %4510 = vmatpush.bf16.msra.mxu0 0
        %4511 = vmatpush.bf16.msra.mxu0 0
        %4512 = vmatpush.bf16.msra.mxu0 0
        %4513 = vmatpush.bf16.msra.mxu0 0
        %4514 = vmatpush.bf16.msra.mxu0 0
        %4515 = vmatpush.bf16.msra.mxu0 0
        %4516 = vmatpush.bf16.msra.mxu0 %v4241
        %4517 = vmatmul.bf16.gmra.mxu0 %v4199
        %v4518 = vpop.f32.mrf.mxu0
        %v4519 = vadd.f32 0.0, %v4518
        %v4520 = vpop.f32.mrf.mxu0
        %4521 = vdwg.mxu0
        %4522 = vmatpush.bf16.msra.mxu0 0
        %4523 = vmatpush.bf16.msra.mxu0 0
        %4524 = vmatpush.bf16.msra.mxu0 0
        %4525 = vmatpush.bf16.msra.mxu0 0
        %4526 = vmatpush.bf16.msra.mxu0 0
        %4527 = vmatpush.bf16.msra.mxu0 0
        %4528 = vmatpush.bf16.msra.mxu0 0
        %4529 = vmatpush.bf16.msra.mxu0 %v4243
        %4530 = vmatmul.bf16.gmra.mxu0 %v4199
        %v4531 = vpop.f32.mrf.mxu0
        %v4532 = vadd.f32 0.0, %v4531
        %v4533 = vpop.f32.mrf.mxu0
        %4534 = vdwg.mxu0
        %4535 = vmatpush.bf16.msra.mxu0 0
        %4536 = vmatpush.bf16.msra.mxu0 0
        %4537 = vmatpush.bf16.msra.mxu0 0
        %4538 = vmatpush.bf16.msra.mxu0 0
        %4539 = vmatpush.bf16.msra.mxu0 0
        %4540 = vmatpush.bf16.msra.mxu0 0
        %4541 = vmatpush.bf16.msra.mxu0 0
        %4542 = vmatpush.bf16.msra.mxu0 %v4245
        %4543 = vmatmul.bf16.gmra.mxu0 %v4199
        %v4544 = vpop.f32.mrf.mxu0
        %v4545 = vadd.f32 0.0, %v4544
        %v4546 = vpop.f32.mrf.mxu0
        %4547 = vdwg.mxu0
        %4548 = vmatpush.bf16.msra.mxu0 0
        %4549 = vmatpush.bf16.msra.mxu0 0
        %4550 = vmatpush.bf16.msra.mxu0 0
        %4551 = vmatpush.bf16.msra.mxu0 0
        %4552 = vmatpush.bf16.msra.mxu0 0
        %4553 = vmatpush.bf16.msra.mxu0 0
        %4554 = vmatpush.bf16.msra.mxu0 0
        %4555 = vmatpush.bf16.msra.mxu0 %v4247
        %4556 = vmatmul.bf16.gmra.mxu0 %v4199
        %v4557 = vpop.f32.mrf.mxu0
        %v4558 = vadd.f32 0.0, %v4557
        %v4559 = vpop.f32.mrf.mxu0
        %4560 = vdwg.mxu0
        %4561 = vrot.lane.b32.xlu0 %v4259, 109
        %v4562 = vpop.permute.xlu0 %4561
        %4563 = vrot.lane.b32.xlu0 %v4272, 109
        %v4564 = vpop.permute.xlu0 %4563
        %4565 = vrot.lane.b32.xlu0 %v4285, 109
        %v4566 = vpop.permute.xlu0 %4565
        %4567 = vrot.lane.b32.xlu0 %v4298, 109
        %v4568 = vpop.permute.xlu0 %4567
        %4569 = vrot.lane.b32.xlu0 %v4311, 109
        %v4570 = vpop.permute.xlu0 %4569
        %4571 = vrot.lane.b32.xlu0 %v4324, 109
        %v4572 = vpop.permute.xlu0 %4571
        %4573 = vrot.lane.b32.xlu0 %v4337, 109
        %v4574 = vpop.permute.xlu0 %4573
        %4575 = vrot.lane.b32.xlu0 %v4350, 109
        %v4576 = vpop.permute.xlu0 %4575
        %4577 = vrot.lane.b32.xlu0 %v4363, 109
        %v4578 = vpop.permute.xlu0 %4577
        %4579 = vrot.lane.b32.xlu0 %v4376, 109
        %v4580 = vpop.permute.xlu0 %4579
        %4581 = vrot.lane.b32.xlu0 %v4389, 109
        %v4582 = vpop.permute.xlu0 %4581
        %4583 = vrot.lane.b32.xlu0 %v4402, 109
        %v4584 = vpop.permute.xlu0 %4583
        %4585 = vrot.lane.b32.xlu0 %v4415, 109
        %v4586 = vpop.permute.xlu0 %4585
        %4587 = vrot.lane.b32.xlu0 %v4428, 109
        %v4588 = vpop.permute.xlu0 %4587
        %4589 = vrot.lane.b32.xlu0 %v4441, 109
        %v4590 = vpop.permute.xlu0 %4589
        %4591 = vrot.lane.b32.xlu0 %v4454, 109
        %v4592 = vpop.permute.xlu0 %4591
        %4593 = vrot.lane.b32.xlu0 %v4467, 109
        %v4594 = vpop.permute.xlu0 %4593
        %4595 = vrot.lane.b32.xlu0 %v4480, 109
        %v4596 = vpop.permute.xlu0 %4595
        %4597 = vrot.lane.b32.xlu0 %v4493, 109
        %v4598 = vpop.permute.xlu0 %4597
        %4599 = vrot.lane.b32.xlu0 %v4506, 109
        %v4600 = vpop.permute.xlu0 %4599
        %4601 = vrot.lane.b32.xlu0 %v4519, 109
        %v4602 = vpop.permute.xlu0 %4601
        %4603 = vrot.lane.b32.xlu0 %v4532, 109
        %v4604 = vpop.permute.xlu0 %4603
        %4605 = vrot.lane.b32.xlu0 %v4545, 109
        %v4606 = vpop.permute.xlu0 %4605
        %4607 = vrot.lane.b32.xlu0 %v4558, 109
        %v4608 = vpop.permute.xlu0 %4607
        %vm4609 = vcmp.lt.s32.totalorder %v753, 109
        %v4610 = vsel %vm4609, %v4606, %v4608
        %v4611 = vsel %vm4609, %v4604, %v4606
        %v4612 = vsel %vm4609, %v4602, %v4604
        %v4613 = vsel %vm4609, %v4600, %v4602
        %v4614 = vsel %vm4609, %v4598, %v4600
        %v4615 = vsel %vm4609, %v4596, %v4598
        %v4616 = vsel %vm4609, %v4594, %v4596
        %v4617 = vsel %vm4609, %v4592, %v4594
        %v4618 = vsel %vm4609, %v4590, %v4592
        %v4619 = vsel %vm4609, %v4588, %v4590
        %v4620 = vsel %vm4609, %v4586, %v4588
        %v4621 = vsel %vm4609, %v4584, %v4586
        %v4622 = vsel %vm4609, %v4582, %v4584
        %v4623 = vsel %vm4609, %v4580, %v4582
        %v4624 = vsel %vm4609, %v4578, %v4580
        %v4625 = vsel %vm4609, %v4576, %v4578
        %v4626 = vsel %vm4609, %v4574, %v4576
        %v4627 = vsel %vm4609, %v4572, %v4574
        %v4628 = vsel %vm4609, %v4570, %v4572
        %v4629 = vsel %vm4609, %v4568, %v4570
        %v4630 = vsel %vm4609, %v4566, %v4568
        %v4631 = vsel %vm4609, %v4564, %v4566
        %v4632 = vsel %vm4609, %v4562, %v4564
        %v4633 = vsel %vm4609, %v4608, %v4562
        %v4634 = vadd.f32 %v4143, %v4632
        %v4635 = vadd.f32 %v4144, %v4631
        %v4636 = vadd.f32 %v4145, %v4630
        %v4637 = vadd.f32 %v4146, %v4629
        %v4638 = vadd.f32 %v4147, %v4628
        %v4639 = vadd.f32 %v4148, %v4627
        %v4640 = vadd.f32 %v4149, %v4626
        %v4641 = vadd.f32 %v4150, %v4625
        %v4642 = vadd.f32 %v4151, %v4624
        %v4643 = vadd.f32 %v4152, %v4623
        %v4644 = vadd.f32 %v4153, %v4622
        %v4645 = vadd.f32 %v4154, %v4621
        %v4646 = vadd.f32 %v4155, %v4620
        %v4647 = vadd.f32 %v4156, %v4619
        %v4648 = vadd.f32 %v4157, %v4618
        %v4649 = vadd.f32 %v4158, %v4617
        %v4650 = vadd.f32 %v4159, %v4616
        %v4651 = vadd.f32 %v4160, %v4615
        %v4652 = vadd.f32 %v4161, %v4614
        %v4653 = vadd.f32 %v4162, %v4613
        %v4654 = vadd.f32 %v4163, %v4612
        %v4655 = vadd.f32 %v4164, %v4611
        %v4656 = vadd.f32 %v4165, %v4610
        %v4657 = vadd.f32 %v4166, %v4633
        %4659 = vset.pattern.permute.xlu0 0
        %4660 = vperm.xlu0 %4659, %v288
        %v4661 = vpop.permute.xlu0 %4660
        %v4663 = vadd.f32 %v4634, %v4661
        %v4664 = vadd.f32 %v4635, %v4661
        %v4665 = vadd.f32 %v4636, %v4661
        %v4666 = vadd.f32 %v4637, %v4661
        %v4667 = vadd.f32 %v4638, %v4661
        %v4668 = vadd.f32 %v4639, %v4661
        %v4669 = vadd.f32 %v4640, %v4661
        %v4670 = vadd.f32 %v4641, %v4661
        %v4671 = vadd.f32 %v4642, %v4661
        %v4672 = vadd.f32 %v4643, %v4661
        %v4673 = vadd.f32 %v4644, %v4661
        %v4674 = vadd.f32 %v4645, %v4661
        %v4675 = vadd.f32 %v4646, %v4661
        %v4676 = vadd.f32 %v4647, %v4661
        %v4677 = vadd.f32 %v4648, %v4661
        %v4678 = vadd.f32 %v4649, %v4661
        %v4679 = vadd.f32 %v4650, %v4661
        %v4680 = vadd.f32 %v4651, %v4661
        %v4681 = vadd.f32 %v4652, %v4661
        %v4682 = vadd.f32 %v4653, %v4661
        %v4683 = vadd.f32 %v4654, %v4661
        %v4684 = vadd.f32 %v4655, %v4661
        %v4685 = vadd.f32 %v4656, %v4661
        %v4686 = vadd.f32 %v4657, %v4661
        %v4687 = vmax.f32 %v4663, 0.0
        %v4688 = vmax.f32 %v4664, 0.0
        %v4689 = vmax.f32 %v4665, 0.0
        %v4690 = vmax.f32 %v4666, 0.0
        %v4691 = vmax.f32 %v4667, 0.0
        %v4692 = vmax.f32 %v4668, 0.0
        %v4693 = vmax.f32 %v4669, 0.0
        %v4694 = vmax.f32 %v4670, 0.0
        %v4695 = vmax.f32 %v4671, 0.0
        %v4696 = vmax.f32 %v4672, 0.0
        %v4697 = vmax.f32 %v4673, 0.0
        %v4698 = vmax.f32 %v4674, 0.0
        %v4699 = vmax.f32 %v4675, 0.0
        %v4700 = vmax.f32 %v4676, 0.0
        %v4701 = vmax.f32 %v4677, 0.0
        %v4702 = vmax.f32 %v4678, 0.0
        %v4703 = vmax.f32 %v4679, 0.0
        %v4704 = vmax.f32 %v4680, 0.0
        %v4705 = vmax.f32 %v4681, 0.0
        %v4706 = vmax.f32 %v4682, 0.0
        %v4707 = vmax.f32 %v4683, 0.0
        %v4708 = vmax.f32 %v4684, 0.0
        %v4709 = vmax.f32 %v4685, 0.0
        %v4710 = vmax.f32 %v4686, 0.0
        %v4714 = vperm.slane %v299, 0
        %v4715 = vperm.slane %v299, 1
        %v4716 = vperm.slane %v299, 2
        %v4717 = vperm.slane %v299, 3
        %v4718 = vperm.slane %v299, 4
        %v4719 = vperm.slane %v299, 5
        %v4720 = vperm.slane %v299, 6
        %v4721 = vperm.slane %v299, 7
        %v4722 = vperm.slane %v300, 0
        %v4723 = vperm.slane %v300, 1
        %v4724 = vperm.slane %v300, 2
        %v4725 = vperm.slane %v300, 3
        %v4726 = vperm.slane %v300, 4
        %v4727 = vperm.slane %v300, 5
        %v4728 = vperm.slane %v300, 6
        %v4729 = vperm.slane %v300, 7
        %v4730 = vperm.slane %v301, 0
        %v4731 = vperm.slane %v301, 1
        %v4732 = vperm.slane %v301, 2
        %v4733 = vperm.slane %v301, 3
        %v4734 = vperm.slane %v301, 4
        %v4735 = vperm.slane %v301, 5
        %v4736 = vperm.slane %v301, 6
        %v4737 = vperm.slane %v301, 7
        %v4762 = vmul.f32 %v4687, %v4714
        %v4763 = vmul.f32 %v4688, %v4715
        %v4764 = vmul.f32 %v4689, %v4716
        %v4765 = vmul.f32 %v4690, %v4717
        %v4766 = vmul.f32 %v4691, %v4718
        %v4767 = vmul.f32 %v4692, %v4719
        %v4768 = vmul.f32 %v4693, %v4720
        %v4769 = vmul.f32 %v4694, %v4721
        %v4770 = vmul.f32 %v4695, %v4722
        %v4771 = vmul.f32 %v4696, %v4723
        %v4772 = vmul.f32 %v4697, %v4724
        %v4773 = vmul.f32 %v4698, %v4725
        %v4774 = vmul.f32 %v4699, %v4726
        %v4775 = vmul.f32 %v4700, %v4727
        %v4776 = vmul.f32 %v4701, %v4728
        %v4777 = vmul.f32 %v4702, %v4729
        %v4778 = vmul.f32 %v4703, %v4730
        %v4779 = vmul.f32 %v4704, %v4731
        %v4780 = vmul.f32 %v4705, %v4732
        %v4781 = vmul.f32 %v4706, %v4733
        %v4782 = vmul.f32 %v4707, %v4734
        %v4783 = vmul.f32 %v4708, %v4735
        %v4784 = vmul.f32 %v4709, %v4736
        %v4785 = vmul.f32 %v4710, %v4737
        %4786 = vrot.lane.b32.xlu0 %v4762, 19
        %v4787 = vpop.permute.xlu0 %4786
        %4788 = vrot.lane.b32.xlu0 %v4763, 19
        %v4789 = vpop.permute.xlu0 %4788
        %4790 = vrot.lane.b32.xlu0 %v4764, 19
        %v4791 = vpop.permute.xlu0 %4790
        %4792 = vrot.lane.b32.xlu0 %v4765, 19
        %v4793 = vpop.permute.xlu0 %4792
        %4794 = vrot.lane.b32.xlu0 %v4766, 19
        %v4795 = vpop.permute.xlu0 %4794
        %4796 = vrot.lane.b32.xlu0 %v4767, 19
        %v4797 = vpop.permute.xlu0 %4796
        %4798 = vrot.lane.b32.xlu0 %v4768, 19
        %v4799 = vpop.permute.xlu0 %4798
        %4800 = vrot.lane.b32.xlu0 %v4769, 19
        %v4801 = vpop.permute.xlu0 %4800
        %4802 = vrot.lane.b32.xlu0 %v4770, 19
        %v4803 = vpop.permute.xlu0 %4802
        %4804 = vrot.lane.b32.xlu0 %v4771, 19
        %v4805 = vpop.permute.xlu0 %4804
        %4806 = vrot.lane.b32.xlu0 %v4772, 19
        %v4807 = vpop.permute.xlu0 %4806
        %4808 = vrot.lane.b32.xlu0 %v4773, 19
        %v4809 = vpop.permute.xlu0 %4808
        %4810 = vrot.lane.b32.xlu0 %v4774, 19
        %v4811 = vpop.permute.xlu0 %4810
        %4812 = vrot.lane.b32.xlu0 %v4775, 19
        %v4813 = vpop.permute.xlu0 %4812
        %4814 = vrot.lane.b32.xlu0 %v4776, 19
        %v4815 = vpop.permute.xlu0 %4814
        %4816 = vrot.lane.b32.xlu0 %v4777, 19
        %v4817 = vpop.permute.xlu0 %4816
        %4818 = vrot.lane.b32.xlu0 %v4778, 19
        %v4819 = vpop.permute.xlu0 %4818
        %4820 = vrot.lane.b32.xlu0 %v4779, 19
        %v4821 = vpop.permute.xlu0 %4820
        %4822 = vrot.lane.b32.xlu0 %v4780, 19
        %v4823 = vpop.permute.xlu0 %4822
        %4824 = vrot.lane.b32.xlu0 %v4781, 19
        %v4825 = vpop.permute.xlu0 %4824
        %4826 = vrot.lane.b32.xlu0 %v4782, 19
        %v4827 = vpop.permute.xlu0 %4826
        %4828 = vrot.lane.b32.xlu0 %v4783, 19
        %v4829 = vpop.permute.xlu0 %4828
        %4830 = vrot.lane.b32.xlu0 %v4784, 19
        %v4831 = vpop.permute.xlu0 %4830
        %4832 = vrot.lane.b32.xlu0 %v4785, 19
        %v4833 = vpop.permute.xlu0 %4832
        %v4834 = vsel %vm754, %v4831, %v4833
        %v4835 = vsel %vm754, %v4829, %v4831
        %v4836 = vsel %vm754, %v4827, %v4829
        %v4837 = vsel %vm754, %v4825, %v4827
        %v4838 = vsel %vm754, %v4823, %v4825
        %v4839 = vsel %vm754, %v4821, %v4823
        %v4840 = vsel %vm754, %v4819, %v4821
        %v4841 = vsel %vm754, %v4817, %v4819
        %v4842 = vsel %vm754, %v4815, %v4817
        %v4843 = vsel %vm754, %v4813, %v4815
        %v4844 = vsel %vm754, %v4811, %v4813
        %v4845 = vsel %vm754, %v4809, %v4811
        %v4846 = vsel %vm754, %v4807, %v4809
        %v4847 = vsel %vm754, %v4805, %v4807
        %v4848 = vsel %vm754, %v4803, %v4805
        %v4849 = vsel %vm754, %v4801, %v4803
        %v4850 = vsel %vm754, %v4799, %v4801
        %v4851 = vsel %vm754, %v4797, %v4799
        %v4852 = vsel %vm754, %v4795, %v4797
        %v4853 = vsel %vm754, %v4793, %v4795
        %v4854 = vsel %vm754, %v4791, %v4793
        %v4855 = vsel %vm754, %v4789, %v4791
        %v4856 = vsel %vm754, %v4787, %v4789
        %v4857 = vsel %vm754, %v4833, %v4787
        %4859 = vset.pattern.permute.xlu0 0
        %4860 = vperm.xlu0 %4859, %v289
        %v4861 = vpop.permute.xlu0 %4860
        %v4863 = vmul.f32 %v4861, %v4857
        %v4864 = vmul.f32 %v4861, %v4856
        %v4865 = vmul.f32 %v4861, %v4855
        %v4866 = vmul.f32 %v4861, %v4854
        %v4867 = vmul.f32 %v4861, %v4853
        %v4868 = vmul.f32 %v4861, %v4852
        %v4869 = vmul.f32 %v4861, %v4851
        %v4870 = vmul.f32 %v4861, %v4850
        %v4871 = vmul.f32 %v4861, %v4849
        %v4872 = vmul.f32 %v4861, %v4848
        %v4873 = vmul.f32 %v4861, %v4847
        %v4874 = vmul.f32 %v4861, %v4846
        %v4875 = vmul.f32 %v4861, %v4845
        %v4876 = vmul.f32 %v4861, %v4844
        %v4877 = vmul.f32 %v4861, %v4843
        %v4878 = vmul.f32 %v4861, %v4842
        %v4879 = vmul.f32 %v4861, %v4841
        %v4880 = vmul.f32 %v4861, %v4840
        %v4881 = vmul.f32 %v4861, %v4839
        %v4882 = vmul.f32 %v4861, %v4838
        %v4883 = vmul.f32 %v4861, %v4837
        %v4884 = vmul.f32 %v4861, %v4836
        %v4885 = vmul.f32 %v4861, %v4835
        %v4886 = vmul.f32 %v4861, %v4834
        %v4887 = vadd.f32 %v4863, 0.0
        %v4888 = vadd.f32 %v4864, 0.0
        %v4889 = vadd.f32 %v4865, 0.0
        %v4890 = vadd.f32 %v4866, 0.0
        %v4891 = vadd.f32 %v4867, 0.0
        %v4892 = vadd.f32 %v4868, 0.0
        %v4893 = vadd.f32 %v4869, 0.0
        %v4894 = vadd.f32 %v4870, 0.0
        %v4895 = vadd.f32 %v4871, 0.0
        %v4896 = vadd.f32 %v4872, 0.0
        %v4897 = vadd.f32 %v4873, 0.0
        %v4898 = vadd.f32 %v4874, 0.0
        %v4899 = vadd.f32 %v4875, 0.0
        %v4900 = vadd.f32 %v4876, 0.0
        %v4901 = vadd.f32 %v4877, 0.0
        %v4902 = vadd.f32 %v4878, 0.0
        %v4903 = vadd.f32 %v4879, 0.0
        %v4904 = vadd.f32 %v4880, 0.0
        %v4905 = vadd.f32 %v4881, 0.0
        %v4906 = vadd.f32 %v4882, 0.0
        %v4907 = vadd.f32 %v4883, 0.0
        %v4908 = vadd.f32 %v4884, 0.0
        %v4909 = vadd.f32 %v4885, 0.0
        %v4910 = vadd.f32 %v4886, 0.0
        %4911 = vrot.lane.b32.xlu0 %v4762, 18
        %v4912 = vpop.permute.xlu0 %4911
        %4913 = vrot.lane.b32.xlu0 %v4763, 18
        %v4914 = vpop.permute.xlu0 %4913
        %4915 = vrot.lane.b32.xlu0 %v4764, 18
        %v4916 = vpop.permute.xlu0 %4915
        %4917 = vrot.lane.b32.xlu0 %v4765, 18
        %v4918 = vpop.permute.xlu0 %4917
        %4919 = vrot.lane.b32.xlu0 %v4766, 18
        %v4920 = vpop.permute.xlu0 %4919
        %4921 = vrot.lane.b32.xlu0 %v4767, 18
        %v4922 = vpop.permute.xlu0 %4921
        %4923 = vrot.lane.b32.xlu0 %v4768, 18
        %v4924 = vpop.permute.xlu0 %4923
        %4925 = vrot.lane.b32.xlu0 %v4769, 18
        %v4926 = vpop.permute.xlu0 %4925
        %4927 = vrot.lane.b32.xlu0 %v4770, 18
        %v4928 = vpop.permute.xlu0 %4927
        %4929 = vrot.lane.b32.xlu0 %v4771, 18
        %v4930 = vpop.permute.xlu0 %4929
        %4931 = vrot.lane.b32.xlu0 %v4772, 18
        %v4932 = vpop.permute.xlu0 %4931
        %4933 = vrot.lane.b32.xlu0 %v4773, 18
        %v4934 = vpop.permute.xlu0 %4933
        %4935 = vrot.lane.b32.xlu0 %v4774, 18
        %v4936 = vpop.permute.xlu0 %4935
        %4937 = vrot.lane.b32.xlu0 %v4775, 18
        %v4938 = vpop.permute.xlu0 %4937
        %4939 = vrot.lane.b32.xlu0 %v4776, 18
        %v4940 = vpop.permute.xlu0 %4939
        %4941 = vrot.lane.b32.xlu0 %v4777, 18
        %v4942 = vpop.permute.xlu0 %4941
        %4943 = vrot.lane.b32.xlu0 %v4778, 18
        %v4944 = vpop.permute.xlu0 %4943
        %4945 = vrot.lane.b32.xlu0 %v4779, 18
        %v4946 = vpop.permute.xlu0 %4945
        %4947 = vrot.lane.b32.xlu0 %v4780, 18
        %v4948 = vpop.permute.xlu0 %4947
        %4949 = vrot.lane.b32.xlu0 %v4781, 18
        %v4950 = vpop.permute.xlu0 %4949
        %4951 = vrot.lane.b32.xlu0 %v4782, 18
        %v4952 = vpop.permute.xlu0 %4951
        %4953 = vrot.lane.b32.xlu0 %v4783, 18
        %v4954 = vpop.permute.xlu0 %4953
        %4955 = vrot.lane.b32.xlu0 %v4784, 18
        %v4956 = vpop.permute.xlu0 %4955
        %4957 = vrot.lane.b32.xlu0 %v4785, 18
        %v4958 = vpop.permute.xlu0 %4957
        %v4959 = vsel %vm1245, %v4956, %v4958
        %v4960 = vsel %vm1245, %v4954, %v4956
        %v4961 = vsel %vm1245, %v4952, %v4954
        %v4962 = vsel %vm1245, %v4950, %v4952
        %v4963 = vsel %vm1245, %v4948, %v4950
        %v4964 = vsel %vm1245, %v4946, %v4948
        %v4965 = vsel %vm1245, %v4944, %v4946
        %v4966 = vsel %vm1245, %v4942, %v4944
        %v4967 = vsel %vm1245, %v4940, %v4942
        %v4968 = vsel %vm1245, %v4938, %v4940
        %v4969 = vsel %vm1245, %v4936, %v4938
        %v4970 = vsel %vm1245, %v4934, %v4936
        %v4971 = vsel %vm1245, %v4932, %v4934
        %v4972 = vsel %vm1245, %v4930, %v4932
        %v4973 = vsel %vm1245, %v4928, %v4930
        %v4974 = vsel %vm1245, %v4926, %v4928
        %v4975 = vsel %vm1245, %v4924, %v4926
        %v4976 = vsel %vm1245, %v4922, %v4924
        %v4977 = vsel %vm1245, %v4920, %v4922
        %v4978 = vsel %vm1245, %v4918, %v4920
        %v4979 = vsel %vm1245, %v4916, %v4918
        %v4980 = vsel %vm1245, %v4914, %v4916
        %v4981 = vsel %vm1245, %v4912, %v4914
        %v4982 = vsel %vm1245, %v4958, %v4912
        %4984 = vset.pattern.permute.xlu0 0
        %4985 = vperm.xlu0 %4984, %v290
        %v4986 = vpop.permute.xlu0 %4985
        %v4988 = vmul.f32 %v4986, %v4982
        %v4989 = vmul.f32 %v4986, %v4981
        %v4990 = vmul.f32 %v4986, %v4980
        %v4991 = vmul.f32 %v4986, %v4979
        %v4992 = vmul.f32 %v4986, %v4978
        %v4993 = vmul.f32 %v4986, %v4977
        %v4994 = vmul.f32 %v4986, %v4976
        %v4995 = vmul.f32 %v4986, %v4975
        %v4996 = vmul.f32 %v4986, %v4974
        %v4997 = vmul.f32 %v4986, %v4973
        %v4998 = vmul.f32 %v4986, %v4972
        %v4999 = vmul.f32 %v4986, %v4971
        %v5000 = vmul.f32 %v4986, %v4970
        %v5001 = vmul.f32 %v4986, %v4969
        %v5002 = vmul.f32 %v4986, %v4968
        %v5003 = vmul.f32 %v4986, %v4967
        %v5004 = vmul.f32 %v4986, %v4966
        %v5005 = vmul.f32 %v4986, %v4965
        %v5006 = vmul.f32 %v4986, %v4964
        %v5007 = vmul.f32 %v4986, %v4963
        %v5008 = vmul.f32 %v4986, %v4962
        %v5009 = vmul.f32 %v4986, %v4961
        %v5010 = vmul.f32 %v4986, %v4960
        %v5011 = vmul.f32 %v4986, %v4959
        %v5012 = vadd.f32 %v4887, %v4988
        %v5013 = vadd.f32 %v4888, %v4989
        %v5014 = vadd.f32 %v4889, %v4990
        %v5015 = vadd.f32 %v4890, %v4991
        %v5016 = vadd.f32 %v4891, %v4992
        %v5017 = vadd.f32 %v4892, %v4993
        %v5018 = vadd.f32 %v4893, %v4994
        %v5019 = vadd.f32 %v4894, %v4995
        %v5020 = vadd.f32 %v4895, %v4996
        %v5021 = vadd.f32 %v4896, %v4997
        %v5022 = vadd.f32 %v4897, %v4998
        %v5023 = vadd.f32 %v4898, %v4999
        %v5024 = vadd.f32 %v4899, %v5000
        %v5025 = vadd.f32 %v4900, %v5001
        %v5026 = vadd.f32 %v4901, %v5002
        %v5027 = vadd.f32 %v4902, %v5003
        %v5028 = vadd.f32 %v4903, %v5004
        %v5029 = vadd.f32 %v4904, %v5005
        %v5030 = vadd.f32 %v4905, %v5006
        %v5031 = vadd.f32 %v4906, %v5007
        %v5032 = vadd.f32 %v4907, %v5008
        %v5033 = vadd.f32 %v4908, %v5009
        %v5034 = vadd.f32 %v4909, %v5010
        %v5035 = vadd.f32 %v4910, %v5011
        %5036 = vrot.lane.b32.xlu0 %v4762, 17
        %v5037 = vpop.permute.xlu0 %5036
        %5038 = vrot.lane.b32.xlu0 %v4763, 17
        %v5039 = vpop.permute.xlu0 %5038
        %5040 = vrot.lane.b32.xlu0 %v4764, 17
        %v5041 = vpop.permute.xlu0 %5040
        %5042 = vrot.lane.b32.xlu0 %v4765, 17
        %v5043 = vpop.permute.xlu0 %5042
        %5044 = vrot.lane.b32.xlu0 %v4766, 17
        %v5045 = vpop.permute.xlu0 %5044
        %5046 = vrot.lane.b32.xlu0 %v4767, 17
        %v5047 = vpop.permute.xlu0 %5046
        %5048 = vrot.lane.b32.xlu0 %v4768, 17
        %v5049 = vpop.permute.xlu0 %5048
        %5050 = vrot.lane.b32.xlu0 %v4769, 17
        %v5051 = vpop.permute.xlu0 %5050
        %5052 = vrot.lane.b32.xlu0 %v4770, 17
        %v5053 = vpop.permute.xlu0 %5052
        %5054 = vrot.lane.b32.xlu0 %v4771, 17
        %v5055 = vpop.permute.xlu0 %5054
        %5056 = vrot.lane.b32.xlu0 %v4772, 17
        %v5057 = vpop.permute.xlu0 %5056
        %5058 = vrot.lane.b32.xlu0 %v4773, 17
        %v5059 = vpop.permute.xlu0 %5058
        %5060 = vrot.lane.b32.xlu0 %v4774, 17
        %v5061 = vpop.permute.xlu0 %5060
        %5062 = vrot.lane.b32.xlu0 %v4775, 17
        %v5063 = vpop.permute.xlu0 %5062
        %5064 = vrot.lane.b32.xlu0 %v4776, 17
        %v5065 = vpop.permute.xlu0 %5064
        %5066 = vrot.lane.b32.xlu0 %v4777, 17
        %v5067 = vpop.permute.xlu0 %5066
        %5068 = vrot.lane.b32.xlu0 %v4778, 17
        %v5069 = vpop.permute.xlu0 %5068
        %5070 = vrot.lane.b32.xlu0 %v4779, 17
        %v5071 = vpop.permute.xlu0 %5070
        %5072 = vrot.lane.b32.xlu0 %v4780, 17
        %v5073 = vpop.permute.xlu0 %5072
        %5074 = vrot.lane.b32.xlu0 %v4781, 17
        %v5075 = vpop.permute.xlu0 %5074
        %5076 = vrot.lane.b32.xlu0 %v4782, 17
        %v5077 = vpop.permute.xlu0 %5076
        %5078 = vrot.lane.b32.xlu0 %v4783, 17
        %v5079 = vpop.permute.xlu0 %5078
        %5080 = vrot.lane.b32.xlu0 %v4784, 17
        %v5081 = vpop.permute.xlu0 %5080
        %5082 = vrot.lane.b32.xlu0 %v4785, 17
        %v5083 = vpop.permute.xlu0 %5082
        %v5084 = vsel %vm1736, %v5081, %v5083
        %v5085 = vsel %vm1736, %v5079, %v5081
        %v5086 = vsel %vm1736, %v5077, %v5079
        %v5087 = vsel %vm1736, %v5075, %v5077
        %v5088 = vsel %vm1736, %v5073, %v5075
        %v5089 = vsel %vm1736, %v5071, %v5073
        %v5090 = vsel %vm1736, %v5069, %v5071
        %v5091 = vsel %vm1736, %v5067, %v5069
        %v5092 = vsel %vm1736, %v5065, %v5067
        %v5093 = vsel %vm1736, %v5063, %v5065
        %v5094 = vsel %vm1736, %v5061, %v5063
        %v5095 = vsel %vm1736, %v5059, %v5061
        %v5096 = vsel %vm1736, %v5057, %v5059
        %v5097 = vsel %vm1736, %v5055, %v5057
        %v5098 = vsel %vm1736, %v5053, %v5055
        %v5099 = vsel %vm1736, %v5051, %v5053
        %v5100 = vsel %vm1736, %v5049, %v5051
        %v5101 = vsel %vm1736, %v5047, %v5049
        %v5102 = vsel %vm1736, %v5045, %v5047
        %v5103 = vsel %vm1736, %v5043, %v5045
        %v5104 = vsel %vm1736, %v5041, %v5043
        %v5105 = vsel %vm1736, %v5039, %v5041
        %v5106 = vsel %vm1736, %v5037, %v5039
        %v5107 = vsel %vm1736, %v5083, %v5037
        %5109 = vset.pattern.permute.xlu0 0
        %5110 = vperm.xlu0 %5109, %v291
        %v5111 = vpop.permute.xlu0 %5110
        %v5113 = vmul.f32 %v5111, %v5107
        %v5114 = vmul.f32 %v5111, %v5106
        %v5115 = vmul.f32 %v5111, %v5105
        %v5116 = vmul.f32 %v5111, %v5104
        %v5117 = vmul.f32 %v5111, %v5103
        %v5118 = vmul.f32 %v5111, %v5102
        %v5119 = vmul.f32 %v5111, %v5101
        %v5120 = vmul.f32 %v5111, %v5100
        %v5121 = vmul.f32 %v5111, %v5099
        %v5122 = vmul.f32 %v5111, %v5098
        %v5123 = vmul.f32 %v5111, %v5097
        %v5124 = vmul.f32 %v5111, %v5096
        %v5125 = vmul.f32 %v5111, %v5095
        %v5126 = vmul.f32 %v5111, %v5094
        %v5127 = vmul.f32 %v5111, %v5093
        %v5128 = vmul.f32 %v5111, %v5092
        %v5129 = vmul.f32 %v5111, %v5091
        %v5130 = vmul.f32 %v5111, %v5090
        %v5131 = vmul.f32 %v5111, %v5089
        %v5132 = vmul.f32 %v5111, %v5088
        %v5133 = vmul.f32 %v5111, %v5087
        %v5134 = vmul.f32 %v5111, %v5086
        %v5135 = vmul.f32 %v5111, %v5085
        %v5136 = vmul.f32 %v5111, %v5084
        %v5137 = vadd.f32 %v5012, %v5113
        %v5138 = vadd.f32 %v5013, %v5114
        %v5139 = vadd.f32 %v5014, %v5115
        %v5140 = vadd.f32 %v5015, %v5116
        %v5141 = vadd.f32 %v5016, %v5117
        %v5142 = vadd.f32 %v5017, %v5118
        %v5143 = vadd.f32 %v5018, %v5119
        %v5144 = vadd.f32 %v5019, %v5120
        %v5145 = vadd.f32 %v5020, %v5121
        %v5146 = vadd.f32 %v5021, %v5122
        %v5147 = vadd.f32 %v5022, %v5123
        %v5148 = vadd.f32 %v5023, %v5124
        %v5149 = vadd.f32 %v5024, %v5125
        %v5150 = vadd.f32 %v5025, %v5126
        %v5151 = vadd.f32 %v5026, %v5127
        %v5152 = vadd.f32 %v5027, %v5128
        %v5153 = vadd.f32 %v5028, %v5129
        %v5154 = vadd.f32 %v5029, %v5130
        %v5155 = vadd.f32 %v5030, %v5131
        %v5156 = vadd.f32 %v5031, %v5132
        %v5157 = vadd.f32 %v5032, %v5133
        %v5158 = vadd.f32 %v5033, %v5134
        %v5159 = vadd.f32 %v5034, %v5135
        %v5160 = vadd.f32 %v5035, %v5136
        %5161 = vrot.lane.b32.xlu0 %v4762, 1
        %v5162 = vpop.permute.xlu0 %5161
        %5163 = vrot.lane.b32.xlu0 %v4763, 1
        %v5164 = vpop.permute.xlu0 %5163
        %5165 = vrot.lane.b32.xlu0 %v4764, 1
        %v5166 = vpop.permute.xlu0 %5165
        %5167 = vrot.lane.b32.xlu0 %v4765, 1
        %v5168 = vpop.permute.xlu0 %5167
        %5169 = vrot.lane.b32.xlu0 %v4766, 1
        %v5170 = vpop.permute.xlu0 %5169
        %5171 = vrot.lane.b32.xlu0 %v4767, 1
        %v5172 = vpop.permute.xlu0 %5171
        %5173 = vrot.lane.b32.xlu0 %v4768, 1
        %v5174 = vpop.permute.xlu0 %5173
        %5175 = vrot.lane.b32.xlu0 %v4769, 1
        %v5176 = vpop.permute.xlu0 %5175
        %5177 = vrot.lane.b32.xlu0 %v4770, 1
        %v5178 = vpop.permute.xlu0 %5177
        %5179 = vrot.lane.b32.xlu0 %v4771, 1
        %v5180 = vpop.permute.xlu0 %5179
        %5181 = vrot.lane.b32.xlu0 %v4772, 1
        %v5182 = vpop.permute.xlu0 %5181
        %5183 = vrot.lane.b32.xlu0 %v4773, 1
        %v5184 = vpop.permute.xlu0 %5183
        %5185 = vrot.lane.b32.xlu0 %v4774, 1
        %v5186 = vpop.permute.xlu0 %5185
        %5187 = vrot.lane.b32.xlu0 %v4775, 1
        %v5188 = vpop.permute.xlu0 %5187
        %5189 = vrot.lane.b32.xlu0 %v4776, 1
        %v5190 = vpop.permute.xlu0 %5189
        %5191 = vrot.lane.b32.xlu0 %v4777, 1
        %v5192 = vpop.permute.xlu0 %5191
        %5193 = vrot.lane.b32.xlu0 %v4778, 1
        %v5194 = vpop.permute.xlu0 %5193
        %5195 = vrot.lane.b32.xlu0 %v4779, 1
        %v5196 = vpop.permute.xlu0 %5195
        %5197 = vrot.lane.b32.xlu0 %v4780, 1
        %v5198 = vpop.permute.xlu0 %5197
        %5199 = vrot.lane.b32.xlu0 %v4781, 1
        %v5200 = vpop.permute.xlu0 %5199
        %5201 = vrot.lane.b32.xlu0 %v4782, 1
        %v5202 = vpop.permute.xlu0 %5201
        %5203 = vrot.lane.b32.xlu0 %v4783, 1
        %v5204 = vpop.permute.xlu0 %5203
        %5205 = vrot.lane.b32.xlu0 %v4784, 1
        %v5206 = vpop.permute.xlu0 %5205
        %5207 = vrot.lane.b32.xlu0 %v4785, 1
        %v5208 = vpop.permute.xlu0 %5207
        %v5209 = vsel %vm2227, %v5206, %v5208
        %v5210 = vsel %vm2227, %v5204, %v5206
        %v5211 = vsel %vm2227, %v5202, %v5204
        %v5212 = vsel %vm2227, %v5200, %v5202
        %v5213 = vsel %vm2227, %v5198, %v5200
        %v5214 = vsel %vm2227, %v5196, %v5198
        %v5215 = vsel %vm2227, %v5194, %v5196
        %v5216 = vsel %vm2227, %v5192, %v5194
        %v5217 = vsel %vm2227, %v5190, %v5192
        %v5218 = vsel %vm2227, %v5188, %v5190
        %v5219 = vsel %vm2227, %v5186, %v5188
        %v5220 = vsel %vm2227, %v5184, %v5186
        %v5221 = vsel %vm2227, %v5182, %v5184
        %v5222 = vsel %vm2227, %v5180, %v5182
        %v5223 = vsel %vm2227, %v5178, %v5180
        %v5224 = vsel %vm2227, %v5176, %v5178
        %v5225 = vsel %vm2227, %v5174, %v5176
        %v5226 = vsel %vm2227, %v5172, %v5174
        %v5227 = vsel %vm2227, %v5170, %v5172
        %v5228 = vsel %vm2227, %v5168, %v5170
        %v5229 = vsel %vm2227, %v5166, %v5168
        %v5230 = vsel %vm2227, %v5164, %v5166
        %v5231 = vsel %vm2227, %v5162, %v5164
        %v5232 = vsel %vm2227, %v5208, %v5162
        %5234 = vset.pattern.permute.xlu0 0
        %5235 = vperm.xlu0 %5234, %v292
        %v5236 = vpop.permute.xlu0 %5235
        %v5238 = vmul.f32 %v5236, %v5232
        %v5239 = vmul.f32 %v5236, %v5231
        %v5240 = vmul.f32 %v5236, %v5230
        %v5241 = vmul.f32 %v5236, %v5229
        %v5242 = vmul.f32 %v5236, %v5228
        %v5243 = vmul.f32 %v5236, %v5227
        %v5244 = vmul.f32 %v5236, %v5226
        %v5245 = vmul.f32 %v5236, %v5225
        %v5246 = vmul.f32 %v5236, %v5224
        %v5247 = vmul.f32 %v5236, %v5223
        %v5248 = vmul.f32 %v5236, %v5222
        %v5249 = vmul.f32 %v5236, %v5221
        %v5250 = vmul.f32 %v5236, %v5220
        %v5251 = vmul.f32 %v5236, %v5219
        %v5252 = vmul.f32 %v5236, %v5218
        %v5253 = vmul.f32 %v5236, %v5217
        %v5254 = vmul.f32 %v5236, %v5216
        %v5255 = vmul.f32 %v5236, %v5215
        %v5256 = vmul.f32 %v5236, %v5214
        %v5257 = vmul.f32 %v5236, %v5213
        %v5258 = vmul.f32 %v5236, %v5212
        %v5259 = vmul.f32 %v5236, %v5211
        %v5260 = vmul.f32 %v5236, %v5210
        %v5261 = vmul.f32 %v5236, %v5209
        %v5262 = vadd.f32 %v5137, %v5238
        %v5263 = vadd.f32 %v5138, %v5239
        %v5264 = vadd.f32 %v5139, %v5240
        %v5265 = vadd.f32 %v5140, %v5241
        %v5266 = vadd.f32 %v5141, %v5242
        %v5267 = vadd.f32 %v5142, %v5243
        %v5268 = vadd.f32 %v5143, %v5244
        %v5269 = vadd.f32 %v5144, %v5245
        %v5270 = vadd.f32 %v5145, %v5246
        %v5271 = vadd.f32 %v5146, %v5247
        %v5272 = vadd.f32 %v5147, %v5248
        %v5273 = vadd.f32 %v5148, %v5249
        %v5274 = vadd.f32 %v5149, %v5250
        %v5275 = vadd.f32 %v5150, %v5251
        %v5276 = vadd.f32 %v5151, %v5252
        %v5277 = vadd.f32 %v5152, %v5253
        %v5278 = vadd.f32 %v5153, %v5254
        %v5279 = vadd.f32 %v5154, %v5255
        %v5280 = vadd.f32 %v5155, %v5256
        %v5281 = vadd.f32 %v5156, %v5257
        %v5282 = vadd.f32 %v5157, %v5258
        %v5283 = vadd.f32 %v5158, %v5259
        %v5284 = vadd.f32 %v5159, %v5260
        %v5285 = vadd.f32 %v5160, %v5261
        %5287 = vset.pattern.permute.xlu0 0
        %5288 = vperm.xlu0 %5287, %v293
        %v5289 = vpop.permute.xlu0 %5288
        %v5291 = vmul.f32 %v5289, %v4762
        %v5292 = vmul.f32 %v5289, %v4763
        %v5293 = vmul.f32 %v5289, %v4764
        %v5294 = vmul.f32 %v5289, %v4765
        %v5295 = vmul.f32 %v5289, %v4766
        %v5296 = vmul.f32 %v5289, %v4767
        %v5297 = vmul.f32 %v5289, %v4768
        %v5298 = vmul.f32 %v5289, %v4769
        %v5299 = vmul.f32 %v5289, %v4770
        %v5300 = vmul.f32 %v5289, %v4771
        %v5301 = vmul.f32 %v5289, %v4772
        %v5302 = vmul.f32 %v5289, %v4773
        %v5303 = vmul.f32 %v5289, %v4774
        %v5304 = vmul.f32 %v5289, %v4775
        %v5305 = vmul.f32 %v5289, %v4776
        %v5306 = vmul.f32 %v5289, %v4777
        %v5307 = vmul.f32 %v5289, %v4778
        %v5308 = vmul.f32 %v5289, %v4779
        %v5309 = vmul.f32 %v5289, %v4780
        %v5310 = vmul.f32 %v5289, %v4781
        %v5311 = vmul.f32 %v5289, %v4782
        %v5312 = vmul.f32 %v5289, %v4783
        %v5313 = vmul.f32 %v5289, %v4784
        %v5314 = vmul.f32 %v5289, %v4785
        %v5315 = vadd.f32 %v5262, %v5291
        %v5316 = vadd.f32 %v5263, %v5292
        %v5317 = vadd.f32 %v5264, %v5293
        %v5318 = vadd.f32 %v5265, %v5294
        %v5319 = vadd.f32 %v5266, %v5295
        %v5320 = vadd.f32 %v5267, %v5296
        %v5321 = vadd.f32 %v5268, %v5297
        %v5322 = vadd.f32 %v5269, %v5298
        %v5323 = vadd.f32 %v5270, %v5299
        %v5324 = vadd.f32 %v5271, %v5300
        %v5325 = vadd.f32 %v5272, %v5301
        %v5326 = vadd.f32 %v5273, %v5302
        %v5327 = vadd.f32 %v5274, %v5303
        %v5328 = vadd.f32 %v5275, %v5304
        %v5329 = vadd.f32 %v5276, %v5305
        %v5330 = vadd.f32 %v5277, %v5306
        %v5331 = vadd.f32 %v5278, %v5307
        %v5332 = vadd.f32 %v5279, %v5308
        %v5333 = vadd.f32 %v5280, %v5309
        %v5334 = vadd.f32 %v5281, %v5310
        %v5335 = vadd.f32 %v5282, %v5311
        %v5336 = vadd.f32 %v5283, %v5312
        %v5337 = vadd.f32 %v5284, %v5313
        %v5338 = vadd.f32 %v5285, %v5314
        %5339 = vrot.lane.b32.xlu0 %v4762, 127
        %v5340 = vpop.permute.xlu0 %5339
        %5341 = vrot.lane.b32.xlu0 %v4763, 127
        %v5342 = vpop.permute.xlu0 %5341
        %5343 = vrot.lane.b32.xlu0 %v4764, 127
        %v5344 = vpop.permute.xlu0 %5343
        %5345 = vrot.lane.b32.xlu0 %v4765, 127
        %v5346 = vpop.permute.xlu0 %5345
        %5347 = vrot.lane.b32.xlu0 %v4766, 127
        %v5348 = vpop.permute.xlu0 %5347
        %5349 = vrot.lane.b32.xlu0 %v4767, 127
        %v5350 = vpop.permute.xlu0 %5349
        %5351 = vrot.lane.b32.xlu0 %v4768, 127
        %v5352 = vpop.permute.xlu0 %5351
        %5353 = vrot.lane.b32.xlu0 %v4769, 127
        %v5354 = vpop.permute.xlu0 %5353
        %5355 = vrot.lane.b32.xlu0 %v4770, 127
        %v5356 = vpop.permute.xlu0 %5355
        %5357 = vrot.lane.b32.xlu0 %v4771, 127
        %v5358 = vpop.permute.xlu0 %5357
        %5359 = vrot.lane.b32.xlu0 %v4772, 127
        %v5360 = vpop.permute.xlu0 %5359
        %5361 = vrot.lane.b32.xlu0 %v4773, 127
        %v5362 = vpop.permute.xlu0 %5361
        %5363 = vrot.lane.b32.xlu0 %v4774, 127
        %v5364 = vpop.permute.xlu0 %5363
        %5365 = vrot.lane.b32.xlu0 %v4775, 127
        %v5366 = vpop.permute.xlu0 %5365
        %5367 = vrot.lane.b32.xlu0 %v4776, 127
        %v5368 = vpop.permute.xlu0 %5367
        %5369 = vrot.lane.b32.xlu0 %v4777, 127
        %v5370 = vpop.permute.xlu0 %5369
        %5371 = vrot.lane.b32.xlu0 %v4778, 127
        %v5372 = vpop.permute.xlu0 %5371
        %5373 = vrot.lane.b32.xlu0 %v4779, 127
        %v5374 = vpop.permute.xlu0 %5373
        %5375 = vrot.lane.b32.xlu0 %v4780, 127
        %v5376 = vpop.permute.xlu0 %5375
        %5377 = vrot.lane.b32.xlu0 %v4781, 127
        %v5378 = vpop.permute.xlu0 %5377
        %5379 = vrot.lane.b32.xlu0 %v4782, 127
        %v5380 = vpop.permute.xlu0 %5379
        %5381 = vrot.lane.b32.xlu0 %v4783, 127
        %v5382 = vpop.permute.xlu0 %5381
        %5383 = vrot.lane.b32.xlu0 %v4784, 127
        %v5384 = vpop.permute.xlu0 %5383
        %5385 = vrot.lane.b32.xlu0 %v4785, 127
        %v5386 = vpop.permute.xlu0 %5385
        %v5387 = vsel %vm3136, %v5384, %v5386
        %v5388 = vsel %vm3136, %v5382, %v5384
        %v5389 = vsel %vm3136, %v5380, %v5382
        %v5390 = vsel %vm3136, %v5378, %v5380
        %v5391 = vsel %vm3136, %v5376, %v5378
        %v5392 = vsel %vm3136, %v5374, %v5376
        %v5393 = vsel %vm3136, %v5372, %v5374
        %v5394 = vsel %vm3136, %v5370, %v5372
        %v5395 = vsel %vm3136, %v5368, %v5370
        %v5396 = vsel %vm3136, %v5366, %v5368
        %v5397 = vsel %vm3136, %v5364, %v5366
        %v5398 = vsel %vm3136, %v5362, %v5364
        %v5399 = vsel %vm3136, %v5360, %v5362
        %v5400 = vsel %vm3136, %v5358, %v5360
        %v5401 = vsel %vm3136, %v5356, %v5358
        %v5402 = vsel %vm3136, %v5354, %v5356
        %v5403 = vsel %vm3136, %v5352, %v5354
        %v5404 = vsel %vm3136, %v5350, %v5352
        %v5405 = vsel %vm3136, %v5348, %v5350
        %v5406 = vsel %vm3136, %v5346, %v5348
        %v5407 = vsel %vm3136, %v5344, %v5346
        %v5408 = vsel %vm3136, %v5342, %v5344
        %v5409 = vsel %vm3136, %v5340, %v5342
        %v5410 = vsel %vm3136, %v5386, %v5340
        %5412 = vset.pattern.permute.xlu0 0
        %5413 = vperm.xlu0 %5412, %v294
        %v5414 = vpop.permute.xlu0 %5413
        %v5416 = vmul.f32 %v5414, %v5409
        %v5417 = vmul.f32 %v5414, %v5408
        %v5418 = vmul.f32 %v5414, %v5407
        %v5419 = vmul.f32 %v5414, %v5406
        %v5420 = vmul.f32 %v5414, %v5405
        %v5421 = vmul.f32 %v5414, %v5404
        %v5422 = vmul.f32 %v5414, %v5403
        %v5423 = vmul.f32 %v5414, %v5402
        %v5424 = vmul.f32 %v5414, %v5401
        %v5425 = vmul.f32 %v5414, %v5400
        %v5426 = vmul.f32 %v5414, %v5399
        %v5427 = vmul.f32 %v5414, %v5398
        %v5428 = vmul.f32 %v5414, %v5397
        %v5429 = vmul.f32 %v5414, %v5396
        %v5430 = vmul.f32 %v5414, %v5395
        %v5431 = vmul.f32 %v5414, %v5394
        %v5432 = vmul.f32 %v5414, %v5393
        %v5433 = vmul.f32 %v5414, %v5392
        %v5434 = vmul.f32 %v5414, %v5391
        %v5435 = vmul.f32 %v5414, %v5390
        %v5436 = vmul.f32 %v5414, %v5389
        %v5437 = vmul.f32 %v5414, %v5388
        %v5438 = vmul.f32 %v5414, %v5387
        %v5439 = vmul.f32 %v5414, %v5410
        %v5440 = vadd.f32 %v5315, %v5416
        %v5441 = vadd.f32 %v5316, %v5417
        %v5442 = vadd.f32 %v5317, %v5418
        %v5443 = vadd.f32 %v5318, %v5419
        %v5444 = vadd.f32 %v5319, %v5420
        %v5445 = vadd.f32 %v5320, %v5421
        %v5446 = vadd.f32 %v5321, %v5422
        %v5447 = vadd.f32 %v5322, %v5423
        %v5448 = vadd.f32 %v5323, %v5424
        %v5449 = vadd.f32 %v5324, %v5425
        %v5450 = vadd.f32 %v5325, %v5426
        %v5451 = vadd.f32 %v5326, %v5427
        %v5452 = vadd.f32 %v5327, %v5428
        %v5453 = vadd.f32 %v5328, %v5429
        %v5454 = vadd.f32 %v5329, %v5430
        %v5455 = vadd.f32 %v5330, %v5431
        %v5456 = vadd.f32 %v5331, %v5432
        %v5457 = vadd.f32 %v5332, %v5433
        %v5458 = vadd.f32 %v5333, %v5434
        %v5459 = vadd.f32 %v5334, %v5435
        %v5460 = vadd.f32 %v5335, %v5436
        %v5461 = vadd.f32 %v5336, %v5437
        %v5462 = vadd.f32 %v5337, %v5438
        %v5463 = vadd.f32 %v5338, %v5439
        %5464 = vrot.lane.b32.xlu0 %v4762, 111
        %v5465 = vpop.permute.xlu0 %5464
        %5466 = vrot.lane.b32.xlu0 %v4763, 111
        %v5467 = vpop.permute.xlu0 %5466
        %5468 = vrot.lane.b32.xlu0 %v4764, 111
        %v5469 = vpop.permute.xlu0 %5468
        %5470 = vrot.lane.b32.xlu0 %v4765, 111
        %v5471 = vpop.permute.xlu0 %5470
        %5472 = vrot.lane.b32.xlu0 %v4766, 111
        %v5473 = vpop.permute.xlu0 %5472
        %5474 = vrot.lane.b32.xlu0 %v4767, 111
        %v5475 = vpop.permute.xlu0 %5474
        %5476 = vrot.lane.b32.xlu0 %v4768, 111
        %v5477 = vpop.permute.xlu0 %5476
        %5478 = vrot.lane.b32.xlu0 %v4769, 111
        %v5479 = vpop.permute.xlu0 %5478
        %5480 = vrot.lane.b32.xlu0 %v4770, 111
        %v5481 = vpop.permute.xlu0 %5480
        %5482 = vrot.lane.b32.xlu0 %v4771, 111
        %v5483 = vpop.permute.xlu0 %5482
        %5484 = vrot.lane.b32.xlu0 %v4772, 111
        %v5485 = vpop.permute.xlu0 %5484
        %5486 = vrot.lane.b32.xlu0 %v4773, 111
        %v5487 = vpop.permute.xlu0 %5486
        %5488 = vrot.lane.b32.xlu0 %v4774, 111
        %v5489 = vpop.permute.xlu0 %5488
        %5490 = vrot.lane.b32.xlu0 %v4775, 111
        %v5491 = vpop.permute.xlu0 %5490
        %5492 = vrot.lane.b32.xlu0 %v4776, 111
        %v5493 = vpop.permute.xlu0 %5492
        %5494 = vrot.lane.b32.xlu0 %v4777, 111
        %v5495 = vpop.permute.xlu0 %5494
        %5496 = vrot.lane.b32.xlu0 %v4778, 111
        %v5497 = vpop.permute.xlu0 %5496
        %5498 = vrot.lane.b32.xlu0 %v4779, 111
        %v5499 = vpop.permute.xlu0 %5498
        %5500 = vrot.lane.b32.xlu0 %v4780, 111
        %v5501 = vpop.permute.xlu0 %5500
        %5502 = vrot.lane.b32.xlu0 %v4781, 111
        %v5503 = vpop.permute.xlu0 %5502
        %5504 = vrot.lane.b32.xlu0 %v4782, 111
        %v5505 = vpop.permute.xlu0 %5504
        %5506 = vrot.lane.b32.xlu0 %v4783, 111
        %v5507 = vpop.permute.xlu0 %5506
        %5508 = vrot.lane.b32.xlu0 %v4784, 111
        %v5509 = vpop.permute.xlu0 %5508
        %5510 = vrot.lane.b32.xlu0 %v4785, 111
        %v5511 = vpop.permute.xlu0 %5510
        %v5512 = vsel %vm3627, %v5509, %v5511
        %v5513 = vsel %vm3627, %v5507, %v5509
        %v5514 = vsel %vm3627, %v5505, %v5507
        %v5515 = vsel %vm3627, %v5503, %v5505
        %v5516 = vsel %vm3627, %v5501, %v5503
        %v5517 = vsel %vm3627, %v5499, %v5501
        %v5518 = vsel %vm3627, %v5497, %v5499
        %v5519 = vsel %vm3627, %v5495, %v5497
        %v5520 = vsel %vm3627, %v5493, %v5495
        %v5521 = vsel %vm3627, %v5491, %v5493
        %v5522 = vsel %vm3627, %v5489, %v5491
        %v5523 = vsel %vm3627, %v5487, %v5489
        %v5524 = vsel %vm3627, %v5485, %v5487
        %v5525 = vsel %vm3627, %v5483, %v5485
        %v5526 = vsel %vm3627, %v5481, %v5483
        %v5527 = vsel %vm3627, %v5479, %v5481
        %v5528 = vsel %vm3627, %v5477, %v5479
        %v5529 = vsel %vm3627, %v5475, %v5477
        %v5530 = vsel %vm3627, %v5473, %v5475
        %v5531 = vsel %vm3627, %v5471, %v5473
        %v5532 = vsel %vm3627, %v5469, %v5471
        %v5533 = vsel %vm3627, %v5467, %v5469
        %v5534 = vsel %vm3627, %v5465, %v5467
        %v5535 = vsel %vm3627, %v5511, %v5465
        %5537 = vset.pattern.permute.xlu0 0
        %5538 = vperm.xlu0 %5537, %v295
        %v5539 = vpop.permute.xlu0 %5538
        %v5541 = vmul.f32 %v5539, %v5534
        %v5542 = vmul.f32 %v5539, %v5533
        %v5543 = vmul.f32 %v5539, %v5532
        %v5544 = vmul.f32 %v5539, %v5531
        %v5545 = vmul.f32 %v5539, %v5530
        %v5546 = vmul.f32 %v5539, %v5529
        %v5547 = vmul.f32 %v5539, %v5528
        %v5548 = vmul.f32 %v5539, %v5527
        %v5549 = vmul.f32 %v5539, %v5526
        %v5550 = vmul.f32 %v5539, %v5525
        %v5551 = vmul.f32 %v5539, %v5524
        %v5552 = vmul.f32 %v5539, %v5523
        %v5553 = vmul.f32 %v5539, %v5522
        %v5554 = vmul.f32 %v5539, %v5521
        %v5555 = vmul.f32 %v5539, %v5520
        %v5556 = vmul.f32 %v5539, %v5519
        %v5557 = vmul.f32 %v5539, %v5518
        %v5558 = vmul.f32 %v5539, %v5517
        %v5559 = vmul.f32 %v5539, %v5516
        %v5560 = vmul.f32 %v5539, %v5515
        %v5561 = vmul.f32 %v5539, %v5514
        %v5562 = vmul.f32 %v5539, %v5513
        %v5563 = vmul.f32 %v5539, %v5512
        %v5564 = vmul.f32 %v5539, %v5535
        %v5565 = vadd.f32 %v5440, %v5541
        %v5566 = vadd.f32 %v5441, %v5542
        %v5567 = vadd.f32 %v5442, %v5543
        %v5568 = vadd.f32 %v5443, %v5544
        %v5569 = vadd.f32 %v5444, %v5545
        %v5570 = vadd.f32 %v5445, %v5546
        %v5571 = vadd.f32 %v5446, %v5547
        %v5572 = vadd.f32 %v5447, %v5548
        %v5573 = vadd.f32 %v5448, %v5549
        %v5574 = vadd.f32 %v5449, %v5550
        %v5575 = vadd.f32 %v5450, %v5551
        %v5576 = vadd.f32 %v5451, %v5552
        %v5577 = vadd.f32 %v5452, %v5553
        %v5578 = vadd.f32 %v5453, %v5554
        %v5579 = vadd.f32 %v5454, %v5555
        %v5580 = vadd.f32 %v5455, %v5556
        %v5581 = vadd.f32 %v5456, %v5557
        %v5582 = vadd.f32 %v5457, %v5558
        %v5583 = vadd.f32 %v5458, %v5559
        %v5584 = vadd.f32 %v5459, %v5560
        %v5585 = vadd.f32 %v5460, %v5561
        %v5586 = vadd.f32 %v5461, %v5562
        %v5587 = vadd.f32 %v5462, %v5563
        %v5588 = vadd.f32 %v5463, %v5564
        %5589 = vrot.lane.b32.xlu0 %v4762, 110
        %v5590 = vpop.permute.xlu0 %5589
        %5591 = vrot.lane.b32.xlu0 %v4763, 110
        %v5592 = vpop.permute.xlu0 %5591
        %5593 = vrot.lane.b32.xlu0 %v4764, 110
        %v5594 = vpop.permute.xlu0 %5593
        %5595 = vrot.lane.b32.xlu0 %v4765, 110
        %v5596 = vpop.permute.xlu0 %5595
        %5597 = vrot.lane.b32.xlu0 %v4766, 110
        %v5598 = vpop.permute.xlu0 %5597
        %5599 = vrot.lane.b32.xlu0 %v4767, 110
        %v5600 = vpop.permute.xlu0 %5599
        %5601 = vrot.lane.b32.xlu0 %v4768, 110
        %v5602 = vpop.permute.xlu0 %5601
        %5603 = vrot.lane.b32.xlu0 %v4769, 110
        %v5604 = vpop.permute.xlu0 %5603
        %5605 = vrot.lane.b32.xlu0 %v4770, 110
        %v5606 = vpop.permute.xlu0 %5605
        %5607 = vrot.lane.b32.xlu0 %v4771, 110
        %v5608 = vpop.permute.xlu0 %5607
        %5609 = vrot.lane.b32.xlu0 %v4772, 110
        %v5610 = vpop.permute.xlu0 %5609
        %5611 = vrot.lane.b32.xlu0 %v4773, 110
        %v5612 = vpop.permute.xlu0 %5611
        %5613 = vrot.lane.b32.xlu0 %v4774, 110
        %v5614 = vpop.permute.xlu0 %5613
        %5615 = vrot.lane.b32.xlu0 %v4775, 110
        %v5616 = vpop.permute.xlu0 %5615
        %5617 = vrot.lane.b32.xlu0 %v4776, 110
        %v5618 = vpop.permute.xlu0 %5617
        %5619 = vrot.lane.b32.xlu0 %v4777, 110
        %v5620 = vpop.permute.xlu0 %5619
        %5621 = vrot.lane.b32.xlu0 %v4778, 110
        %v5622 = vpop.permute.xlu0 %5621
        %5623 = vrot.lane.b32.xlu0 %v4779, 110
        %v5624 = vpop.permute.xlu0 %5623
        %5625 = vrot.lane.b32.xlu0 %v4780, 110
        %v5626 = vpop.permute.xlu0 %5625
        %5627 = vrot.lane.b32.xlu0 %v4781, 110
        %v5628 = vpop.permute.xlu0 %5627
        %5629 = vrot.lane.b32.xlu0 %v4782, 110
        %v5630 = vpop.permute.xlu0 %5629
        %5631 = vrot.lane.b32.xlu0 %v4783, 110
        %v5632 = vpop.permute.xlu0 %5631
        %5633 = vrot.lane.b32.xlu0 %v4784, 110
        %v5634 = vpop.permute.xlu0 %5633
        %5635 = vrot.lane.b32.xlu0 %v4785, 110
        %v5636 = vpop.permute.xlu0 %5635
        %v5637 = vsel %vm4118, %v5634, %v5636
        %v5638 = vsel %vm4118, %v5632, %v5634
        %v5639 = vsel %vm4118, %v5630, %v5632
        %v5640 = vsel %vm4118, %v5628, %v5630
        %v5641 = vsel %vm4118, %v5626, %v5628
        %v5642 = vsel %vm4118, %v5624, %v5626
        %v5643 = vsel %vm4118, %v5622, %v5624
        %v5644 = vsel %vm4118, %v5620, %v5622
        %v5645 = vsel %vm4118, %v5618, %v5620
        %v5646 = vsel %vm4118, %v5616, %v5618
        %v5647 = vsel %vm4118, %v5614, %v5616
        %v5648 = vsel %vm4118, %v5612, %v5614
        %v5649 = vsel %vm4118, %v5610, %v5612
        %v5650 = vsel %vm4118, %v5608, %v5610
        %v5651 = vsel %vm4118, %v5606, %v5608
        %v5652 = vsel %vm4118, %v5604, %v5606
        %v5653 = vsel %vm4118, %v5602, %v5604
        %v5654 = vsel %vm4118, %v5600, %v5602
        %v5655 = vsel %vm4118, %v5598, %v5600
        %v5656 = vsel %vm4118, %v5596, %v5598
        %v5657 = vsel %vm4118, %v5594, %v5596
        %v5658 = vsel %vm4118, %v5592, %v5594
        %v5659 = vsel %vm4118, %v5590, %v5592
        %v5660 = vsel %vm4118, %v5636, %v5590
        %5662 = vset.pattern.permute.xlu0 0
        %5663 = vperm.xlu0 %5662, %v296
        %v5664 = vpop.permute.xlu0 %5663
        %v5666 = vmul.f32 %v5664, %v5659
        %v5667 = vmul.f32 %v5664, %v5658
        %v5668 = vmul.f32 %v5664, %v5657
        %v5669 = vmul.f32 %v5664, %v5656
        %v5670 = vmul.f32 %v5664, %v5655
        %v5671 = vmul.f32 %v5664, %v5654
        %v5672 = vmul.f32 %v5664, %v5653
        %v5673 = vmul.f32 %v5664, %v5652
        %v5674 = vmul.f32 %v5664, %v5651
        %v5675 = vmul.f32 %v5664, %v5650
        %v5676 = vmul.f32 %v5664, %v5649
        %v5677 = vmul.f32 %v5664, %v5648
        %v5678 = vmul.f32 %v5664, %v5647
        %v5679 = vmul.f32 %v5664, %v5646
        %v5680 = vmul.f32 %v5664, %v5645
        %v5681 = vmul.f32 %v5664, %v5644
        %v5682 = vmul.f32 %v5664, %v5643
        %v5683 = vmul.f32 %v5664, %v5642
        %v5684 = vmul.f32 %v5664, %v5641
        %v5685 = vmul.f32 %v5664, %v5640
        %v5686 = vmul.f32 %v5664, %v5639
        %v5687 = vmul.f32 %v5664, %v5638
        %v5688 = vmul.f32 %v5664, %v5637
        %v5689 = vmul.f32 %v5664, %v5660
        %v5690 = vadd.f32 %v5565, %v5666
        %v5691 = vadd.f32 %v5566, %v5667
        %v5692 = vadd.f32 %v5567, %v5668
        %v5693 = vadd.f32 %v5568, %v5669
        %v5694 = vadd.f32 %v5569, %v5670
        %v5695 = vadd.f32 %v5570, %v5671
        %v5696 = vadd.f32 %v5571, %v5672
        %v5697 = vadd.f32 %v5572, %v5673
        %v5698 = vadd.f32 %v5573, %v5674
        %v5699 = vadd.f32 %v5574, %v5675
        %v5700 = vadd.f32 %v5575, %v5676
        %v5701 = vadd.f32 %v5576, %v5677
        %v5702 = vadd.f32 %v5577, %v5678
        %v5703 = vadd.f32 %v5578, %v5679
        %v5704 = vadd.f32 %v5579, %v5680
        %v5705 = vadd.f32 %v5580, %v5681
        %v5706 = vadd.f32 %v5581, %v5682
        %v5707 = vadd.f32 %v5582, %v5683
        %v5708 = vadd.f32 %v5583, %v5684
        %v5709 = vadd.f32 %v5584, %v5685
        %v5710 = vadd.f32 %v5585, %v5686
        %v5711 = vadd.f32 %v5586, %v5687
        %v5712 = vadd.f32 %v5587, %v5688
        %v5713 = vadd.f32 %v5588, %v5689
        %5714 = vrot.lane.b32.xlu0 %v4762, 109
        %v5715 = vpop.permute.xlu0 %5714
        %5716 = vrot.lane.b32.xlu0 %v4763, 109
        %v5717 = vpop.permute.xlu0 %5716
        %5718 = vrot.lane.b32.xlu0 %v4764, 109
        %v5719 = vpop.permute.xlu0 %5718
        %5720 = vrot.lane.b32.xlu0 %v4765, 109
        %v5721 = vpop.permute.xlu0 %5720
        %5722 = vrot.lane.b32.xlu0 %v4766, 109
        %v5723 = vpop.permute.xlu0 %5722
        %5724 = vrot.lane.b32.xlu0 %v4767, 109
        %v5725 = vpop.permute.xlu0 %5724
        %5726 = vrot.lane.b32.xlu0 %v4768, 109
        %v5727 = vpop.permute.xlu0 %5726
        %5728 = vrot.lane.b32.xlu0 %v4769, 109
        %v5729 = vpop.permute.xlu0 %5728
        %5730 = vrot.lane.b32.xlu0 %v4770, 109
        %v5731 = vpop.permute.xlu0 %5730
        %5732 = vrot.lane.b32.xlu0 %v4771, 109
        %v5733 = vpop.permute.xlu0 %5732
        %5734 = vrot.lane.b32.xlu0 %v4772, 109
        %v5735 = vpop.permute.xlu0 %5734
        %5736 = vrot.lane.b32.xlu0 %v4773, 109
        %v5737 = vpop.permute.xlu0 %5736
        %5738 = vrot.lane.b32.xlu0 %v4774, 109
        %v5739 = vpop.permute.xlu0 %5738
        %5740 = vrot.lane.b32.xlu0 %v4775, 109
        %v5741 = vpop.permute.xlu0 %5740
        %5742 = vrot.lane.b32.xlu0 %v4776, 109
        %v5743 = vpop.permute.xlu0 %5742
        %5744 = vrot.lane.b32.xlu0 %v4777, 109
        %v5745 = vpop.permute.xlu0 %5744
        %5746 = vrot.lane.b32.xlu0 %v4778, 109
        %v5747 = vpop.permute.xlu0 %5746
        %5748 = vrot.lane.b32.xlu0 %v4779, 109
        %v5749 = vpop.permute.xlu0 %5748
        %5750 = vrot.lane.b32.xlu0 %v4780, 109
        %v5751 = vpop.permute.xlu0 %5750
        %5752 = vrot.lane.b32.xlu0 %v4781, 109
        %v5753 = vpop.permute.xlu0 %5752
        %5754 = vrot.lane.b32.xlu0 %v4782, 109
        %v5755 = vpop.permute.xlu0 %5754
        %5756 = vrot.lane.b32.xlu0 %v4783, 109
        %v5757 = vpop.permute.xlu0 %5756
        %5758 = vrot.lane.b32.xlu0 %v4784, 109
        %v5759 = vpop.permute.xlu0 %5758
        %5760 = vrot.lane.b32.xlu0 %v4785, 109
        %v5761 = vpop.permute.xlu0 %5760
        %v5762 = vsel %vm4609, %v5759, %v5761
        %v5763 = vsel %vm4609, %v5757, %v5759
        %v5764 = vsel %vm4609, %v5755, %v5757
        %v5765 = vsel %vm4609, %v5753, %v5755
        %v5766 = vsel %vm4609, %v5751, %v5753
        %v5767 = vsel %vm4609, %v5749, %v5751
        %v5768 = vsel %vm4609, %v5747, %v5749
        %v5769 = vsel %vm4609, %v5745, %v5747
        %v5770 = vsel %vm4609, %v5743, %v5745
        %v5771 = vsel %vm4609, %v5741, %v5743
        %v5772 = vsel %vm4609, %v5739, %v5741
        %v5773 = vsel %vm4609, %v5737, %v5739
        %v5774 = vsel %vm4609, %v5735, %v5737
        %v5775 = vsel %vm4609, %v5733, %v5735
        %v5776 = vsel %vm4609, %v5731, %v5733
        %v5777 = vsel %vm4609, %v5729, %v5731
        %v5778 = vsel %vm4609, %v5727, %v5729
        %v5779 = vsel %vm4609, %v5725, %v5727
        %v5780 = vsel %vm4609, %v5723, %v5725
        %v5781 = vsel %vm4609, %v5721, %v5723
        %v5782 = vsel %vm4609, %v5719, %v5721
        %v5783 = vsel %vm4609, %v5717, %v5719
        %v5784 = vsel %vm4609, %v5715, %v5717
        %v5785 = vsel %vm4609, %v5761, %v5715
        %5787 = vset.pattern.permute.xlu0 0
        %5788 = vperm.xlu0 %5787, %v297
        %v5789 = vpop.permute.xlu0 %5788
        %v5791 = vmul.f32 %v5789, %v5784
        %v5792 = vmul.f32 %v5789, %v5783
        %v5793 = vmul.f32 %v5789, %v5782
        %v5794 = vmul.f32 %v5789, %v5781
        %v5795 = vmul.f32 %v5789, %v5780
        %v5796 = vmul.f32 %v5789, %v5779
        %v5797 = vmul.f32 %v5789, %v5778
        %v5798 = vmul.f32 %v5789, %v5777
        %v5799 = vmul.f32 %v5789, %v5776
        %v5800 = vmul.f32 %v5789, %v5775
        %v5801 = vmul.f32 %v5789, %v5774
        %v5802 = vmul.f32 %v5789, %v5773
        %v5803 = vmul.f32 %v5789, %v5772
        %v5804 = vmul.f32 %v5789, %v5771
        %v5805 = vmul.f32 %v5789, %v5770
        %v5806 = vmul.f32 %v5789, %v5769
        %v5807 = vmul.f32 %v5789, %v5768
        %v5808 = vmul.f32 %v5789, %v5767
        %v5809 = vmul.f32 %v5789, %v5766
        %v5810 = vmul.f32 %v5789, %v5765
        %v5811 = vmul.f32 %v5789, %v5764
        %v5812 = vmul.f32 %v5789, %v5763
        %v5813 = vmul.f32 %v5789, %v5762
        %v5814 = vmul.f32 %v5789, %v5785
        %v5815 = vadd.f32 %v5690, %v5791
        %v5816 = vadd.f32 %v5691, %v5792
        %v5817 = vadd.f32 %v5692, %v5793
        %v5818 = vadd.f32 %v5693, %v5794
        %v5819 = vadd.f32 %v5694, %v5795
        %v5820 = vadd.f32 %v5695, %v5796
        %v5821 = vadd.f32 %v5696, %v5797
        %v5822 = vadd.f32 %v5697, %v5798
        %v5823 = vadd.f32 %v5698, %v5799
        %v5824 = vadd.f32 %v5699, %v5800
        %v5825 = vadd.f32 %v5700, %v5801
        %v5826 = vadd.f32 %v5701, %v5802
        %v5827 = vadd.f32 %v5702, %v5803
        %v5828 = vadd.f32 %v5703, %v5804
        %v5829 = vadd.f32 %v5704, %v5805
        %v5830 = vadd.f32 %v5705, %v5806
        %v5831 = vadd.f32 %v5706, %v5807
        %v5832 = vadd.f32 %v5707, %v5808
        %v5833 = vadd.f32 %v5708, %v5809
        %v5834 = vadd.f32 %v5709, %v5810
        %v5835 = vadd.f32 %v5710, %v5811
        %v5836 = vadd.f32 %v5711, %v5812
        %v5837 = vadd.f32 %v5712, %v5813
        %v5838 = vadd.f32 %v5713, %v5814
        %5840 = vset.pattern.permute.xlu0 0
        %5841 = vperm.xlu0 %5840, %v298
        %v5842 = vpop.permute.xlu0 %5841
        %v5844 = vadd.f32 %v5815, %v5842
        %v5845 = vadd.f32 %v5816, %v5842
        %v5846 = vadd.f32 %v5817, %v5842
        %v5847 = vadd.f32 %v5818, %v5842
        %v5848 = vadd.f32 %v5819, %v5842
        %v5849 = vadd.f32 %v5820, %v5842
        %v5850 = vadd.f32 %v5821, %v5842
        %v5851 = vadd.f32 %v5822, %v5842
        %v5852 = vadd.f32 %v5823, %v5842
        %v5853 = vadd.f32 %v5824, %v5842
        %v5854 = vadd.f32 %v5825, %v5842
        %v5855 = vadd.f32 %v5826, %v5842
        %v5856 = vadd.f32 %v5827, %v5842
        %v5857 = vadd.f32 %v5828, %v5842
        %v5858 = vadd.f32 %v5829, %v5842
        %v5859 = vadd.f32 %v5830, %v5842
        %v5860 = vadd.f32 %v5831, %v5842
        %v5861 = vadd.f32 %v5832, %v5842
        %v5862 = vadd.f32 %v5833, %v5842
        %v5863 = vadd.f32 %v5834, %v5842
        %v5864 = vadd.f32 %v5835, %v5842
        %v5865 = vadd.f32 %v5836, %v5842
        %v5866 = vadd.f32 %v5837, %v5842
        %v5867 = vadd.f32 %v5838, %v5842
        %v5868 = vmax.f32 %v5844, 0.0
        %v5869 = vmax.f32 %v5845, 0.0
        %v5870 = vmax.f32 %v5846, 0.0
        %v5871 = vmax.f32 %v5847, 0.0
        %v5872 = vmax.f32 %v5848, 0.0
        %v5873 = vmax.f32 %v5849, 0.0
        %v5874 = vmax.f32 %v5850, 0.0
        %v5875 = vmax.f32 %v5851, 0.0
        %v5876 = vmax.f32 %v5852, 0.0
        %v5877 = vmax.f32 %v5853, 0.0
        %v5878 = vmax.f32 %v5854, 0.0
        %v5879 = vmax.f32 %v5855, 0.0
        %v5880 = vmax.f32 %v5856, 0.0
        %v5881 = vmax.f32 %v5857, 0.0
        %v5882 = vmax.f32 %v5858, 0.0
        %v5883 = vmax.f32 %v5859, 0.0
        %v5884 = vmax.f32 %v5860, 0.0
        %v5885 = vmax.f32 %v5861, 0.0
        %v5886 = vmax.f32 %v5862, 0.0
        %v5887 = vmax.f32 %v5863, 0.0
        %v5888 = vmax.f32 %v5864, 0.0
        %v5889 = vmax.f32 %v5865, 0.0
        %v5890 = vmax.f32 %v5866, 0.0
        %v5891 = vmax.f32 %v5867, 0.0
        %v5916 = vrot.slane %v5868, 4
        %v5917 = vrot.slane %v5869, 4
        %v5918 = vrot.slane %v5870, 4
        %v5919 = vrot.slane %v5871, 4
        %v5920 = vrot.slane %v5872, 4
        %v5921 = vrot.slane %v5873, 4
        %v5922 = vrot.slane %v5874, 4
        %v5923 = vrot.slane %v5875, 4
        %v5924 = vrot.slane %v5876, 4
        %v5925 = vrot.slane %v5877, 4
        %v5926 = vrot.slane %v5878, 4
        %v5927 = vrot.slane %v5879, 4
        %v5928 = vrot.slane %v5880, 4
        %v5929 = vrot.slane %v5881, 4
        %v5930 = vrot.slane %v5882, 4
        %v5931 = vrot.slane %v5883, 4
        %v5932 = vrot.slane %v5884, 4
        %v5933 = vrot.slane %v5885, 4
        %v5934 = vrot.slane %v5886, 4
        %v5935 = vrot.slane %v5887, 4
        %v5936 = vrot.slane %v5888, 4
        %v5937 = vrot.slane %v5889, 4
        %v5938 = vrot.slane %v5890, 4
        %v5939 = vrot.slane %v5891, 4
        %vm5964 = vcmask 1043456
        %v5965 = vsel %vm5964, %v4762, %v5916
        %v5966 = vsel %vm5964, %v4763, %v5917
        %v5967 = vsel %vm5964, %v4764, %v5918
        %v5968 = vsel %vm5964, %v4765, %v5919
        %v5969 = vsel %vm5964, %v4766, %v5920
        %v5970 = vsel %vm5964, %v4767, %v5921
        %v5971 = vsel %vm5964, %v4768, %v5922
        %v5972 = vsel %vm5964, %v4769, %v5923
        %v5973 = vsel %vm5964, %v4770, %v5924
        %v5974 = vsel %vm5964, %v4771, %v5925
        %v5975 = vsel %vm5964, %v4772, %v5926
        %v5976 = vsel %vm5964, %v4773, %v5927
        %v5977 = vsel %vm5964, %v4774, %v5928
        %v5978 = vsel %vm5964, %v4775, %v5929
        %v5979 = vsel %vm5964, %v4776, %v5930
        %v5980 = vsel %vm5964, %v4777, %v5931
        %v5981 = vsel %vm5964, %v4778, %v5932
        %v5982 = vsel %vm5964, %v4779, %v5933
        %v5983 = vsel %vm5964, %v4780, %v5934
        %v5984 = vsel %vm5964, %v4781, %v5935
        %v5985 = vsel %vm5964, %v4782, %v5936
        %v5986 = vsel %vm5964, %v4783, %v5937
        %v5987 = vsel %vm5964, %v4784, %v5938
        %v5988 = vsel %vm5964, %v4785, %v5939
        %v5989 = vpack.c.bf16 %v5966, %v5965
        %v5990 = vpack.c.bf16 %v5968, %v5967
        %v5991 = vpack.c.bf16 %v5970, %v5969
        %v5992 = vpack.c.bf16 %v5972, %v5971
        %v5993 = vpack.c.bf16 %v5974, %v5973
        %v5994 = vpack.c.bf16 %v5976, %v5975
        %v5995 = vpack.c.bf16 %v5978, %v5977
        %v5996 = vpack.c.bf16 %v5980, %v5979
        %v5997 = vpack.c.bf16 %v5982, %v5981
        %v5998 = vpack.c.bf16 %v5984, %v5983
        %v5999 = vpack.c.bf16 %v5986, %v5985
        %v6000 = vpack.c.bf16 %v5988, %v5987
        %6001 = vst [vmem:[%s269] sm:$0xff] %v5989
        %6002 = vst [vmem:[%s269 + $0x8] sm:$0xff] %v5990
        %6003 = vst [vmem:[%s269 + $0x10] sm:$0xff] %v5991
        %6004 = vst [vmem:[%s269 + $0x18] sm:$0xff] %v5992
        %6005 = vst [vmem:[%s269 + $0x20] sm:$0xff] %v5993
        %6006 = vst [vmem:[%s269 + $0x28] sm:$0xff] %v5994
        %6007 = vst [vmem:[%s269 + $0x30] sm:$0xff] %v5995
        %6008 = vst [vmem:[%s269 + $0x38] sm:$0xff] %v5996
        %6009 = vst [vmem:[%s269 + $0x40] sm:$0xff] %v5997
        %6010 = vst [vmem:[%s269 + $0x48] sm:$0xff] %v5998
        %6011 = vst [vmem:[%s269 + $0x50] sm:$0xff] %v5999
        %6012 = vst [vmem:[%s269 + $0x58] sm:$0xff] %v6000
        %s6013 = sand.u32 %s162, 1
        %s6014 = scalar_lea.sflag [#allocation4], %s6013
        %s6015 = sand.u32 %s162, 1
        %s6016 = smul.addr %s6015, 96
        %s6017 = scalar_lea.vmem [#allocation5], %s6016
        // Predicated region
        $region49: #{tpu_custom_call.1} parent=43 // pred_check
          %p6018 = pneg %p172
        $region50: #{tpu_custom_call.1} parent=43 // pred_check_branch
          %6020 = sbr.rel (%p6018) target = $region52
        $region51: #{tpu_custom_call.1} parent=43 // pred_region
          %s6021 = smul.u32 24, %s23
          %6023 = vsyncadd %s6014, 0
          %s6024 = smul.addr %s6021, 4
          %s6025 = scalar_lea.hbm %s6, %s6024
          %s6027 = sshll.u32 %s6017, 4
          %s6028 = int_to_ptr.vmem [resolvable:$true] %s6027
          %s6029 = sshll.u32 %s6025, 4
          %s6030 = int_to_ptr.hbm [resolvable:$true] %s6029
          %6032 = dma.vmem_to_hbm [thread:$0]  %s6028, 1536, %s6030, %s6014
        $region52: #{tpu_custom_call.1} parent=43 // pred_fallthru
          _
      $region44: #{tpu_custom_call.1} parent=5 // pred_fallthru
        _
      %p6033 = scmp.le.s32.totalorder 2, %s18
      // Predicated region
      $region53: #{tpu_custom_call.1} parent=5 // pred_check
        %p6034 = pneg %p6033
      $region54: #{tpu_custom_call.1} parent=5 // pred_check_branch
        %6036 = sbr.rel (%p6034) target = $region56
      $region55: #{tpu_custom_call.1} parent=5 // pred_region
        %s6037 = ssub.s32 %s18, 2
        // Predicated region
        $region57: #{tpu_custom_call.1} parent=55 // pred_check
          %p6038 = pneg %p178
        $region58: #{tpu_custom_call.1} parent=55 // pred_check_branch
          %6040 = sbr.rel (%p6038) target = $region60
        $region59: #{tpu_custom_call.1} parent=55 // pred_region
          %s6041 = sand.u32 %s163, 1
          %s6042 = scalar_lea.sflag [#allocation4], %s6041
          %s6043 = sand.u32 %s163, 1
          %s6044 = smul.addr %s6043, 96
          %s6045 = scalar_lea.vmem [#allocation5], %s6044
          %6047 = dma.done %s6042, 1536
        $region60: #{tpu_custom_call.1} parent=55 // pred_fallthru
          _
      $region56: #{tpu_custom_call.1} parent=5 // pred_fallthru
        _
    $region6: #{tpu_custom_call.1} parent=1 // loop_footer
      %s22 = sadd.s32 1, %s18
    $region7: #{tpu_custom_call.1} parent=1 // loop_footer_branch
      %17 = sbr.rel target = $region3
    $region8: #{tpu_custom_call.1} parent=1 // loop_exit
      _
    %6048 = vsyncpa [#allocation3], 1
    %s6049 = scalar_lea.sflag [#allocation3], 1
    %6050 = vsyncpa %s6049, 1
    %6051 = vsyncpa [#allocation4], 1
    %s6052 = scalar_lea.sflag [#allocation4], 1
    %6053 = vsyncpa %s6052, 1

</llo_original>
